<compile_context>
chip_gen: v7x
topology: tpu7x:2x2x1
jax: 0.10.0
libtpu: 0.0.40
codegen_flags: <defaults>
</compile_context>

<pallas_src>
import jax
import jax.numpy as jnp
import numpy as np
from jax import lax
from jax.experimental import pallas as pl
from jax.experimental.pallas import tpu as pltpu

# ----------------------------- problem sizes --------------------------------
IN_FEATURES = 16          # in_shape
HIDDEN1 = 32              # speaker hidden
HIDDEN2 = 32              # listener hidden
MSG_SHAPE = (8, 128)      # message_shape (M symbols, V vocab)
OUT_SHAPE = (4, 128)      # out_shape (O, A)  -> action is softmax over last dim
M, V = MSG_SHAPE
O, A = OUT_SHAPE

TB_DEFAULT = 128          # batch tile (sweep 128/256/512); weights stay resident


def _round_up(n, m):
    return ((n + m - 1) // m) * m


# ------------------------------- kernel -------------------------------------
def srpolicy_kernel(x_ref, w1_ref, b1_ref, w2_ref, b2_ref,
                    wr1_ref, br1_ref, wr2_ref, br2_ref, out_ref, msg_ref):
    bf = jnp.bfloat16
    tb = x_ref.shape[0]

    # ---- Speaker layer 1: (TB, IN) @ (IN, H1), f32 accumulate, f32 ReLU ----
    h1 = jnp.dot(x_ref[...], w1_ref[...],
                 preferred_element_type=jnp.float32) + b1_ref[...]
    h1 = jnp.maximum(h1, 0.0).astype(bf)                                  # (TB, H1) bf16

    # ---- Speaker layer 2, fused: (TB, H1) @ (H1, M*V) ----
    logits = jnp.dot(h1, w2_ref[...],
                     preferred_element_type=jnp.float32) + b2_ref[...]    # (TB, M*V) f32

    # ---- Per-symbol argmax -> one-hot message (no softmax needed: argmax-invariant).
    # Static 128-lane slices are vreg-aligned; one-hot staged in a VMEM scratch so the
    # listener-L1 matmul can consume a single (TB, M*V) operand without register bloat.
    col = lax.broadcasted_iota(jnp.int32, (tb, V), 1)
    for m in range(M):
        lg = logits[:, m * V:(m + 1) * V]                                 # (TB, V)
        row_max = jnp.max(lg, axis=-1, keepdims=True)
        # first-max tie-breaking (matches jnp.argmax)
        first_idx = jnp.min(jnp.where(lg == row_max, col, V),
                            axis=-1, keepdims=True)
        msg_ref[:, m * V:(m + 1) * V] = (col == first_idx).astype(bf)     # one-hot (exact in bf16)

    # ---- Listener layer 1, fused: (TB, M*V) @ (M*V, H2), K=1024 fills the MXU ----
    h2 = jnp.dot(msg_ref[...], wr1_ref[...],
                 preferred_element_type=jnp.float32) + br1_ref[...]
    h2 = jnp.maximum(h2, 0.0).astype(bf)                                  # (TB, H2) bf16

    # ---- Listener layer 2, fused: (TB, H2) @ (H2, O*A); per-o softmax + lane-dense store.
    logits2 = jnp.dot(h2, wr2_ref[...],
                      preferred_element_type=jnp.float32) + br2_ref[...]  # (TB, O*A) f32
    for o in range(O):
        lg = logits2[:, o * A:(o + 1) * A]                                # (TB, A)
        lg = lg - jnp.max(lg, axis=-1, keepdims=True)
        e = jnp.exp(lg)
        out_ref[:, o * A:(o + 1) * A] = (
            e * pl.reciprocal(jnp.sum(e, axis=-1, keepdims=True), approx=False))


# ------------------------------- wrapper -------------------------------------
def srpolicy_forward(x, params, tb=TB_DEFAULT):
    """x: (B, in_features) float32. Returns (B, O, A) actions (softmax over last dim)."""
    w1, b1, w2, b2, wr1, br1, wr2, br2 = params
    B = x.shape[0]

    # Pick a tile: TB=128 for large batches; round small batches up to a sublane multiple.
    TB = int(min(tb, _round_up(max(B, 1), 8)))
    Bp = _round_up(B, TB)
    if Bp != B:
        x = jnp.pad(x, ((0, Bp - B), (0, 0)))

    bf = jnp.bfloat16
    # Pre-arrange torch-style (out, in) weights as plain row-major (in, out) matrices so
    # every in-kernel op is a single fused matmul producing (rows, 128k)-lane layouts.
    # Matmul operands are bf16 (MXU rate); biases stay f32 and are added post-accumulate.
    w1_t = w1.T.astype(bf)                       # (IN, H1)
    b1_r = b1.reshape(1, HIDDEN1).astype(jnp.float32)
    w2_t = w2.T.astype(bf)                       # (H1, M*V)
    b2_r = b2.reshape(1, M * V).astype(jnp.float32)
    wr1_t = wr1.T.astype(bf)                     # (M*V, H2)
    br1_r = br1.reshape(1, HIDDEN2).astype(jnp.float32)
    wr2_t = wr2.T.astype(bf)                     # (H2, O*A)
    br2_r = br2.reshape(1, O * A).astype(jnp.float32)

    args = (x.astype(bf), w1_t, b1_r, w2_t, b2_r, wr1_t, br1_r, wr2_t, br2_r)

    def resident_spec(a):   # same block every grid step -> weight stays in VMEM
        return pl.BlockSpec(a.shape, lambda i: (0, 0))

    out = pl.pallas_call(
        srpolicy_kernel,
        out_shape=jax.ShapeDtypeStruct((Bp, O * A), jnp.float32),
        grid_spec=pltpu.PrefetchScalarGridSpec(
            num_scalar_prefetch=0,
            grid=(Bp // TB,),
            in_specs=[pl.BlockSpec((TB, IN_FEATURES), lambda i: (i, 0))]
                     + [resident_spec(a) for a in args[1:]],
            out_specs=pl.BlockSpec((TB, O * A), lambda i: (i, 0)),
            scratch_shapes=[pltpu.VMEM((TB, M * V), jnp.bfloat16)],       # one-hot message
        ),
        compiler_params=pltpu.CompilerParams(dimension_semantics=("parallel",)),
    )(*args)

    # Row-major (Bp, O*A) -> (B, O, A): no transpose, just drop padding + reshape.
    return out[:B].reshape(B, O, A)


# --------------------------- reference (pure JAX) ----------------------------
def srpolicy_reference(x, params):
    """Single-sample reference mirroring the torch module (bf16 matmul operands,
    f32 accumulation — same precision contract as the kernel)."""
    w1, b1, w2, b2, wr1, br1, wr2, br2 = params
    bf = jnp.bfloat16
    h1 = jnp.maximum(jnp.dot(x.astype(bf), w1.T.astype(bf),
                             preferred_element_type=jnp.float32) + b1, 0.0)
    x3 = jnp.dot(h1.astype(bf), w2.T.astype(bf),
                 preferred_element_type=jnp.float32) + b2
    soft = jax.nn.softmax(x3.reshape(MSG_SHAPE), axis=-1)
    message = jax.nn.one_hot(jnp.argmax(soft, axis=-1), V, dtype=jnp.float32)
    h2 = jnp.maximum(jnp.dot(message.reshape(-1).astype(bf), wr1.T.astype(bf),
                             preferred_element_type=jnp.float32) + br1, 0.0)
    x6 = jnp.dot(h2.astype(bf), wr2.T.astype(bf),
                 preferred_element_type=jnp.float32) + br2
    return jax.nn.softmax(x6.reshape(OUT_SHAPE), axis=-1)


# ----------------------------- param init ------------------------------------
def init_linear(key, out_features, in_features):
    # torch.nn.Linear default: U(-1/sqrt(fan_in), 1/sqrt(fan_in)) for W and b
    kw, kb = jax.random.split(key)
    bound = 1.0 / np.sqrt(in_features)
    w = jax.random.uniform(kw, (out_features, in_features), jnp.float32, -bound, bound)
    b = jax.random.uniform(kb, (out_features,), jnp.float32, -bound, bound)
    return w, b


if __name__ == "__main__":
    key = jax.random.PRNGKey(0)
    k_x, k1, k2, k3, k4 = jax.random.split(key, 5)

    w1, b1 = init_linear(k1, HIDDEN1, IN_FEATURES)           # speaker.sender1
    w2, b2 = init_linear(k2, M * V, HIDDEN1)                 # speaker.sender2
    wr1, br1 = init_linear(k3, HIDDEN2, M * V)               # listener.receiver1
    wr2, br2 = init_linear(k4, O * A, HIDDEN2)               # listener.receiver2
    params = (w1, b1, w2, b2, wr1, br1, wr2, br2)

    # Main check: B=256 -> 2 grid steps of TB=128 (exercises the parallel grid).
    B = 256
    x = jax.random.normal(k_x, (B, IN_FEATURES), jnp.float32)
    action = jax.block_until_ready(srpolicy_forward(x, params))
    ref = jax.block_until_ready(jax.vmap(lambda xb: srpolicy_reference(xb, params))(x))
    np.testing.assert_allclose(np.asarray(action), np.asarray(ref), rtol=1e-3, atol=1e-4)
    assert action.shape == (B, O, A)

    # Padding path check: small / ragged batch.
    x_small = jax.random.normal(jax.random.PRNGKey(1), (5, IN_FEATURES), jnp.float32)
    action_small = jax.block_until_ready(srpolicy_forward(x_small, params))
    ref_small = jax.block_until_ready(
        jax.vmap(lambda xb: srpolicy_reference(xb, params))(x_small))
    np.testing.assert_allclose(np.asarray(action_small), np.asarray(ref_small),
                               rtol=1e-3, atol=1e-4)
    assert action_small.shape == (5, O, A)

    print("KERNEL_OK")
</pallas_src>

<mosaic_0001>
module attributes {stable_mosaic.version = 11 : i64} {
  func.func @srpolicy_kernel(%arg0: i32, %arg1: memref<128x16xbf16, #tpu.memory_space<vmem>>, %arg2: memref<16x32xbf16, #tpu.memory_space<vmem>>, %arg3: memref<1x32xf32, #tpu.memory_space<vmem>>, %arg4: memref<32x1024xbf16, #tpu.memory_space<vmem>>, %arg5: memref<1x1024xf32, #tpu.memory_space<vmem>>, %arg6: memref<1024x32xbf16, #tpu.memory_space<vmem>>, %arg7: memref<1x32xf32, #tpu.memory_space<vmem>>, %arg8: memref<32x512xbf16, #tpu.memory_space<vmem>>, %arg9: memref<1x512xf32, #tpu.memory_space<vmem>>, %arg10: memref<128x512xf32, #tpu.memory_space<vmem>>, %arg11: memref<128x1024xbf16, #tpu.memory_space<vmem>>) attributes {dimension_semantics = [#tpu.dimension_semantics<parallel>], iteration_bounds = array<i64: 2>, scalar_prefetch = 0 : i64, scratch_operands = 1 : i64, tpu.core_type = #tpu.core_type<tc>, window_params = [{transform_indices = @transform_0, window_bounds = array<i64: 128, 16>}, {pipeline_mode = #tpu.pipeline_mode<synchronous>, transform_indices = @transform_1, window_bounds = array<i64: 16, 32>}, {pipeline_mode = #tpu.pipeline_mode<synchronous>, transform_indices = @transform_2, window_bounds = array<i64: 1, 32>}, {pipeline_mode = #tpu.pipeline_mode<synchronous>, transform_indices = @transform_3, window_bounds = array<i64: 32, 1024>}, {pipeline_mode = #tpu.pipeline_mode<synchronous>, transform_indices = @transform_4, window_bounds = array<i64: 1, 1024>}, {pipeline_mode = #tpu.pipeline_mode<synchronous>, transform_indices = @transform_5, window_bounds = array<i64: 1024, 32>}, {pipeline_mode = #tpu.pipeline_mode<synchronous>, transform_indices = @transform_6, window_bounds = array<i64: 1, 32>}, {pipeline_mode = #tpu.pipeline_mode<synchronous>, transform_indices = @transform_7, window_bounds = array<i64: 32, 512>}, {pipeline_mode = #tpu.pipeline_mode<synchronous>, transform_indices = @transform_8, window_bounds = array<i64: 1, 512>}, {transform_indices = @transform_9, window_bounds = array<i64: 128, 512>}]} {
    %c0 = arith.constant 0 : index
    %c0_0 = arith.constant 0 : index
    %0 = vector.load %arg1[%c0, %c0_0] : memref<128x16xbf16, #tpu.memory_space<vmem>>, vector<128x16xbf16>
    %c0_1 = arith.constant 0 : index
    %c0_2 = arith.constant 0 : index
    %1 = vector.load %arg2[%c0_1, %c0_2] : memref<16x32xbf16, #tpu.memory_space<vmem>>, vector<16x32xbf16>
    %cst = arith.constant dense<0.000000e+00> : vector<128x32xf32>
    %2 = tpu.matmul %0, %1, %cst {dimension_numbers = #tpu.dot_dimension_numbers<[1], [0], [0], [1], [0, 0, 1, 1], [], []>} : vector<128x16xbf16>, vector<16x32xbf16>, vector<128x32xf32> -> vector<128x32xf32>
    %c0_3 = arith.constant 0 : index
    %c0_4 = arith.constant 0 : index
    %3 = vector.load %arg3[%c0_3, %c0_4] : memref<1x32xf32, #tpu.memory_space<vmem>>, vector<1x32xf32>
    %4 = vector.broadcast %3 : vector<1x32xf32> to vector<128x32xf32>
    %5 = arith.addf %2, %4 : vector<128x32xf32>
    %cst_5 = arith.constant 0.000000e+00 : f32
    %6 = vector.broadcast %cst_5 : f32 to vector<128x32xf32>
    %7 = arith.maximumf %5, %6 : vector<128x32xf32>
    %8 = arith.truncf %7 : vector<128x32xf32> to vector<128x32xbf16>
    %c0_6 = arith.constant 0 : index
    %c0_7 = arith.constant 0 : index
    %9 = vector.load %arg4[%c0_6, %c0_7] : memref<32x1024xbf16, #tpu.memory_space<vmem>>, vector<32x1024xbf16>
    %cst_8 = arith.constant dense<0.000000e+00> : vector<128x1024xf32>
    %10 = tpu.matmul %8, %9, %cst_8 {dimension_numbers = #tpu.dot_dimension_numbers<[1], [0], [0], [1], [0, 0, 1, 1], [], []>} : vector<128x32xbf16>, vector<32x1024xbf16>, vector<128x1024xf32> -> vector<128x1024xf32>
    %c0_9 = arith.constant 0 : index
    %c0_10 = arith.constant 0 : index
    %11 = vector.load %arg5[%c0_9, %c0_10] : memref<1x1024xf32, #tpu.memory_space<vmem>>, vector<1x1024xf32>
    %12 = vector.broadcast %11 : vector<1x1024xf32> to vector<128x1024xf32>
    %13 = arith.addf %10, %12 : vector<128x1024xf32>
    %14 = tpu.iota {dimensions = array<i32: 1>} : vector<128x128xi32>
    %15 = vector.extract_strided_slice %13 {offsets = [0, 0], sizes = [128, 128], strides = [1, 1]} : vector<128x1024xf32> to vector<128x128xf32>
    %cst_11 = arith.constant dense<0xFF800000> : vector<128xf32>
    %16 = vector.multi_reduction <maximumf>, %15, %cst_11 [1] : vector<128x128xf32> to vector<128xf32>
    %17 = vector.shape_cast %16 : vector<128xf32> to vector<128x1xf32>
    %18 = vector.broadcast %17 : vector<128x1xf32> to vector<128x128xf32>
    %19 = arith.cmpf oeq, %15, %18 : vector<128x128xf32>
    %c128_i32 = arith.constant 128 : i32
    %20 = vector.broadcast %c128_i32 : i32 to vector<128x128xi32>
    %21 = arith.select %19, %14, %20 : vector<128x128xi1>, vector<128x128xi32>
    %cst_12 = arith.constant dense<2147483647> : vector<128xi32>
    %22 = vector.multi_reduction <minsi>, %21, %cst_12 [1] : vector<128x128xi32> to vector<128xi32>
    %23 = vector.shape_cast %22 : vector<128xi32> to vector<128x1xi32>
    %24 = vector.broadcast %23 : vector<128x1xi32> to vector<128x128xi32>
    %25 = arith.cmpi eq, %14, %24 : vector<128x128xi32>
    %26 = arith.extui %25 : vector<128x128xi1> to vector<128x128xi32>
    %27 = arith.sitofp %26 : vector<128x128xi32> to vector<128x128xf32>
    %28 = arith.truncf %27 : vector<128x128xf32> to vector<128x128xbf16>
    %c0_13 = arith.constant 0 : index
    %c0_14 = arith.constant 0 : index
    %29 = vector.load %arg11[%c0_13, %c0_14] : memref<128x1024xbf16, #tpu.memory_space<vmem>>, vector<128x128xbf16>
    tpu.vector_store %arg11[%c0_13, %c0_14], %28 {strides = array<i32>} : memref<128x1024xbf16, #tpu.memory_space<vmem>>, vector<128x128xbf16>,
    %30 = vector.extract_strided_slice %13 {offsets = [0, 128], sizes = [128, 128], strides = [1, 1]} : vector<128x1024xf32> to vector<128x128xf32>
    %cst_15 = arith.constant dense<0xFF800000> : vector<128xf32>
    %31 = vector.multi_reduction <maximumf>, %30, %cst_15 [1] : vector<128x128xf32> to vector<128xf32>
    %32 = vector.shape_cast %31 : vector<128xf32> to vector<128x1xf32>
    %33 = vector.broadcast %32 : vector<128x1xf32> to vector<128x128xf32>
    %34 = arith.cmpf oeq, %30, %33 : vector<128x128xf32>
    %c128_i32_16 = arith.constant 128 : i32
    %35 = vector.broadcast %c128_i32_16 : i32 to vector<128x128xi32>
    %36 = arith.select %34, %14, %35 : vector<128x128xi1>, vector<128x128xi32>
    %cst_17 = arith.constant dense<2147483647> : vector<128xi32>
    %37 = vector.multi_reduction <minsi>, %36, %cst_17 [1] : vector<128x128xi32> to vector<128xi32>
    %38 = vector.shape_cast %37 : vector<128xi32> to vector<128x1xi32>
    %39 = vector.broadcast %38 : vector<128x1xi32> to vector<128x128xi32>
    %40 = arith.cmpi eq, %14, %39 : vector<128x128xi32>
    %41 = arith.extui %40 : vector<128x128xi1> to vector<128x128xi32>
    %42 = arith.sitofp %41 : vector<128x128xi32> to vector<128x128xf32>
    %43 = arith.truncf %42 : vector<128x128xf32> to vector<128x128xbf16>
    %c0_18 = arith.constant 0 : index
    %c128 = arith.constant 128 : index
    %44 = vector.load %arg11[%c0_18, %c128] : memref<128x1024xbf16, #tpu.memory_space<vmem>>, vector<128x128xbf16>
    tpu.vector_store %arg11[%c0_18, %c128], %43 {strides = array<i32>} : memref<128x1024xbf16, #tpu.memory_space<vmem>>, vector<128x128xbf16>,
    %45 = vector.extract_strided_slice %13 {offsets = [0, 256], sizes = [128, 128], strides = [1, 1]} : vector<128x1024xf32> to vector<128x128xf32>
    %cst_19 = arith.constant dense<0xFF800000> : vector<128xf32>
    %46 = vector.multi_reduction <maximumf>, %45, %cst_19 [1] : vector<128x128xf32> to vector<128xf32>
    %47 = vector.shape_cast %46 : vector<128xf32> to vector<128x1xf32>
    %48 = vector.broadcast %47 : vector<128x1xf32> to vector<128x128xf32>
    %49 = arith.cmpf oeq, %45, %48 : vector<128x128xf32>
    %c128_i32_20 = arith.constant 128 : i32
    %50 = vector.broadcast %c128_i32_20 : i32 to vector<128x128xi32>
    %51 = arith.select %49, %14, %50 : vector<128x128xi1>, vector<128x128xi32>
    %cst_21 = arith.constant dense<2147483647> : vector<128xi32>
    %52 = vector.multi_reduction <minsi>, %51, %cst_21 [1] : vector<128x128xi32> to vector<128xi32>
    %53 = vector.shape_cast %52 : vector<128xi32> to vector<128x1xi32>
    %54 = vector.broadcast %53 : vector<128x1xi32> to vector<128x128xi32>
    %55 = arith.cmpi eq, %14, %54 : vector<128x128xi32>
    %56 = arith.extui %55 : vector<128x128xi1> to vector<128x128xi32>
    %57 = arith.sitofp %56 : vector<128x128xi32> to vector<128x128xf32>
    %58 = arith.truncf %57 : vector<128x128xf32> to vector<128x128xbf16>
    %c0_22 = arith.constant 0 : index
    %c256 = arith.constant 256 : index
    %59 = vector.load %arg11[%c0_22, %c256] : memref<128x1024xbf16, #tpu.memory_space<vmem>>, vector<128x128xbf16>
    tpu.vector_store %arg11[%c0_22, %c256], %58 {strides = array<i32>} : memref<128x1024xbf16, #tpu.memory_space<vmem>>, vector<128x128xbf16>,
    %60 = vector.extract_strided_slice %13 {offsets = [0, 384], sizes = [128, 128], strides = [1, 1]} : vector<128x1024xf32> to vector<128x128xf32>
    %cst_23 = arith.constant dense<0xFF800000> : vector<128xf32>
    %61 = vector.multi_reduction <maximumf>, %60, %cst_23 [1] : vector<128x128xf32> to vector<128xf32>
    %62 = vector.shape_cast %61 : vector<128xf32> to vector<128x1xf32>
    %63 = vector.broadcast %62 : vector<128x1xf32> to vector<128x128xf32>
    %64 = arith.cmpf oeq, %60, %63 : vector<128x128xf32>
    %c128_i32_24 = arith.constant 128 : i32
    %65 = vector.broadcast %c128_i32_24 : i32 to vector<128x128xi32>
    %66 = arith.select %64, %14, %65 : vector<128x128xi1>, vector<128x128xi32>
    %cst_25 = arith.constant dense<2147483647> : vector<128xi32>
    %67 = vector.multi_reduction <minsi>, %66, %cst_25 [1] : vector<128x128xi32> to vector<128xi32>
    %68 = vector.shape_cast %67 : vector<128xi32> to vector<128x1xi32>
    %69 = vector.broadcast %68 : vector<128x1xi32> to vector<128x128xi32>
    %70 = arith.cmpi eq, %14, %69 : vector<128x128xi32>
    %71 = arith.extui %70 : vector<128x128xi1> to vector<128x128xi32>
    %72 = arith.sitofp %71 : vector<128x128xi32> to vector<128x128xf32>
    %73 = arith.truncf %72 : vector<128x128xf32> to vector<128x128xbf16>
    %c0_26 = arith.constant 0 : index
    %c384 = arith.constant 384 : index
    %74 = vector.load %arg11[%c0_26, %c384] : memref<128x1024xbf16, #tpu.memory_space<vmem>>, vector<128x128xbf16>
    tpu.vector_store %arg11[%c0_26, %c384], %73 {strides = array<i32>} : memref<128x1024xbf16, #tpu.memory_space<vmem>>, vector<128x128xbf16>,
    %75 = vector.extract_strided_slice %13 {offsets = [0, 512], sizes = [128, 128], strides = [1, 1]} : vector<128x1024xf32> to vector<128x128xf32>
    %cst_27 = arith.constant dense<0xFF800000> : vector<128xf32>
    %76 = vector.multi_reduction <maximumf>, %75, %cst_27 [1] : vector<128x128xf32> to vector<128xf32>
    %77 = vector.shape_cast %76 : vector<128xf32> to vector<128x1xf32>
    %78 = vector.broadcast %77 : vector<128x1xf32> to vector<128x128xf32>
    %79 = arith.cmpf oeq, %75, %78 : vector<128x128xf32>
    %c128_i32_28 = arith.constant 128 : i32
    %80 = vector.broadcast %c128_i32_28 : i32 to vector<128x128xi32>
    %81 = arith.select %79, %14, %80 : vector<128x128xi1>, vector<128x128xi32>
    %cst_29 = arith.constant dense<2147483647> : vector<128xi32>
    %82 = vector.multi_reduction <minsi>, %81, %cst_29 [1] : vector<128x128xi32> to vector<128xi32>
    %83 = vector.shape_cast %82 : vector<128xi32> to vector<128x1xi32>
    %84 = vector.broadcast %83 : vector<128x1xi32> to vector<128x128xi32>
    %85 = arith.cmpi eq, %14, %84 : vector<128x128xi32>
    %86 = arith.extui %85 : vector<128x128xi1> to vector<128x128xi32>
    %87 = arith.sitofp %86 : vector<128x128xi32> to vector<128x128xf32>
    %88 = arith.truncf %87 : vector<128x128xf32> to vector<128x128xbf16>
    %c0_30 = arith.constant 0 : index
    %c512 = arith.constant 512 : index
    %89 = vector.load %arg11[%c0_30, %c512] : memref<128x1024xbf16, #tpu.memory_space<vmem>>, vector<128x128xbf16>
    tpu.vector_store %arg11[%c0_30, %c512], %88 {strides = array<i32>} : memref<128x1024xbf16, #tpu.memory_space<vmem>>, vector<128x128xbf16>,
    %90 = vector.extract_strided_slice %13 {offsets = [0, 640], sizes = [128, 128], strides = [1, 1]} : vector<128x1024xf32> to vector<128x128xf32>
    %cst_31 = arith.constant dense<0xFF800000> : vector<128xf32>
    %91 = vector.multi_reduction <maximumf>, %90, %cst_31 [1] : vector<128x128xf32> to vector<128xf32>
    %92 = vector.shape_cast %91 : vector<128xf32> to vector<128x1xf32>
    %93 = vector.broadcast %92 : vector<128x1xf32> to vector<128x128xf32>
    %94 = arith.cmpf oeq, %90, %93 : vector<128x128xf32>
    %c128_i32_32 = arith.constant 128 : i32
    %95 = vector.broadcast %c128_i32_32 : i32 to vector<128x128xi32>
    %96 = arith.select %94, %14, %95 : vector<128x128xi1>, vector<128x128xi32>
    %cst_33 = arith.constant dense<2147483647> : vector<128xi32>
    %97 = vector.multi_reduction <minsi>, %96, %cst_33 [1] : vector<128x128xi32> to vector<128xi32>
    %98 = vector.shape_cast %97 : vector<128xi32> to vector<128x1xi32>
    %99 = vector.broadcast %98 : vector<128x1xi32> to vector<128x128xi32>
    %100 = arith.cmpi eq, %14, %99 : vector<128x128xi32>
    %101 = arith.extui %100 : vector<128x128xi1> to vector<128x128xi32>
    %102 = arith.sitofp %101 : vector<128x128xi32> to vector<128x128xf32>
    %103 = arith.truncf %102 : vector<128x128xf32> to vector<128x128xbf16>
    %c0_34 = arith.constant 0 : index
    %c640 = arith.constant 640 : index
    %104 = vector.load %arg11[%c0_34, %c640] : memref<128x1024xbf16, #tpu.memory_space<vmem>>, vector<128x128xbf16>
    tpu.vector_store %arg11[%c0_34, %c640], %103 {strides = array<i32>} : memref<128x1024xbf16, #tpu.memory_space<vmem>>, vector<128x128xbf16>,
    %105 = vector.extract_strided_slice %13 {offsets = [0, 768], sizes = [128, 128], strides = [1, 1]} : vector<128x1024xf32> to vector<128x128xf32>
    %cst_35 = arith.constant dense<0xFF800000> : vector<128xf32>
    %106 = vector.multi_reduction <maximumf>, %105, %cst_35 [1] : vector<128x128xf32> to vector<128xf32>
    %107 = vector.shape_cast %106 : vector<128xf32> to vector<128x1xf32>
    %108 = vector.broadcast %107 : vector<128x1xf32> to vector<128x128xf32>
    %109 = arith.cmpf oeq, %105, %108 : vector<128x128xf32>
    %c128_i32_36 = arith.constant 128 : i32
    %110 = vector.broadcast %c128_i32_36 : i32 to vector<128x128xi32>
    %111 = arith.select %109, %14, %110 : vector<128x128xi1>, vector<128x128xi32>
    %cst_37 = arith.constant dense<2147483647> : vector<128xi32>
    %112 = vector.multi_reduction <minsi>, %111, %cst_37 [1] : vector<128x128xi32> to vector<128xi32>
    %113 = vector.shape_cast %112 : vector<128xi32> to vector<128x1xi32>
    %114 = vector.broadcast %113 : vector<128x1xi32> to vector<128x128xi32>
    %115 = arith.cmpi eq, %14, %114 : vector<128x128xi32>
    %116 = arith.extui %115 : vector<128x128xi1> to vector<128x128xi32>
    %117 = arith.sitofp %116 : vector<128x128xi32> to vector<128x128xf32>
    %118 = arith.truncf %117 : vector<128x128xf32> to vector<128x128xbf16>
    %c0_38 = arith.constant 0 : index
    %c768 = arith.constant 768 : index
    %119 = vector.load %arg11[%c0_38, %c768] : memref<128x1024xbf16, #tpu.memory_space<vmem>>, vector<128x128xbf16>
    tpu.vector_store %arg11[%c0_38, %c768], %118 {strides = array<i32>} : memref<128x1024xbf16, #tpu.memory_space<vmem>>, vector<128x128xbf16>,
    %120 = vector.extract_strided_slice %13 {offsets = [0, 896], sizes = [128, 128], strides = [1, 1]} : vector<128x1024xf32> to vector<128x128xf32>
    %cst_39 = arith.constant dense<0xFF800000> : vector<128xf32>
    %121 = vector.multi_reduction <maximumf>, %120, %cst_39 [1] : vector<128x128xf32> to vector<128xf32>
    %122 = vector.shape_cast %121 : vector<128xf32> to vector<128x1xf32>
    %123 = vector.broadcast %122 : vector<128x1xf32> to vector<128x128xf32>
    %124 = arith.cmpf oeq, %120, %123 : vector<128x128xf32>
    %c128_i32_40 = arith.constant 128 : i32
    %125 = vector.broadcast %c128_i32_40 : i32 to vector<128x128xi32>
    %126 = arith.select %124, %14, %125 : vector<128x128xi1>, vector<128x128xi32>
    %cst_41 = arith.constant dense<2147483647> : vector<128xi32>
    %127 = vector.multi_reduction <minsi>, %126, %cst_41 [1] : vector<128x128xi32> to vector<128xi32>
    %128 = vector.shape_cast %127 : vector<128xi32> to vector<128x1xi32>
    %129 = vector.broadcast %128 : vector<128x1xi32> to vector<128x128xi32>
    %130 = arith.cmpi eq, %14, %129 : vector<128x128xi32>
    %131 = arith.extui %130 : vector<128x128xi1> to vector<128x128xi32>
    %132 = arith.sitofp %131 : vector<128x128xi32> to vector<128x128xf32>
    %133 = arith.truncf %132 : vector<128x128xf32> to vector<128x128xbf16>
    %c0_42 = arith.constant 0 : index
    %c896 = arith.constant 896 : index
    %134 = vector.load %arg11[%c0_42, %c896] : memref<128x1024xbf16, #tpu.memory_space<vmem>>, vector<128x128xbf16>
    tpu.vector_store %arg11[%c0_42, %c896], %133 {strides = array<i32>} : memref<128x1024xbf16, #tpu.memory_space<vmem>>, vector<128x128xbf16>,
    %c0_43 = arith.constant 0 : index
    %c0_44 = arith.constant 0 : index
    %135 = vector.load %arg11[%c0_43, %c0_44] : memref<128x1024xbf16, #tpu.memory_space<vmem>>, vector<128x1024xbf16>
    %c0_45 = arith.constant 0 : index
    %c0_46 = arith.constant 0 : index
    %136 = vector.load %arg6[%c0_45, %c0_46] : memref<1024x32xbf16, #tpu.memory_space<vmem>>, vector<1024x32xbf16>
    %cst_47 = arith.constant dense<0.000000e+00> : vector<128x32xf32>
    %137 = tpu.matmul %135, %136, %cst_47 {dimension_numbers = #tpu.dot_dimension_numbers<[1], [0], [0], [1], [0, 0, 1, 1], [], []>} : vector<128x1024xbf16>, vector<1024x32xbf16>, vector<128x32xf32> -> vector<128x32xf32>
    %c0_48 = arith.constant 0 : index
    %c0_49 = arith.constant 0 : index
    %138 = vector.load %arg7[%c0_48, %c0_49] : memref<1x32xf32, #tpu.memory_space<vmem>>, vector<1x32xf32>
    %139 = vector.broadcast %138 : vector<1x32xf32> to vector<128x32xf32>
    %140 = arith.addf %137, %139 : vector<128x32xf32>
    %cst_50 = arith.constant 0.000000e+00 : f32
    %141 = vector.broadcast %cst_50 : f32 to vector<128x32xf32>
    %142 = arith.maximumf %140, %141 : vector<128x32xf32>
    %143 = arith.truncf %142 : vector<128x32xf32> to vector<128x32xbf16>
    %c0_51 = arith.constant 0 : index
    %c0_52 = arith.constant 0 : index
    %144 = vector.load %arg8[%c0_51, %c0_52] : memref<32x512xbf16, #tpu.memory_space<vmem>>, vector<32x512xbf16>
    %cst_53 = arith.constant dense<0.000000e+00> : vector<128x512xf32>
    %145 = tpu.matmul %143, %144, %cst_53 {dimension_numbers = #tpu.dot_dimension_numbers<[1], [0], [0], [1], [0, 0, 1, 1], [], []>} : vector<128x32xbf16>, vector<32x512xbf16>, vector<128x512xf32> -> vector<128x512xf32>
    %c0_54 = arith.constant 0 : index
    %c0_55 = arith.constant 0 : index
    %146 = vector.load %arg9[%c0_54, %c0_55] : memref<1x512xf32, #tpu.memory_space<vmem>>, vector<1x512xf32>
    %147 = vector.broadcast %146 : vector<1x512xf32> to vector<128x512xf32>
    %148 = arith.addf %145, %147 : vector<128x512xf32>
    %149 = vector.extract_strided_slice %148 {offsets = [0, 0], sizes = [128, 128], strides = [1, 1]} : vector<128x512xf32> to vector<128x128xf32>
    %cst_56 = arith.constant dense<0xFF800000> : vector<128xf32>
    %150 = vector.multi_reduction <maximumf>, %149, %cst_56 [1] : vector<128x128xf32> to vector<128xf32>
    %151 = vector.shape_cast %150 : vector<128xf32> to vector<128x1xf32>
    %152 = vector.broadcast %151 : vector<128x1xf32> to vector<128x128xf32>
    %153 = arith.subf %149, %152 : vector<128x128xf32>
    %154 = math.exp %153 : vector<128x128xf32>
    %cst_57 = arith.constant dense<0.000000e+00> : vector<128xf32>
    %155 = vector.multi_reduction <add>, %154, %cst_57 [1] : vector<128x128xf32> to vector<128xf32>
    %156 = vector.shape_cast %155 : vector<128xf32> to vector<128x1xf32>
    %157 = tpu.reciprocal %156 : vector<128x1xf32> -> vector<128x1xf32>
    %158 = vector.broadcast %157 : vector<128x1xf32> to vector<128x128xf32>
    %159 = arith.mulf %154, %158 : vector<128x128xf32>
    %c0_58 = arith.constant 0 : index
    %c0_59 = arith.constant 0 : index
    %160 = vector.load %arg10[%c0_58, %c0_59] : memref<128x512xf32, #tpu.memory_space<vmem>>, vector<128x128xf32>
    tpu.vector_store %arg10[%c0_58, %c0_59], %159 {strides = array<i32>} : memref<128x512xf32, #tpu.memory_space<vmem>>, vector<128x128xf32>,
    %161 = vector.extract_strided_slice %148 {offsets = [0, 128], sizes = [128, 128], strides = [1, 1]} : vector<128x512xf32> to vector<128x128xf32>
    %cst_60 = arith.constant dense<0xFF800000> : vector<128xf32>
    %162 = vector.multi_reduction <maximumf>, %161, %cst_60 [1] : vector<128x128xf32> to vector<128xf32>
    %163 = vector.shape_cast %162 : vector<128xf32> to vector<128x1xf32>
    %164 = vector.broadcast %163 : vector<128x1xf32> to vector<128x128xf32>
    %165 = arith.subf %161, %164 : vector<128x128xf32>
    %166 = math.exp %165 : vector<128x128xf32>
    %cst_61 = arith.constant dense<0.000000e+00> : vector<128xf32>
    %167 = vector.multi_reduction <add>, %166, %cst_61 [1] : vector<128x128xf32> to vector<128xf32>
    %168 = vector.shape_cast %167 : vector<128xf32> to vector<128x1xf32>
    %169 = tpu.reciprocal %168 : vector<128x1xf32> -> vector<128x1xf32>
    %170 = vector.broadcast %169 : vector<128x1xf32> to vector<128x128xf32>
    %171 = arith.mulf %166, %170 : vector<128x128xf32>
    %c0_62 = arith.constant 0 : index
    %c128_63 = arith.constant 128 : index
    %172 = vector.load %arg10[%c0_62, %c128_63] : memref<128x512xf32, #tpu.memory_space<vmem>>, vector<128x128xf32>
    tpu.vector_store %arg10[%c0_62, %c128_63], %171 {strides = array<i32>} : memref<128x512xf32, #tpu.memory_space<vmem>>, vector<128x128xf32>,
    %173 = vector.extract_strided_slice %148 {offsets = [0, 256], sizes = [128, 128], strides = [1, 1]} : vector<128x512xf32> to vector<128x128xf32>
    %cst_64 = arith.constant dense<0xFF800000> : vector<128xf32>
    %174 = vector.multi_reduction <maximumf>, %173, %cst_64 [1] : vector<128x128xf32> to vector<128xf32>
    %175 = vector.shape_cast %174 : vector<128xf32> to vector<128x1xf32>
    %176 = vector.broadcast %175 : vector<128x1xf32> to vector<128x128xf32>
    %177 = arith.subf %173, %176 : vector<128x128xf32>
    %178 = math.exp %177 : vector<128x128xf32>
    %cst_65 = arith.constant dense<0.000000e+00> : vector<128xf32>
    %179 = vector.multi_reduction <add>, %178, %cst_65 [1] : vector<128x128xf32> to vector<128xf32>
    %180 = vector.shape_cast %179 : vector<128xf32> to vector<128x1xf32>
    %181 = tpu.reciprocal %180 : vector<128x1xf32> -> vector<128x1xf32>
    %182 = vector.broadcast %181 : vector<128x1xf32> to vector<128x128xf32>
    %183 = arith.mulf %178, %182 : vector<128x128xf32>
    %c0_66 = arith.constant 0 : index
    %c256_67 = arith.constant 256 : index
    %184 = vector.load %arg10[%c0_66, %c256_67] : memref<128x512xf32, #tpu.memory_space<vmem>>, vector<128x128xf32>
    tpu.vector_store %arg10[%c0_66, %c256_67], %183 {strides = array<i32>} : memref<128x512xf32, #tpu.memory_space<vmem>>, vector<128x128xf32>,
    %185 = vector.extract_strided_slice %148 {offsets = [0, 384], sizes = [128, 128], strides = [1, 1]} : vector<128x512xf32> to vector<128x128xf32>
    %cst_68 = arith.constant dense<0xFF800000> : vector<128xf32>
    %186 = vector.multi_reduction <maximumf>, %185, %cst_68 [1] : vector<128x128xf32> to vector<128xf32>
    %187 = vector.shape_cast %186 : vector<128xf32> to vector<128x1xf32>
    %188 = vector.broadcast %187 : vector<128x1xf32> to vector<128x128xf32>
    %189 = arith.subf %185, %188 : vector<128x128xf32>
    %190 = math.exp %189 : vector<128x128xf32>
    %cst_69 = arith.constant dense<0.000000e+00> : vector<128xf32>
    %191 = vector.multi_reduction <add>, %190, %cst_69 [1] : vector<128x128xf32> to vector<128xf32>
    %192 = vector.shape_cast %191 : vector<128xf32> to vector<128x1xf32>
    %193 = tpu.reciprocal %192 : vector<128x1xf32> -> vector<128x1xf32>
    %194 = vector.broadcast %193 : vector<128x1xf32> to vector<128x128xf32>
    %195 = arith.mulf %190, %194 : vector<128x128xf32>
    %c0_70 = arith.constant 0 : index
    %c384_71 = arith.constant 384 : index
    %196 = vector.load %arg10[%c0_70, %c384_71] : memref<128x512xf32, #tpu.memory_space<vmem>>, vector<128x128xf32>
    tpu.vector_store %arg10[%c0_70, %c384_71], %195 {strides = array<i32>} : memref<128x512xf32, #tpu.memory_space<vmem>>, vector<128x128xf32>,
    return
  }
  func.func @transform_0(%arg0: i32) -> (i32, i32) {
    %c0_i32 = arith.constant 0 : i32
    %c0_i32_0 = arith.constant 0 : i32
    return %arg0, %c0_i32 : i32, i32
  }
  func.func @transform_1(%arg0: i32) -> (i32, i32) {
    %c0_i32 = arith.constant 0 : i32
    %c0_i32_0 = arith.constant 0 : i32
    %c0_i32_1 = arith.constant 0 : i32
    return %c0_i32, %c0_i32_0 : i32, i32
  }
  func.func @transform_2(%arg0: i32) -> (i32, i32) {
    %c0_i32 = arith.constant 0 : i32
    %c0_i32_0 = arith.constant 0 : i32
    %c0_i32_1 = arith.constant 0 : i32
    return %c0_i32, %c0_i32_0 : i32, i32
  }
  func.func @transform_3(%arg0: i32) -> (i32, i32) {
    %c0_i32 = arith.constant 0 : i32
    %c0_i32_0 = arith.constant 0 : i32
    %c0_i32_1 = arith.constant 0 : i32
    return %c0_i32, %c0_i32_0 : i32, i32
  }
  func.func @transform_4(%arg0: i32) -> (i32, i32) {
    %c0_i32 = arith.constant 0 : i32
    %c0_i32_0 = arith.constant 0 : i32
    %c0_i32_1 = arith.constant 0 : i32
    return %c0_i32, %c0_i32_0 : i32, i32
  }
  func.func @transform_5(%arg0: i32) -> (i32, i32) {
    %c0_i32 = arith.constant 0 : i32
    %c0_i32_0 = arith.constant 0 : i32
    %c0_i32_1 = arith.constant 0 : i32
    return %c0_i32, %c0_i32_0 : i32, i32
  }
  func.func @transform_6(%arg0: i32) -> (i32, i32) {
    %c0_i32 = arith.constant 0 : i32
    %c0_i32_0 = arith.constant 0 : i32
    %c0_i32_1 = arith.constant 0 : i32
    return %c0_i32, %c0_i32_0 : i32, i32
  }
  func.func @transform_7(%arg0: i32) -> (i32, i32) {
    %c0_i32 = arith.constant 0 : i32
    %c0_i32_0 = arith.constant 0 : i32
    %c0_i32_1 = arith.constant 0 : i32
    return %c0_i32, %c0_i32_0 : i32, i32
  }
  func.func @transform_8(%arg0: i32) -> (i32, i32) {
    %c0_i32 = arith.constant 0 : i32
    %c0_i32_0 = arith.constant 0 : i32
    %c0_i32_1 = arith.constant 0 : i32
    return %c0_i32, %c0_i32_0 : i32, i32
  }
  func.func @transform_9(%arg0: i32) -> (i32, i32) {
    %c0_i32 = arith.constant 0 : i32
    %c0_i32_0 = arith.constant 0 : i32
    return %arg0, %c0_i32 : i32, i32
  }
}

</mosaic_0001>

<llo_original>
// kernel: tpu_custom_call.1
$region0: #{tpu_custom_call.1}
  #allocation0 [shape = 'u32[]', space=smem, size = 0x4, offset = 0x4, fixed_abs, tag = 'smem constant byte address 0x4 - core index']
  #allocation1 [shape = 'u32[144,128]{1,0:T(1,128)}', space=vmem, size = 0x12000, scoped, tag = 'internal scratch']
  #allocation2 [shape = 'bf16[128,1024]{1,0:T(16,128)(2,1)}', space=vmem, size = 0x40000, scoped, tag = 'scratch operand']
  %s0 = inlined_call_operand.vmem [shape: bf16[256,16], index: 0, kind: input, shape index: {}]
  %s1 = inlined_call_operand.vmem [shape: bf16[16,32], index: 1, kind: input, shape index: {}]
  %s2 = inlined_call_operand.vmem [shape: f32[1,32], index: 2, kind: input, shape index: {}]
  %s3 = inlined_call_operand.vmem [shape: bf16[32,1024], index: 3, kind: input, shape index: {}]
  %s4 = inlined_call_operand.vmem [shape: f32[1,1024], index: 4, kind: input, shape index: {}]
  %s5 = inlined_call_operand.vmem [shape: bf16[1024,32], index: 5, kind: input, shape index: {}]
  %s6 = inlined_call_operand.vmem [shape: f32[1,32], index: 6, kind: input, shape index: {}]
  %s7 = inlined_call_operand.vmem [shape: bf16[32,512], index: 7, kind: input, shape index: {}]
  %s8 = inlined_call_operand.vmem [shape: f32[1,512], index: 8, kind: input, shape index: {}]
  %s9 = inlined_call_operand.hbm [shape: f32[256,512], index: 9, kind: output, shape index: {}]
  %s10 = sld [smem:[#allocation0]]
  $region69: #{tpu_custom_call.1} parent=0
    _
  %s12 = ssub.s32 1, %s10
  %s13 = scalar_select 0, %s12, %s10
  $region1: #{tpu_custom_call.1} parent=0
    #allocation3 [shape = 'u8[524288]{0}', space=vmem, size = 0x80000, scoped, tag = 'output window, operand 0']
    #allocation4 [shape = 's32[2]{0}', space=sflag, size = 0x8, scoped, tag = 'scoped memory for tpu_custom_call.1']
    %14 = vsyncpa [#allocation4], 0
    %s15 = scalar_lea.sflag [#allocation4], 1
    %16 = vsyncpa %s15, 0
    loop: start=0, step=1, limit=4
    $region2: #{tpu_custom_call.1} parent=1 // loop_pre_header
      _
    $region3: #{tpu_custom_call.1} parent=1 // loop_header
      %s18 = sphi 0, %s22
      %p19 = scmp.ge.s32.totalorder %s18, 4
      %s28 = sphi 0, %s30
      %s31 = sphi 0, %s28
      %s32 = sphi 0, %s31
      %s48 = sphi 0, %s32
      %s52 = sphi 0, %s52
      %s54 = sphi 0, %s52
      %s55 = sphi 0, %s54
      %s69 = sphi 0, %s55
      %s73 = sphi 0, %s73
      %s75 = sphi 0, %s73
      %s76 = sphi 0, %s75
      %s90 = sphi 0, %s76
      %s94 = sphi 0, %s94
      %s96 = sphi 0, %s94
      %s97 = sphi 0, %s96
      %s111 = sphi 0, %s97
      %s115 = sphi 0, %s115
      %s117 = sphi 0, %s115
      %s118 = sphi 0, %s117
      %s132 = sphi 0, %s118
      %s136 = sphi 0, %s136
      %s138 = sphi 0, %s136
      %s139 = sphi 0, %s138
      %s153 = sphi 0, %s139
      %s157 = sphi 0, %s157
      %s159 = sphi 0, %s157
      %s160 = sphi 0, %s159
      %s174 = sphi 0, %s160
      %s178 = sphi 0, %s178
      %s180 = sphi 0, %s178
      %s181 = sphi 0, %s180
      %s195 = sphi 0, %s181
      %s199 = sphi 0, %s199
      %s201 = sphi 0, %s199
      %s202 = sphi 0, %s201
      %s216 = sphi 0, %s202
      %s222 = sphi 0, %s224
      %s225 = sphi 0, %s222
      %s226 = sphi 0, %s225
      %s242 = sphi 0, %s226
    $region4: #{tpu_custom_call.1} parent=1 // loop_header_branch
      %21 = sbr.rel (%p19) target = $region8
    $region5: #{tpu_custom_call.1} parent=1 // loop_body
      %s23 = ssub.s32 %s18, 1
      %s24 = ssub.s32 %s18, 2
      %s25 = sadd.s32 %s18, 1
      %s26 = ssub.s32 %s18, %s25
      %p27 = scmp.eq.s32.totalorder %s26, 0
      %s29 = sadd.s32 %s28, 1
      %s30 = scalar_select %p27, %s28, %s29
      %p33 = pneg %p27
      %p34 = scmp.eq.s32.totalorder %s18, 1
      %p35 = por %p33, %p34
      %p36 = scmp.ne.s32.totalorder %s28, %s31
      %p37 = scmp.eq.s32.totalorder %s18, 0
      %p38 = por %p36, %p37
      %p39 = scmp.ne.s32.totalorder %s28, %s31
      %p40 = scmp.eq.s32.totalorder %s23, 1
      %p41 = por %p39, %p40
      %p42 = scmp.ne.s32.totalorder %s31, %s32
      %p43 = scmp.eq.s32.totalorder %s23, 0
      %p44 = por %p42, %p43
      %p45 = scmp.ne.s32.totalorder %s31, %s32
      %p46 = scmp.eq.s32.totalorder %s24, 1
      %p47 = por %p45, %p46
      %p49 = scmp.ne.s32.totalorder %s32, %s48
      %p50 = scmp.eq.s32.totalorder %s24, 0
      %p51 = por %p49, %p50
      %s53 = sadd.s32 %s52, 1
      %p56 = scmp.eq.s32.totalorder %s18, 1
      %p57 = scmp.ne.s32.totalorder %s52, %s54
      %p58 = scmp.eq.s32.totalorder %s18, 0
      %p59 = por %p57, %p58
      %p60 = scmp.ne.s32.totalorder %s52, %s54
      %p61 = scmp.eq.s32.totalorder %s23, 1
      %p62 = por %p60, %p61
      %p63 = scmp.ne.s32.totalorder %s54, %s55
      %p64 = scmp.eq.s32.totalorder %s23, 0
      %p65 = por %p63, %p64
      %p66 = scmp.ne.s32.totalorder %s54, %s55
      %p67 = scmp.eq.s32.totalorder %s24, 1
      %p68 = por %p66, %p67
      %p70 = scmp.ne.s32.totalorder %s55, %s69
      %p71 = scmp.eq.s32.totalorder %s24, 0
      %p72 = por %p70, %p71
      %s74 = sadd.s32 %s73, 1
      %p77 = scmp.eq.s32.totalorder %s18, 1
      %p78 = scmp.ne.s32.totalorder %s73, %s75
      %p79 = scmp.eq.s32.totalorder %s18, 0
      %p80 = por %p78, %p79
      %p81 = scmp.ne.s32.totalorder %s73, %s75
      %p82 = scmp.eq.s32.totalorder %s23, 1
      %p83 = por %p81, %p82
      %p84 = scmp.ne.s32.totalorder %s75, %s76
      %p85 = scmp.eq.s32.totalorder %s23, 0
      %p86 = por %p84, %p85
      %p87 = scmp.ne.s32.totalorder %s75, %s76
      %p88 = scmp.eq.s32.totalorder %s24, 1
      %p89 = por %p87, %p88
      %p91 = scmp.ne.s32.totalorder %s76, %s90
      %p92 = scmp.eq.s32.totalorder %s24, 0
      %p93 = por %p91, %p92
      %s95 = sadd.s32 %s94, 1
      %p98 = scmp.eq.s32.totalorder %s18, 1
      %p99 = scmp.ne.s32.totalorder %s94, %s96
      %p100 = scmp.eq.s32.totalorder %s18, 0
      %p101 = por %p99, %p100
      %p102 = scmp.ne.s32.totalorder %s94, %s96
      %p103 = scmp.eq.s32.totalorder %s23, 1
      %p104 = por %p102, %p103
      %p105 = scmp.ne.s32.totalorder %s96, %s97
      %p106 = scmp.eq.s32.totalorder %s23, 0
      %p107 = por %p105, %p106
      %p108 = scmp.ne.s32.totalorder %s96, %s97
      %p109 = scmp.eq.s32.totalorder %s24, 1
      %p110 = por %p108, %p109
      %p112 = scmp.ne.s32.totalorder %s97, %s111
      %p113 = scmp.eq.s32.totalorder %s24, 0
      %p114 = por %p112, %p113
      %s116 = sadd.s32 %s115, 1
      %p119 = scmp.eq.s32.totalorder %s18, 1
      %p120 = scmp.ne.s32.totalorder %s115, %s117
      %p121 = scmp.eq.s32.totalorder %s18, 0
      %p122 = por %p120, %p121
      %p123 = scmp.ne.s32.totalorder %s115, %s117
      %p124 = scmp.eq.s32.totalorder %s23, 1
      %p125 = por %p123, %p124
      %p126 = scmp.ne.s32.totalorder %s117, %s118
      %p127 = scmp.eq.s32.totalorder %s23, 0
      %p128 = por %p126, %p127
      %p129 = scmp.ne.s32.totalorder %s117, %s118
      %p130 = scmp.eq.s32.totalorder %s24, 1
      %p131 = por %p129, %p130
      %p133 = scmp.ne.s32.totalorder %s118, %s132
      %p134 = scmp.eq.s32.totalorder %s24, 0
      %p135 = por %p133, %p134
      %s137 = sadd.s32 %s136, 1
      %p140 = scmp.eq.s32.totalorder %s18, 1
      %p141 = scmp.ne.s32.totalorder %s136, %s138
      %p142 = scmp.eq.s32.totalorder %s18, 0
      %p143 = por %p141, %p142
      %p144 = scmp.ne.s32.totalorder %s136, %s138
      %p145 = scmp.eq.s32.totalorder %s23, 1
      %p146 = por %p144, %p145
      %p147 = scmp.ne.s32.totalorder %s138, %s139
      %p148 = scmp.eq.s32.totalorder %s23, 0
      %p149 = por %p147, %p148
      %p150 = scmp.ne.s32.totalorder %s138, %s139
      %p151 = scmp.eq.s32.totalorder %s24, 1
      %p152 = por %p150, %p151
      %p154 = scmp.ne.s32.totalorder %s139, %s153
      %p155 = scmp.eq.s32.totalorder %s24, 0
      %p156 = por %p154, %p155
      %s158 = sadd.s32 %s157, 1
      %p161 = scmp.eq.s32.totalorder %s18, 1
      %p162 = scmp.ne.s32.totalorder %s157, %s159
      %p163 = scmp.eq.s32.totalorder %s18, 0
      %p164 = por %p162, %p163
      %p165 = scmp.ne.s32.totalorder %s157, %s159
      %p166 = scmp.eq.s32.totalorder %s23, 1
      %p167 = por %p165, %p166
      %p168 = scmp.ne.s32.totalorder %s159, %s160
      %p169 = scmp.eq.s32.totalorder %s23, 0
      %p170 = por %p168, %p169
      %p171 = scmp.ne.s32.totalorder %s159, %s160
      %p172 = scmp.eq.s32.totalorder %s24, 1
      %p173 = por %p171, %p172
      %p175 = scmp.ne.s32.totalorder %s160, %s174
      %p176 = scmp.eq.s32.totalorder %s24, 0
      %p177 = por %p175, %p176
      %s179 = sadd.s32 %s178, 1
      %p182 = scmp.eq.s32.totalorder %s18, 1
      %p183 = scmp.ne.s32.totalorder %s178, %s180
      %p184 = scmp.eq.s32.totalorder %s18, 0
      %p185 = por %p183, %p184
      %p186 = scmp.ne.s32.totalorder %s178, %s180
      %p187 = scmp.eq.s32.totalorder %s23, 1
      %p188 = por %p186, %p187
      %p189 = scmp.ne.s32.totalorder %s180, %s181
      %p190 = scmp.eq.s32.totalorder %s23, 0
      %p191 = por %p189, %p190
      %p192 = scmp.ne.s32.totalorder %s180, %s181
      %p193 = scmp.eq.s32.totalorder %s24, 1
      %p194 = por %p192, %p193
      %p196 = scmp.ne.s32.totalorder %s181, %s195
      %p197 = scmp.eq.s32.totalorder %s24, 0
      %p198 = por %p196, %p197
      %s200 = sadd.s32 %s199, 1
      %p203 = scmp.eq.s32.totalorder %s18, 1
      %p204 = scmp.ne.s32.totalorder %s199, %s201
      %p205 = scmp.eq.s32.totalorder %s18, 0
      %p206 = por %p204, %p205
      %p207 = scmp.ne.s32.totalorder %s199, %s201
      %p208 = scmp.eq.s32.totalorder %s23, 1
      %p209 = por %p207, %p208
      %p210 = scmp.ne.s32.totalorder %s201, %s202
      %p211 = scmp.eq.s32.totalorder %s23, 0
      %p212 = por %p210, %p211
      %p213 = scmp.ne.s32.totalorder %s201, %s202
      %p214 = scmp.eq.s32.totalorder %s24, 1
      %p215 = por %p213, %p214
      %p217 = scmp.ne.s32.totalorder %s202, %s216
      %p218 = scmp.eq.s32.totalorder %s24, 0
      %p219 = por %p217, %p218
      %s220 = ssub.s32 %s18, %s25
      %p221 = scmp.eq.s32.totalorder %s220, 0
      %s223 = sadd.s32 %s222, 1
      %s224 = scalar_select %p221, %s222, %s223
      %p227 = pneg %p221
      %p228 = scmp.eq.s32.totalorder %s18, 1
      %p229 = por %p227, %p228
      %p230 = scmp.ne.s32.totalorder %s222, %s225
      %p231 = scmp.eq.s32.totalorder %s18, 0
      %p232 = por %p230, %p231
      %p233 = scmp.ne.s32.totalorder %s222, %s225
      %p234 = scmp.eq.s32.totalorder %s23, 1
      %p235 = por %p233, %p234
      %p236 = scmp.ne.s32.totalorder %s225, %s226
      %p237 = scmp.eq.s32.totalorder %s23, 0
      %p238 = por %p236, %p237
      %p239 = scmp.ne.s32.totalorder %s225, %s226
      %p240 = scmp.eq.s32.totalorder %s24, 1
      %p241 = por %p239, %p240
      %p243 = scmp.ne.s32.totalorder %s226, %s242
      %p244 = scmp.eq.s32.totalorder %s24, 0
      %p245 = por %p243, %p244
      %p246 = scmp.le.s32.totalorder 1, %s18
      %p247 = scmp.lt.s32.totalorder %s18, 3
      %p248 = pnand %p246, %p247
      %p249 = pneg %p248
      // Predicated region
      $region9: #{tpu_custom_call.1} parent=5 // pred_check
        _
      $region10: #{tpu_custom_call.1} parent=5 // pred_check_branch
        %251 = sbr.rel (%p248) target = $region12
      $region11: #{tpu_custom_call.1} parent=5 // pred_region
        %s252 = ssub.s32 %s18, 1
        // Predicated region
        $region13: #{tpu_custom_call.1} parent=11 // pred_check
          %p253 = pneg %p65
        $region14: #{tpu_custom_call.1} parent=11 // pred_check_branch
          %255 = sbr.rel (%p253) target = $region16
        $region15: #{tpu_custom_call.1} parent=11 // pred_region
          _
        $region16: #{tpu_custom_call.1} parent=11 // pred_fallthru
          _
        // Predicated region
        $region17: #{tpu_custom_call.1} parent=11 // pred_check
          %p256 = pneg %p86
        $region18: #{tpu_custom_call.1} parent=11 // pred_check_branch
          %258 = sbr.rel (%p256) target = $region20
        $region19: #{tpu_custom_call.1} parent=11 // pred_region
          _
        $region20: #{tpu_custom_call.1} parent=11 // pred_fallthru
          _
        // Predicated region
        $region21: #{tpu_custom_call.1} parent=11 // pred_check
          %p259 = pneg %p107
        $region22: #{tpu_custom_call.1} parent=11 // pred_check_branch
          %261 = sbr.rel (%p259) target = $region24
        $region23: #{tpu_custom_call.1} parent=11 // pred_region
          _
        $region24: #{tpu_custom_call.1} parent=11 // pred_fallthru
          _
        // Predicated region
        $region25: #{tpu_custom_call.1} parent=11 // pred_check
          %p262 = pneg %p128
        $region26: #{tpu_custom_call.1} parent=11 // pred_check_branch
          %264 = sbr.rel (%p262) target = $region28
        $region27: #{tpu_custom_call.1} parent=11 // pred_region
          _
        $region28: #{tpu_custom_call.1} parent=11 // pred_fallthru
          _
        // Predicated region
        $region29: #{tpu_custom_call.1} parent=11 // pred_check
          %p265 = pneg %p149
        $region30: #{tpu_custom_call.1} parent=11 // pred_check_branch
          %267 = sbr.rel (%p265) target = $region32
        $region31: #{tpu_custom_call.1} parent=11 // pred_region
          _
        $region32: #{tpu_custom_call.1} parent=11 // pred_fallthru
          _
        // Predicated region
        $region33: #{tpu_custom_call.1} parent=11 // pred_check
          %p268 = pneg %p170
        $region34: #{tpu_custom_call.1} parent=11 // pred_check_branch
          %270 = sbr.rel (%p268) target = $region36
        $region35: #{tpu_custom_call.1} parent=11 // pred_region
          _
        $region36: #{tpu_custom_call.1} parent=11 // pred_fallthru
          _
        // Predicated region
        $region37: #{tpu_custom_call.1} parent=11 // pred_check
          %p271 = pneg %p191
        $region38: #{tpu_custom_call.1} parent=11 // pred_check_branch
          %273 = sbr.rel (%p271) target = $region40
        $region39: #{tpu_custom_call.1} parent=11 // pred_region
          _
        $region40: #{tpu_custom_call.1} parent=11 // pred_fallthru
          _
        // Predicated region
        $region41: #{tpu_custom_call.1} parent=11 // pred_check
          %p274 = pneg %p212
        $region42: #{tpu_custom_call.1} parent=11 // pred_check_branch
          %276 = sbr.rel (%p274) target = $region44
        $region43: #{tpu_custom_call.1} parent=11 // pred_region
          _
        $region44: #{tpu_custom_call.1} parent=11 // pred_fallthru
          _
      $region12: #{tpu_custom_call.1} parent=5 // pred_fallthru
        _
      %p277 = scmp.lt.s32.totalorder %s18, 2
      // Predicated region
      $region45: #{tpu_custom_call.1} parent=5 // pred_check
        %p278 = pneg %p277
      $region46: #{tpu_custom_call.1} parent=5 // pred_check_branch
        %280 = sbr.rel (%p278) target = $region48
      $region47: #{tpu_custom_call.1} parent=5 // pred_region
        // Predicated region
        $region49: #{tpu_custom_call.1} parent=47 // pred_check
          %p281 = pneg %p38
        $region50: #{tpu_custom_call.1} parent=47 // pred_check_branch
          %283 = sbr.rel (%p281) target = $region52
        $region51: #{tpu_custom_call.1} parent=47 // pred_region
          %s284 = smul.u32 16, %s18
          %p285 = scmp.lt.s32.totalorder %s284, 31
          %s286 = scalar_select %p285, %s284, 31
          %s287 = smul.addr %s286, 4
          %s288 = scalar_lea.vmem %s0, %s287
          %s289 = smul.u32 16, %s18
        $region52: #{tpu_custom_call.1} parent=47 // pred_fallthru
          _
      $region48: #{tpu_custom_call.1} parent=5 // pred_fallthru
        _
      %p290 = scmp.le.s32.totalorder 1, %s18
      %p291 = scmp.lt.s32.totalorder %s18, 3
      %p292 = pnand %p290, %p291
      %p293 = pneg %p292
      // Predicated region
      $region53: #{tpu_custom_call.1} parent=5 // pred_check
        _
      $region54: #{tpu_custom_call.1} parent=5 // pred_check_branch
        %295 = sbr.rel (%p292) target = $region56
      $region55: #{tpu_custom_call.1} parent=5 // pred_region
        %s296 = ssub.s32 %s18, 1
        %s297 = smul.u32 16, %s23
        %p298 = scmp.lt.s32.totalorder %s297, 31
        %s299 = scalar_select %p298, %s297, 31
        %s300 = smul.addr %s299, 4
        %s301 = scalar_lea.vmem %s0, %s300
        %p302 = pneg %p44
        %p303 = pneg %p41
        %p304 = pneg %p65
        %p305 = pneg %p62
        %p306 = pneg %p86
        %p307 = pneg %p83
        %p308 = pneg %p107
        %p309 = pneg %p104
        %p310 = pneg %p128
        %p311 = pneg %p125
        %p312 = pneg %p149
        %p313 = pneg %p146
        %p314 = pneg %p170
        %p315 = pneg %p167
        %p316 = pneg %p191
        %p317 = pneg %p188
        %p318 = pneg %p212
        %p319 = pneg %p209
        %p320 = pneg %p238
        %p321 = pneg %p235
        %s322 = sand.u32 %s225, 1
        %s323 = scalar_lea.sflag [#allocation4], %s322
        %s324 = sand.u32 %s225, 1
        %s325 = smul.addr %s324, 512
        %s326 = scalar_lea.vmem [#allocation3], %s325
        %s327 = smul.u32 16, %s23
        %p328 = scmp.lt.s32.totalorder %s327, 31
        %s329 = scalar_select %p328, %s327, 31
        %s330 = smul.addr %s329, 4
        %s331 = scalar_lea.vmem %s0, %s330
        %s332 = smul.u32 16, %s23
        %s333 = smul.u32 16, %s23
        %v335 = vld [vmem:[%s331] sm:$0xf]
        %v336 = vld [vmem:[%s331 + $0x4] sm:$0xf]
        %v337 = vld [vmem:[%s331 + $0x8] sm:$0xf]
        %v338 = vld [vmem:[%s331 + $0xc] sm:$0xf]
        %v339 = vld [vmem:[%s331 + $0x10] sm:$0xf]
        %v340 = vld [vmem:[%s331 + $0x14] sm:$0xf]
        %v341 = vld [vmem:[%s331 + $0x18] sm:$0xf]
        %v342 = vld [vmem:[%s331 + $0x1c] sm:$0xf]
        %v343 = vld [vmem:[%s331 + $0x20] sm:$0xf]
        %v344 = vld [vmem:[%s331 + $0x24] sm:$0xf]
        %v345 = vld [vmem:[%s331 + $0x28] sm:$0xf]
        %v346 = vld [vmem:[%s331 + $0x2c] sm:$0xf]
        %v347 = vld [vmem:[%s331 + $0x30] sm:$0xf]
        %v348 = vld [vmem:[%s331 + $0x34] sm:$0xf]
        %v349 = vld [vmem:[%s331 + $0x38] sm:$0xf]
        %v350 = vld [vmem:[%s331 + $0x3c] sm:$0xf]
        %v351 = vld [vmem:[%s1] sm:$0xf]
        %v352 = vld [vmem:[%s1 + $0x4] sm:$0xf]
        %v353 = vld [vmem:[%s2] sm:$0x1]
        %v355 = vlaneseq
        %v356 = vshrl.u32 %v355, 7
        %v357 = vsub.s32 0, %v356
        %v358 = vrot.slane %v353, %v357
        %v376 = vunpack.c.l.b16 %v335
        %v377 = vunpack.c.l.b16 %v336
        %v378 = vunpack.c.l.b16 %v337
        %v379 = vunpack.c.l.b16 %v338
        %v380 = vunpack.c.l.b16 %v339
        %v381 = vunpack.c.l.b16 %v340
        %v382 = vunpack.c.l.b16 %v341
        %v383 = vunpack.c.l.b16 %v342
        %v384 = vunpack.c.l.b16 %v343
        %v385 = vunpack.c.l.b16 %v344
        %v386 = vunpack.c.l.b16 %v345
        %v387 = vunpack.c.l.b16 %v346
        %v388 = vunpack.c.l.b16 %v347
        %v389 = vunpack.c.l.b16 %v348
        %v390 = vunpack.c.l.b16 %v349
        %v391 = vunpack.c.l.b16 %v350
        %v392 = vpack.c.b16 %v377, %v376
        %v393 = vpack.c.b16 %v379, %v378
        %v394 = vpack.c.b16 %v381, %v380
        %v395 = vpack.c.b16 %v383, %v382
        %v396 = vpack.c.b16 %v385, %v384
        %v397 = vpack.c.b16 %v387, %v386
        %v398 = vpack.c.b16 %v389, %v388
        %v399 = vpack.c.b16 %v391, %v390
        %v402 = vunpack.c.l.b16 %v351
        %v403 = vunpack.c.l.b16 %v352
        %v404 = vpack.c.b16 %v403, %v402
        %vm406 = vcmask 130048
        %v408 = vsel %vm406, %v392, 0
        %v411 = vsel %vm406, %v393, 0
        %v414 = vsel %vm406, %v394, 0
        %v417 = vsel %vm406, %v395, 0
        %v420 = vsel %vm406, %v396, 0
        %v423 = vsel %vm406, %v397, 0
        %v426 = vsel %vm406, %v398, 0
        %v429 = vsel %vm406, %v399, 0
        %431 = vmatprep.subr.bf16.mxu0 0
        %432 = vmatpush1.bf16.msra.mxu0 %v404
        %433 = vmatprep.subr.bf16.mxu0 0
        %434 = vmatpush1.bf16.msra.mxu0 0
        %435 = vmatprep.subr.bf16.mxu0 0
        %436 = vmatpush1.bf16.msra.mxu0 0
        %437 = vmatprep.subr.bf16.mxu0 0
        %438 = vmatpush1.bf16.msra.mxu0 0
        %439 = vmatprep.subr.bf16.mxu0 0
        %440 = vmatpush1.bf16.msra.mxu0 0
        %441 = vmatprep.subr.bf16.mxu0 0
        %442 = vmatpush1.bf16.msra.mxu0 0
        %443 = vmatprep.subr.bf16.mxu0 0
        %444 = vmatpush1.bf16.msra.mxu0 0
        %445 = vmatprep.subr.bf16.mxu0 0
        %446 = vmatpush1.bf16.msra.mxu0 0
        %447 = vmatprep.subr.bf16.mxu0 0
        %448 = vmatpush1.bf16.msra.mxu0 0
        %449 = vmatprep.subr.bf16.mxu0 0
        %450 = vmatpush1.bf16.msra.mxu0 0
        %451 = vmatprep.subr.bf16.mxu0 0
        %452 = vmatpush1.bf16.msra.mxu0 0
        %453 = vmatprep.subr.bf16.mxu0 0
        %454 = vmatpush1.bf16.msra.mxu0 0
        %455 = vmatprep.subr.bf16.mxu0 0
        %456 = vmatpush1.bf16.msra.mxu0 0
        %457 = vmatprep.subr.bf16.mxu0 0
        %458 = vmatpush1.bf16.msra.mxu0 0
        %459 = vmatprep.subr.bf16.mxu0 0
        %460 = vmatpush1.bf16.msra.mxu0 0
        %461 = vmatprep.subr.bf16.mxu0 0
        %462 = vmatpush1.bf16.msra.mxu0 0
        %463 = vmatprep.mubr.bf16.mxu0 0
        %464 = vmatmul.mubr.bf16.gmra.mrb[0].mxu0 %v408
        %v465 = vpop.f32.mrb[0].mxu0
        %v466 = vadd.f32 %v358, %v465
        %v467 = vpop.f32.mrb[0].mxu0
        %v468 = vpop.f32.mrb[0].mxu0
        %v469 = vadd.f32 %v358, %v468
        %v470 = vpop.f32.mrb[0].mxu0
        %471 = vmatprep.mubr.bf16.mxu0 0
        %472 = vmatmul.mubr.bf16.gmra.mrb[0].mxu0 %v411
        %v473 = vpop.f32.mrb[0].mxu0
        %v474 = vadd.f32 %v358, %v473
        %v475 = vpop.f32.mrb[0].mxu0
        %v476 = vpop.f32.mrb[0].mxu0
        %v477 = vadd.f32 %v358, %v476
        %v478 = vpop.f32.mrb[0].mxu0
        %479 = vmatprep.mubr.bf16.mxu0 0
        %480 = vmatmul.mubr.bf16.gmra.mrb[0].mxu0 %v414
        %v481 = vpop.f32.mrb[0].mxu0
        %v482 = vadd.f32 %v358, %v481
        %v483 = vpop.f32.mrb[0].mxu0
        %v484 = vpop.f32.mrb[0].mxu0
        %v485 = vadd.f32 %v358, %v484
        %v486 = vpop.f32.mrb[0].mxu0
        %487 = vmatprep.mubr.bf16.mxu0 0
        %488 = vmatmul.mubr.bf16.gmra.mrb[0].mxu0 %v417
        %v489 = vpop.f32.mrb[0].mxu0
        %v490 = vadd.f32 %v358, %v489
        %v491 = vpop.f32.mrb[0].mxu0
        %v492 = vpop.f32.mrb[0].mxu0
        %v493 = vadd.f32 %v358, %v492
        %v494 = vpop.f32.mrb[0].mxu0
        %495 = vmatprep.mubr.bf16.mxu0 0
        %496 = vmatmul.mubr.bf16.gmra.mrb[0].mxu0 %v420
        %v497 = vpop.f32.mrb[0].mxu0
        %v498 = vadd.f32 %v358, %v497
        %v499 = vpop.f32.mrb[0].mxu0
        %v500 = vpop.f32.mrb[0].mxu0
        %v501 = vadd.f32 %v358, %v500
        %v502 = vpop.f32.mrb[0].mxu0
        %503 = vmatprep.mubr.bf16.mxu0 0
        %504 = vmatmul.mubr.bf16.gmra.mrb[0].mxu0 %v423
        %v505 = vpop.f32.mrb[0].mxu0
        %v506 = vadd.f32 %v358, %v505
        %v507 = vpop.f32.mrb[0].mxu0
        %v508 = vpop.f32.mrb[0].mxu0
        %v509 = vadd.f32 %v358, %v508
        %v510 = vpop.f32.mrb[0].mxu0
        %511 = vmatprep.mubr.bf16.mxu0 0
        %512 = vmatmul.mubr.bf16.gmra.mrb[0].mxu0 %v426
        %v513 = vpop.f32.mrb[0].mxu0
        %v514 = vadd.f32 %v358, %v513
        %v515 = vpop.f32.mrb[0].mxu0
        %v516 = vpop.f32.mrb[0].mxu0
        %v517 = vadd.f32 %v358, %v516
        %v518 = vpop.f32.mrb[0].mxu0
        %519 = vmatprep.mubr.bf16.mxu0 0
        %520 = vmatmul.mubr.bf16.gmra.mrb[0].mxu0 %v429
        %v521 = vpop.f32.mrb[0].mxu0
        %v522 = vadd.f32 %v358, %v521
        %v523 = vpop.f32.mrb[0].mxu0
        %v524 = vpop.f32.mrb[0].mxu0
        %v525 = vadd.f32 %v358, %v524
        %v526 = vpop.f32.mrb[0].mxu0
        %527 = vdwg.mxu0
        %v528 = vmax.f32 %v466, 0.0
        %v529 = vmax.f32 %v469, 0.0
        %v530 = vmax.f32 %v474, 0.0
        %v531 = vmax.f32 %v477, 0.0
        %v532 = vmax.f32 %v482, 0.0
        %v533 = vmax.f32 %v485, 0.0
        %v534 = vmax.f32 %v490, 0.0
        %v535 = vmax.f32 %v493, 0.0
        %v536 = vmax.f32 %v498, 0.0
        %v537 = vmax.f32 %v501, 0.0
        %v538 = vmax.f32 %v506, 0.0
        %v539 = vmax.f32 %v509, 0.0
        %v540 = vmax.f32 %v514, 0.0
        %v541 = vmax.f32 %v517, 0.0
        %v542 = vmax.f32 %v522, 0.0
        %v543 = vmax.f32 %v525, 0.0
        %v544 = vpack.c.bf16 %v529, %v528
        %v545 = vpack.c.bf16 %v531, %v530
        %v546 = vpack.c.bf16 %v533, %v532
        %v547 = vpack.c.bf16 %v535, %v534
        %v548 = vpack.c.bf16 %v537, %v536
        %v549 = vpack.c.bf16 %v539, %v538
        %v550 = vpack.c.bf16 %v541, %v540
        %v551 = vpack.c.bf16 %v543, %v542
        %v552 = vld [vmem:[%s3] sm:$0xff]
        %v553 = vld [vmem:[%s3 + $0x8] sm:$0xff]
        %v554 = vld [vmem:[%s3 + $0x10] sm:$0xff]
        %v555 = vld [vmem:[%s3 + $0x18] sm:$0xff]
        %v556 = vld [vmem:[%s3 + $0x20] sm:$0xff]
        %v557 = vld [vmem:[%s3 + $0x28] sm:$0xff]
        %v558 = vld [vmem:[%s3 + $0x30] sm:$0xff]
        %v559 = vld [vmem:[%s3 + $0x38] sm:$0xff]
        %v560 = vld [vmem:[%s3 + $0x40] sm:$0xff]
        %v561 = vld [vmem:[%s3 + $0x48] sm:$0xff]
        %v562 = vld [vmem:[%s3 + $0x50] sm:$0xff]
        %v563 = vld [vmem:[%s3 + $0x58] sm:$0xff]
        %v564 = vld [vmem:[%s3 + $0x60] sm:$0xff]
        %v565 = vld [vmem:[%s3 + $0x68] sm:$0xff]
        %v566 = vld [vmem:[%s3 + $0x70] sm:$0xff]
        %v567 = vld [vmem:[%s3 + $0x78] sm:$0xff]
        %v568 = vld [vmem:[%s4] sm:$0xff]
        %v570 = vlaneseq
        %v571 = vshrl.u32 %v570, 7
        %v572 = vsub.s32 0, %v571
        %v573 = vrot.slane %v568, %v572
        %v574 = vlaneseq
        %v575 = vshrl.u32 %v574, 7
        %v576 = vsub.s32 1, %v575
        %v577 = vrot.slane %v568, %v576
        %v578 = vlaneseq
        %v579 = vshrl.u32 %v578, 7
        %v580 = vsub.s32 2, %v579
        %v581 = vrot.slane %v568, %v580
        %v582 = vlaneseq
        %v583 = vshrl.u32 %v582, 7
        %v584 = vsub.s32 3, %v583
        %v585 = vrot.slane %v568, %v584
        %v586 = vlaneseq
        %v587 = vshrl.u32 %v586, 7
        %v588 = vsub.s32 4, %v587
        %v589 = vrot.slane %v568, %v588
        %v590 = vlaneseq
        %v591 = vshrl.u32 %v590, 7
        %v592 = vsub.s32 5, %v591
        %v593 = vrot.slane %v568, %v592
        %v594 = vlaneseq
        %v595 = vshrl.u32 %v594, 7
        %v596 = vsub.s32 6, %v595
        %v597 = vrot.slane %v568, %v596
        %v598 = vlaneseq
        %v599 = vshrl.u32 %v598, 7
        %v600 = vsub.s32 7, %v599
        %v601 = vrot.slane %v568, %v600
        %v626 = vunpack.c.l.b16 %v552
        %v627 = vunpack.c.h.b16 %v552
        %v628 = vunpack.c.l.b16 %v553
        %v629 = vunpack.c.h.b16 %v553
        %v630 = vunpack.c.l.b16 %v554
        %v631 = vunpack.c.h.b16 %v554
        %v632 = vunpack.c.l.b16 %v555
        %v633 = vunpack.c.h.b16 %v555
        %v634 = vunpack.c.l.b16 %v556
        %v635 = vunpack.c.h.b16 %v556
        %v636 = vunpack.c.l.b16 %v557
        %v637 = vunpack.c.h.b16 %v557
        %v638 = vunpack.c.l.b16 %v558
        %v639 = vunpack.c.h.b16 %v558
        %v640 = vunpack.c.l.b16 %v559
        %v641 = vunpack.c.h.b16 %v559
        %v642 = vunpack.c.l.b16 %v560
        %v643 = vunpack.c.h.b16 %v560
        %v644 = vunpack.c.l.b16 %v561
        %v645 = vunpack.c.h.b16 %v561
        %v646 = vunpack.c.l.b16 %v562
        %v647 = vunpack.c.h.b16 %v562
        %v648 = vunpack.c.l.b16 %v563
        %v649 = vunpack.c.h.b16 %v563
        %v650 = vunpack.c.l.b16 %v564
        %v651 = vunpack.c.h.b16 %v564
        %v652 = vunpack.c.l.b16 %v565
        %v653 = vunpack.c.h.b16 %v565
        %v654 = vunpack.c.l.b16 %v566
        %v655 = vunpack.c.h.b16 %v566
        %v656 = vunpack.c.l.b16 %v567
        %v657 = vunpack.c.h.b16 %v567
        %v658 = vpack.c.b16 %v634, %v626
        %v659 = vpack.c.b16 %v635, %v627
        %v660 = vpack.c.b16 %v636, %v628
        %v661 = vpack.c.b16 %v637, %v629
        %v662 = vpack.c.b16 %v638, %v630
        %v663 = vpack.c.b16 %v639, %v631
        %v664 = vpack.c.b16 %v640, %v632
        %v665 = vpack.c.b16 %v641, %v633
        %v666 = vpack.c.b16 %v650, %v642
        %v667 = vpack.c.b16 %v651, %v643
        %v668 = vpack.c.b16 %v652, %v644
        %v669 = vpack.c.b16 %v653, %v645
        %v670 = vpack.c.b16 %v654, %v646
        %v671 = vpack.c.b16 %v655, %v647
        %v672 = vpack.c.b16 %v656, %v648
        %v673 = vpack.c.b16 %v657, %v649
        %vm690 = vcmask 261120
        %v692 = vsel %vm690, %v544, 0
        %v695 = vsel %vm690, %v545, 0
        %v698 = vsel %vm690, %v546, 0
        %v701 = vsel %vm690, %v547, 0
        %v704 = vsel %vm690, %v548, 0
        %v707 = vsel %vm690, %v549, 0
        %v710 = vsel %vm690, %v550, 0
        %v713 = vsel %vm690, %v551, 0
        %715 = vmatprep.subr.bf16.mxu0 %v659
        %716 = vmatpush1.bf16.msra.mxu0 %v658
        %717 = vmatprep.subr.bf16.mxu0 %v667
        %718 = vmatpush1.bf16.msra.mxu0 %v666
        %719 = vmatprep.subr.bf16.mxu0 0
        %720 = vmatpush1.bf16.msra.mxu0 0
        %721 = vmatprep.subr.bf16.mxu0 0
        %722 = vmatpush1.bf16.msra.mxu0 0
        %723 = vmatprep.subr.bf16.mxu0 0
        %724 = vmatpush1.bf16.msra.mxu0 0
        %725 = vmatprep.subr.bf16.mxu0 0
        %726 = vmatpush1.bf16.msra.mxu0 0
        %727 = vmatprep.subr.bf16.mxu0 0
        %728 = vmatpush1.bf16.msra.mxu0 0
        %729 = vmatprep.subr.bf16.mxu0 0
        %730 = vmatpush1.bf16.msra.mxu0 0
        %731 = vmatprep.subr.bf16.mxu0 0
        %732 = vmatpush1.bf16.msra.mxu0 0
        %733 = vmatprep.subr.bf16.mxu0 0
        %734 = vmatpush1.bf16.msra.mxu0 0
        %735 = vmatprep.subr.bf16.mxu0 0
        %736 = vmatpush1.bf16.msra.mxu0 0
        %737 = vmatprep.subr.bf16.mxu0 0
        %738 = vmatpush1.bf16.msra.mxu0 0
        %739 = vmatprep.subr.bf16.mxu0 0
        %740 = vmatpush1.bf16.msra.mxu0 0
        %741 = vmatprep.subr.bf16.mxu0 0
        %742 = vmatpush1.bf16.msra.mxu0 0
        %743 = vmatprep.subr.bf16.mxu0 0
        %744 = vmatpush1.bf16.msra.mxu0 0
        %745 = vmatprep.subr.bf16.mxu0 0
        %746 = vmatpush1.bf16.msra.mxu0 0
        %747 = vmatprep.mubr.bf16.mxu0 0
        %748 = vmatmul.mubr.bf16.gmra.mrb[0].mxu0 %v692
        %v749 = vpop.f32.mrb[0].mxu0
        %v750 = vadd.f32 %v573, %v749
        %v751 = vpop.f32.mrb[0].mxu0
        %v752 = vadd.f32 %v577, %v751
        %v753 = vpop.f32.mrb[0].mxu0
        %v754 = vadd.f32 %v573, %v753
        %v755 = vpop.f32.mrb[0].mxu0
        %v756 = vadd.f32 %v577, %v755
        %757 = vmatprep.mubr.bf16.mxu0 0
        %758 = vmatmul.mubr.bf16.gmra.mrb[0].mxu0 %v695
        %v759 = vpop.f32.mrb[0].mxu0
        %v760 = vadd.f32 %v573, %v759
        %v761 = vpop.f32.mrb[0].mxu0
        %v762 = vadd.f32 %v577, %v761
        %v763 = vpop.f32.mrb[0].mxu0
        %v764 = vadd.f32 %v573, %v763
        %v765 = vpop.f32.mrb[0].mxu0
        %v766 = vadd.f32 %v577, %v765
        %767 = vmatprep.mubr.bf16.mxu0 0
        %768 = vmatmul.mubr.bf16.gmra.mrb[0].mxu0 %v698
        %v769 = vpop.f32.mrb[0].mxu0
        %v770 = vadd.f32 %v573, %v769
        %v771 = vpop.f32.mrb[0].mxu0
        %v772 = vadd.f32 %v577, %v771
        %v773 = vpop.f32.mrb[0].mxu0
        %v774 = vadd.f32 %v573, %v773
        %v775 = vpop.f32.mrb[0].mxu0
        %v776 = vadd.f32 %v577, %v775
        %777 = vmatprep.mubr.bf16.mxu0 0
        %778 = vmatmul.mubr.bf16.gmra.mrb[0].mxu0 %v701
        %v779 = vpop.f32.mrb[0].mxu0
        %v780 = vadd.f32 %v573, %v779
        %v781 = vpop.f32.mrb[0].mxu0
        %v782 = vadd.f32 %v577, %v781
        %v783 = vpop.f32.mrb[0].mxu0
        %v784 = vadd.f32 %v573, %v783
        %v785 = vpop.f32.mrb[0].mxu0
        %v786 = vadd.f32 %v577, %v785
        %787 = vmatprep.mubr.bf16.mxu0 0
        %788 = vmatmul.mubr.bf16.gmra.mrb[0].mxu0 %v704
        %v789 = vpop.f32.mrb[0].mxu0
        %v790 = vadd.f32 %v573, %v789
        %v791 = vpop.f32.mrb[0].mxu0
        %v792 = vadd.f32 %v577, %v791
        %v793 = vpop.f32.mrb[0].mxu0
        %v794 = vadd.f32 %v573, %v793
        %v795 = vpop.f32.mrb[0].mxu0
        %v796 = vadd.f32 %v577, %v795
        %797 = vmatprep.mubr.bf16.mxu0 0
        %798 = vmatmul.mubr.bf16.gmra.mrb[0].mxu0 %v707
        %v799 = vpop.f32.mrb[0].mxu0
        %v800 = vadd.f32 %v573, %v799
        %v801 = vpop.f32.mrb[0].mxu0
        %v802 = vadd.f32 %v577, %v801
        %v803 = vpop.f32.mrb[0].mxu0
        %v804 = vadd.f32 %v573, %v803
        %v805 = vpop.f32.mrb[0].mxu0
        %v806 = vadd.f32 %v577, %v805
        %807 = vmatprep.mubr.bf16.mxu0 0
        %808 = vmatmul.mubr.bf16.gmra.mrb[0].mxu0 %v710
        %v809 = vpop.f32.mrb[0].mxu0
        %v810 = vadd.f32 %v573, %v809
        %v811 = vpop.f32.mrb[0].mxu0
        %v812 = vadd.f32 %v577, %v811
        %v813 = vpop.f32.mrb[0].mxu0
        %v814 = vadd.f32 %v573, %v813
        %v815 = vpop.f32.mrb[0].mxu0
        %v816 = vadd.f32 %v577, %v815
        %817 = vmatprep.mubr.bf16.mxu0 0
        %818 = vmatmul.mubr.bf16.gmra.mrb[0].mxu0 %v713
        %v819 = vpop.f32.mrb[0].mxu0
        %v820 = vadd.f32 %v573, %v819
        %v821 = vpop.f32.mrb[0].mxu0
        %v822 = vadd.f32 %v577, %v821
        %v823 = vpop.f32.mrb[0].mxu0
        %v824 = vadd.f32 %v573, %v823
        %v825 = vpop.f32.mrb[0].mxu0
        %v826 = vadd.f32 %v577, %v825
        %827 = vdwg.mxu0
        %828 = vmatprep.subr.bf16.mxu0 %v661
        %829 = vmatpush1.bf16.msra.mxu0 %v660
        %830 = vmatprep.subr.bf16.mxu0 %v669
        %831 = vmatpush1.bf16.msra.mxu0 %v668
        %832 = vmatprep.subr.bf16.mxu0 0
        %833 = vmatpush1.bf16.msra.mxu0 0
        %834 = vmatprep.subr.bf16.mxu0 0
        %835 = vmatpush1.bf16.msra.mxu0 0
        %836 = vmatprep.subr.bf16.mxu0 0
        %837 = vmatpush1.bf16.msra.mxu0 0
        %838 = vmatprep.subr.bf16.mxu0 0
        %839 = vmatpush1.bf16.msra.mxu0 0
        %840 = vmatprep.subr.bf16.mxu0 0
        %841 = vmatpush1.bf16.msra.mxu0 0
        %842 = vmatprep.subr.bf16.mxu0 0
        %843 = vmatpush1.bf16.msra.mxu0 0
        %844 = vmatprep.subr.bf16.mxu0 0
        %845 = vmatpush1.bf16.msra.mxu0 0
        %846 = vmatprep.subr.bf16.mxu0 0
        %847 = vmatpush1.bf16.msra.mxu0 0
        %848 = vmatprep.subr.bf16.mxu0 0
        %849 = vmatpush1.bf16.msra.mxu0 0
        %850 = vmatprep.subr.bf16.mxu0 0
        %851 = vmatpush1.bf16.msra.mxu0 0
        %852 = vmatprep.subr.bf16.mxu0 0
        %853 = vmatpush1.bf16.msra.mxu0 0
        %854 = vmatprep.subr.bf16.mxu0 0
        %855 = vmatpush1.bf16.msra.mxu0 0
        %856 = vmatprep.subr.bf16.mxu0 0
        %857 = vmatpush1.bf16.msra.mxu0 0
        %858 = vmatprep.subr.bf16.mxu0 0
        %859 = vmatpush1.bf16.msra.mxu0 0
        %860 = vmatprep.mubr.bf16.mxu0 0
        %861 = vmatmul.mubr.bf16.gmra.mrb[0].mxu0 %v692
        %v862 = vpop.f32.mrb[0].mxu0
        %v863 = vadd.f32 %v581, %v862
        %v864 = vpop.f32.mrb[0].mxu0
        %v865 = vadd.f32 %v585, %v864
        %v866 = vpop.f32.mrb[0].mxu0
        %v867 = vadd.f32 %v581, %v866
        %v868 = vpop.f32.mrb[0].mxu0
        %v869 = vadd.f32 %v585, %v868
        %870 = vmatprep.mubr.bf16.mxu0 0
        %871 = vmatmul.mubr.bf16.gmra.mrb[0].mxu0 %v695
        %v872 = vpop.f32.mrb[0].mxu0
        %v873 = vadd.f32 %v581, %v872
        %v874 = vpop.f32.mrb[0].mxu0
        %v875 = vadd.f32 %v585, %v874
        %v876 = vpop.f32.mrb[0].mxu0
        %v877 = vadd.f32 %v581, %v876
        %v878 = vpop.f32.mrb[0].mxu0
        %v879 = vadd.f32 %v585, %v878
        %880 = vmatprep.mubr.bf16.mxu0 0
        %881 = vmatmul.mubr.bf16.gmra.mrb[0].mxu0 %v698
        %v882 = vpop.f32.mrb[0].mxu0
        %v883 = vadd.f32 %v581, %v882
        %v884 = vpop.f32.mrb[0].mxu0
        %v885 = vadd.f32 %v585, %v884
        %v886 = vpop.f32.mrb[0].mxu0
        %v887 = vadd.f32 %v581, %v886
        %v888 = vpop.f32.mrb[0].mxu0
        %v889 = vadd.f32 %v585, %v888
        %890 = vmatprep.mubr.bf16.mxu0 0
        %891 = vmatmul.mubr.bf16.gmra.mrb[0].mxu0 %v701
        %v892 = vpop.f32.mrb[0].mxu0
        %v893 = vadd.f32 %v581, %v892
        %v894 = vpop.f32.mrb[0].mxu0
        %v895 = vadd.f32 %v585, %v894
        %v896 = vpop.f32.mrb[0].mxu0
        %v897 = vadd.f32 %v581, %v896
        %v898 = vpop.f32.mrb[0].mxu0
        %v899 = vadd.f32 %v585, %v898
        %900 = vmatprep.mubr.bf16.mxu0 0
        %901 = vmatmul.mubr.bf16.gmra.mrb[0].mxu0 %v704
        %v902 = vpop.f32.mrb[0].mxu0
        %v903 = vadd.f32 %v581, %v902
        %v904 = vpop.f32.mrb[0].mxu0
        %v905 = vadd.f32 %v585, %v904
        %v906 = vpop.f32.mrb[0].mxu0
        %v907 = vadd.f32 %v581, %v906
        %v908 = vpop.f32.mrb[0].mxu0
        %v909 = vadd.f32 %v585, %v908
        %910 = vmatprep.mubr.bf16.mxu0 0
        %911 = vmatmul.mubr.bf16.gmra.mrb[0].mxu0 %v707
        %v912 = vpop.f32.mrb[0].mxu0
        %v913 = vadd.f32 %v581, %v912
        %v914 = vpop.f32.mrb[0].mxu0
        %v915 = vadd.f32 %v585, %v914
        %v916 = vpop.f32.mrb[0].mxu0
        %v917 = vadd.f32 %v581, %v916
        %v918 = vpop.f32.mrb[0].mxu0
        %v919 = vadd.f32 %v585, %v918
        %920 = vmatprep.mubr.bf16.mxu0 0
        %921 = vmatmul.mubr.bf16.gmra.mrb[0].mxu0 %v710
        %v922 = vpop.f32.mrb[0].mxu0
        %v923 = vadd.f32 %v581, %v922
        %v924 = vpop.f32.mrb[0].mxu0
        %v925 = vadd.f32 %v585, %v924
        %v926 = vpop.f32.mrb[0].mxu0
        %v927 = vadd.f32 %v581, %v926
        %v928 = vpop.f32.mrb[0].mxu0
        %v929 = vadd.f32 %v585, %v928
        %930 = vmatprep.mubr.bf16.mxu0 0
        %931 = vmatmul.mubr.bf16.gmra.mrb[0].mxu0 %v713
        %v932 = vpop.f32.mrb[0].mxu0
        %v933 = vadd.f32 %v581, %v932
        %v934 = vpop.f32.mrb[0].mxu0
        %v935 = vadd.f32 %v585, %v934
        %v936 = vpop.f32.mrb[0].mxu0
        %v937 = vadd.f32 %v581, %v936
        %v938 = vpop.f32.mrb[0].mxu0
        %v939 = vadd.f32 %v585, %v938
        %940 = vdwg.mxu0
        %941 = vmatprep.subr.bf16.mxu0 %v663
        %942 = vmatpush1.bf16.msra.mxu0 %v662
        %943 = vmatprep.subr.bf16.mxu0 %v671
        %944 = vmatpush1.bf16.msra.mxu0 %v670
        %945 = vmatprep.subr.bf16.mxu0 0
        %946 = vmatpush1.bf16.msra.mxu0 0
        %947 = vmatprep.subr.bf16.mxu0 0
        %948 = vmatpush1.bf16.msra.mxu0 0
        %949 = vmatprep.subr.bf16.mxu0 0
        %950 = vmatpush1.bf16.msra.mxu0 0
        %951 = vmatprep.subr.bf16.mxu0 0
        %952 = vmatpush1.bf16.msra.mxu0 0
        %953 = vmatprep.subr.bf16.mxu0 0
        %954 = vmatpush1.bf16.msra.mxu0 0
        %955 = vmatprep.subr.bf16.mxu0 0
        %956 = vmatpush1.bf16.msra.mxu0 0
        %957 = vmatprep.subr.bf16.mxu0 0
        %958 = vmatpush1.bf16.msra.mxu0 0
        %959 = vmatprep.subr.bf16.mxu0 0
        %960 = vmatpush1.bf16.msra.mxu0 0
        %961 = vmatprep.subr.bf16.mxu0 0
        %962 = vmatpush1.bf16.msra.mxu0 0
        %963 = vmatprep.subr.bf16.mxu0 0
        %964 = vmatpush1.bf16.msra.mxu0 0
        %965 = vmatprep.subr.bf16.mxu0 0
        %966 = vmatpush1.bf16.msra.mxu0 0
        %967 = vmatprep.subr.bf16.mxu0 0
        %968 = vmatpush1.bf16.msra.mxu0 0
        %969 = vmatprep.subr.bf16.mxu0 0
        %970 = vmatpush1.bf16.msra.mxu0 0
        %971 = vmatprep.subr.bf16.mxu0 0
        %972 = vmatpush1.bf16.msra.mxu0 0
        %973 = vmatprep.mubr.bf16.mxu0 0
        %974 = vmatmul.mubr.bf16.gmra.mrb[0].mxu0 %v692
        %v975 = vpop.f32.mrb[0].mxu0
        %v976 = vadd.f32 %v589, %v975
        %v977 = vpop.f32.mrb[0].mxu0
        %v978 = vadd.f32 %v593, %v977
        %v979 = vpop.f32.mrb[0].mxu0
        %v980 = vadd.f32 %v589, %v979
        %v981 = vpop.f32.mrb[0].mxu0
        %v982 = vadd.f32 %v593, %v981
        %983 = vmatprep.mubr.bf16.mxu0 0
        %984 = vmatmul.mubr.bf16.gmra.mrb[0].mxu0 %v695
        %v985 = vpop.f32.mrb[0].mxu0
        %v986 = vadd.f32 %v589, %v985
        %v987 = vpop.f32.mrb[0].mxu0
        %v988 = vadd.f32 %v593, %v987
        %v989 = vpop.f32.mrb[0].mxu0
        %v990 = vadd.f32 %v589, %v989
        %v991 = vpop.f32.mrb[0].mxu0
        %v992 = vadd.f32 %v593, %v991
        %993 = vmatprep.mubr.bf16.mxu0 0
        %994 = vmatmul.mubr.bf16.gmra.mrb[0].mxu0 %v698
        %v995 = vpop.f32.mrb[0].mxu0
        %v996 = vadd.f32 %v589, %v995
        %v997 = vpop.f32.mrb[0].mxu0
        %v998 = vadd.f32 %v593, %v997
        %v999 = vpop.f32.mrb[0].mxu0
        %v1000 = vadd.f32 %v589, %v999
        %v1001 = vpop.f32.mrb[0].mxu0
        %v1002 = vadd.f32 %v593, %v1001
        %1003 = vmatprep.mubr.bf16.mxu0 0
        %1004 = vmatmul.mubr.bf16.gmra.mrb[0].mxu0 %v701
        %v1005 = vpop.f32.mrb[0].mxu0
        %v1006 = vadd.f32 %v589, %v1005
        %v1007 = vpop.f32.mrb[0].mxu0
        %v1008 = vadd.f32 %v593, %v1007
        %v1009 = vpop.f32.mrb[0].mxu0
        %v1010 = vadd.f32 %v589, %v1009
        %v1011 = vpop.f32.mrb[0].mxu0
        %v1012 = vadd.f32 %v593, %v1011
        %1013 = vmatprep.mubr.bf16.mxu0 0
        %1014 = vmatmul.mubr.bf16.gmra.mrb[0].mxu0 %v704
        %v1015 = vpop.f32.mrb[0].mxu0
        %v1016 = vadd.f32 %v589, %v1015
        %v1017 = vpop.f32.mrb[0].mxu0
        %v1018 = vadd.f32 %v593, %v1017
        %v1019 = vpop.f32.mrb[0].mxu0
        %v1020 = vadd.f32 %v589, %v1019
        %v1021 = vpop.f32.mrb[0].mxu0
        %v1022 = vadd.f32 %v593, %v1021
        %1023 = vmatprep.mubr.bf16.mxu0 0
        %1024 = vmatmul.mubr.bf16.gmra.mrb[0].mxu0 %v707
        %v1025 = vpop.f32.mrb[0].mxu0
        %v1026 = vadd.f32 %v589, %v1025
        %v1027 = vpop.f32.mrb[0].mxu0
        %v1028 = vadd.f32 %v593, %v1027
        %v1029 = vpop.f32.mrb[0].mxu0
        %v1030 = vadd.f32 %v589, %v1029
        %v1031 = vpop.f32.mrb[0].mxu0
        %v1032 = vadd.f32 %v593, %v1031
        %1033 = vmatprep.mubr.bf16.mxu0 0
        %1034 = vmatmul.mubr.bf16.gmra.mrb[0].mxu0 %v710
        %v1035 = vpop.f32.mrb[0].mxu0
        %v1036 = vadd.f32 %v589, %v1035
        %v1037 = vpop.f32.mrb[0].mxu0
        %v1038 = vadd.f32 %v593, %v1037
        %v1039 = vpop.f32.mrb[0].mxu0
        %v1040 = vadd.f32 %v589, %v1039
        %v1041 = vpop.f32.mrb[0].mxu0
        %v1042 = vadd.f32 %v593, %v1041
        %1043 = vmatprep.mubr.bf16.mxu0 0
        %1044 = vmatmul.mubr.bf16.gmra.mrb[0].mxu0 %v713
        %v1045 = vpop.f32.mrb[0].mxu0
        %v1046 = vadd.f32 %v589, %v1045
        %v1047 = vpop.f32.mrb[0].mxu0
        %v1048 = vadd.f32 %v593, %v1047
        %v1049 = vpop.f32.mrb[0].mxu0
        %v1050 = vadd.f32 %v589, %v1049
        %v1051 = vpop.f32.mrb[0].mxu0
        %v1052 = vadd.f32 %v593, %v1051
        %1053 = vdwg.mxu0
        %1054 = vmatprep.subr.bf16.mxu0 %v665
        %1055 = vmatpush1.bf16.msra.mxu0 %v664
        %1056 = vmatprep.subr.bf16.mxu0 %v673
        %1057 = vmatpush1.bf16.msra.mxu0 %v672
        %1058 = vmatprep.subr.bf16.mxu0 0
        %1059 = vmatpush1.bf16.msra.mxu0 0
        %1060 = vmatprep.subr.bf16.mxu0 0
        %1061 = vmatpush1.bf16.msra.mxu0 0
        %1062 = vmatprep.subr.bf16.mxu0 0
        %1063 = vmatpush1.bf16.msra.mxu0 0
        %1064 = vmatprep.subr.bf16.mxu0 0
        %1065 = vmatpush1.bf16.msra.mxu0 0
        %1066 = vmatprep.subr.bf16.mxu0 0
        %1067 = vmatpush1.bf16.msra.mxu0 0
        %1068 = vmatprep.subr.bf16.mxu0 0
        %1069 = vmatpush1.bf16.msra.mxu0 0
        %1070 = vmatprep.subr.bf16.mxu0 0
        %1071 = vmatpush1.bf16.msra.mxu0 0
        %1072 = vmatprep.subr.bf16.mxu0 0
        %1073 = vmatpush1.bf16.msra.mxu0 0
        %1074 = vmatprep.subr.bf16.mxu0 0
        %1075 = vmatpush1.bf16.msra.mxu0 0
        %1076 = vmatprep.subr.bf16.mxu0 0
        %1077 = vmatpush1.bf16.msra.mxu0 0
        %1078 = vmatprep.subr.bf16.mxu0 0
        %1079 = vmatpush1.bf16.msra.mxu0 0
        %1080 = vmatprep.subr.bf16.mxu0 0
        %1081 = vmatpush1.bf16.msra.mxu0 0
        %1082 = vmatprep.subr.bf16.mxu0 0
        %1083 = vmatpush1.bf16.msra.mxu0 0
        %1084 = vmatprep.subr.bf16.mxu0 0
        %1085 = vmatpush1.bf16.msra.mxu0 0
        %1086 = vmatprep.mubr.bf16.mxu0 0
        %1087 = vmatmul.mubr.bf16.gmra.mrb[0].mxu0 %v692
        %v1088 = vpop.f32.mrb[0].mxu0
        %v1089 = vadd.f32 %v597, %v1088
        %v1090 = vpop.f32.mrb[0].mxu0
        %v1091 = vadd.f32 %v601, %v1090
        %v1092 = vpop.f32.mrb[0].mxu0
        %v1093 = vadd.f32 %v597, %v1092
        %v1094 = vpop.f32.mrb[0].mxu0
        %v1095 = vadd.f32 %v601, %v1094
        %1096 = vmatprep.mubr.bf16.mxu0 0
        %1097 = vmatmul.mubr.bf16.gmra.mrb[0].mxu0 %v695
        %v1098 = vpop.f32.mrb[0].mxu0
        %v1099 = vadd.f32 %v597, %v1098
        %v1100 = vpop.f32.mrb[0].mxu0
        %v1101 = vadd.f32 %v601, %v1100
        %v1102 = vpop.f32.mrb[0].mxu0
        %v1103 = vadd.f32 %v597, %v1102
        %v1104 = vpop.f32.mrb[0].mxu0
        %v1105 = vadd.f32 %v601, %v1104
        %1106 = vmatprep.mubr.bf16.mxu0 0
        %1107 = vmatmul.mubr.bf16.gmra.mrb[0].mxu0 %v698
        %v1108 = vpop.f32.mrb[0].mxu0
        %v1109 = vadd.f32 %v597, %v1108
        %v1110 = vpop.f32.mrb[0].mxu0
        %v1111 = vadd.f32 %v601, %v1110
        %v1112 = vpop.f32.mrb[0].mxu0
        %v1113 = vadd.f32 %v597, %v1112
        %v1114 = vpop.f32.mrb[0].mxu0
        %v1115 = vadd.f32 %v601, %v1114
        %1116 = vmatprep.mubr.bf16.mxu0 0
        %1117 = vmatmul.mubr.bf16.gmra.mrb[0].mxu0 %v701
        %v1118 = vpop.f32.mrb[0].mxu0
        %v1119 = vadd.f32 %v597, %v1118
        %v1120 = vpop.f32.mrb[0].mxu0
        %v1121 = vadd.f32 %v601, %v1120
        %v1122 = vpop.f32.mrb[0].mxu0
        %v1123 = vadd.f32 %v597, %v1122
        %v1124 = vpop.f32.mrb[0].mxu0
        %v1125 = vadd.f32 %v601, %v1124
        %1126 = vmatprep.mubr.bf16.mxu0 0
        %1127 = vmatmul.mubr.bf16.gmra.mrb[0].mxu0 %v704
        %v1128 = vpop.f32.mrb[0].mxu0
        %v1129 = vadd.f32 %v597, %v1128
        %v1130 = vpop.f32.mrb[0].mxu0
        %v1131 = vadd.f32 %v601, %v1130
        %v1132 = vpop.f32.mrb[0].mxu0
        %v1133 = vadd.f32 %v597, %v1132
        %v1134 = vpop.f32.mrb[0].mxu0
        %v1135 = vadd.f32 %v601, %v1134
        %1136 = vmatprep.mubr.bf16.mxu0 0
        %1137 = vmatmul.mubr.bf16.gmra.mrb[0].mxu0 %v707
        %v1138 = vpop.f32.mrb[0].mxu0
        %v1139 = vadd.f32 %v597, %v1138
        %v1140 = vpop.f32.mrb[0].mxu0
        %v1141 = vadd.f32 %v601, %v1140
        %v1142 = vpop.f32.mrb[0].mxu0
        %v1143 = vadd.f32 %v597, %v1142
        %v1144 = vpop.f32.mrb[0].mxu0
        %v1145 = vadd.f32 %v601, %v1144
        %1146 = vmatprep.mubr.bf16.mxu0 0
        %1147 = vmatmul.mubr.bf16.gmra.mrb[0].mxu0 %v710
        %v1148 = vpop.f32.mrb[0].mxu0
        %v1149 = vadd.f32 %v597, %v1148
        %v1150 = vpop.f32.mrb[0].mxu0
        %v1151 = vadd.f32 %v601, %v1150
        %v1152 = vpop.f32.mrb[0].mxu0
        %v1153 = vadd.f32 %v597, %v1152
        %v1154 = vpop.f32.mrb[0].mxu0
        %v1155 = vadd.f32 %v601, %v1154
        %1156 = vmatprep.mubr.bf16.mxu0 0
        %1157 = vmatmul.mubr.bf16.gmra.mrb[0].mxu0 %v713
        %v1158 = vpop.f32.mrb[0].mxu0
        %v1159 = vadd.f32 %v597, %v1158
        %v1160 = vpop.f32.mrb[0].mxu0
        %v1161 = vadd.f32 %v601, %v1160
        %v1162 = vpop.f32.mrb[0].mxu0
        %v1163 = vadd.f32 %v597, %v1162
        %v1164 = vpop.f32.mrb[0].mxu0
        %v1165 = vadd.f32 %v601, %v1164
        %1166 = vdwg.mxu0
        %v1167 = vlaneseq
        %v1168 = vand.u32 %v1167, 127
        %1169 = vmax.xlane.f32.xlu0 %v750
        %v1170 = vpop.xlane.xlu0 %1169
        %1171 = vmax.xlane.f32.xlu0 %v754
        %v1172 = vpop.xlane.xlu0 %1171
        %1173 = vmax.xlane.f32.xlu0 %v760
        %v1174 = vpop.xlane.xlu0 %1173
        %1175 = vmax.xlane.f32.xlu0 %v764
        %v1176 = vpop.xlane.xlu0 %1175
        %1177 = vmax.xlane.f32.xlu0 %v770
        %v1178 = vpop.xlane.xlu0 %1177
        %1179 = vmax.xlane.f32.xlu0 %v774
        %v1180 = vpop.xlane.xlu0 %1179
        %1181 = vmax.xlane.f32.xlu0 %v780
        %v1182 = vpop.xlane.xlu0 %1181
        %1183 = vmax.xlane.f32.xlu0 %v784
        %v1184 = vpop.xlane.xlu0 %1183
        %1185 = vmax.xlane.f32.xlu0 %v790
        %v1186 = vpop.xlane.xlu0 %1185
        %1187 = vmax.xlane.f32.xlu0 %v794
        %v1188 = vpop.xlane.xlu0 %1187
        %1189 = vmax.xlane.f32.xlu0 %v800
        %v1190 = vpop.xlane.xlu0 %1189
        %1191 = vmax.xlane.f32.xlu0 %v804
        %v1192 = vpop.xlane.xlu0 %1191
        %1193 = vmax.xlane.f32.xlu0 %v810
        %v1194 = vpop.xlane.xlu0 %1193
        %1195 = vmax.xlane.f32.xlu0 %v814
        %v1196 = vpop.xlane.xlu0 %1195
        %1197 = vmax.xlane.f32.xlu0 %v820
        %v1198 = vpop.xlane.xlu0 %1197
        %1199 = vmax.xlane.f32.xlu0 %v824
        %v1200 = vpop.xlane.xlu0 %1199
        %vm1201 = vcmp.eq.f32.partialorder %v750, %v1170
        %vm1202 = vcmp.eq.f32.partialorder %v754, %v1172
        %vm1203 = vcmp.eq.f32.partialorder %v760, %v1174
        %vm1204 = vcmp.eq.f32.partialorder %v764, %v1176
        %vm1205 = vcmp.eq.f32.partialorder %v770, %v1178
        %vm1206 = vcmp.eq.f32.partialorder %v774, %v1180
        %vm1207 = vcmp.eq.f32.partialorder %v780, %v1182
        %vm1208 = vcmp.eq.f32.partialorder %v784, %v1184
        %vm1209 = vcmp.eq.f32.partialorder %v790, %v1186
        %vm1210 = vcmp.eq.f32.partialorder %v794, %v1188
        %vm1211 = vcmp.eq.f32.partialorder %v800, %v1190
        %vm1212 = vcmp.eq.f32.partialorder %v804, %v1192
        %vm1213 = vcmp.eq.f32.partialorder %v810, %v1194
        %vm1214 = vcmp.eq.f32.partialorder %v814, %v1196
        %vm1215 = vcmp.eq.f32.partialorder %v820, %v1198
        %vm1216 = vcmp.eq.f32.partialorder %v824, %v1200
        %v1217 = vsel %vm1201, %v1168, 128
        %v1218 = vsel %vm1202, %v1168, 128
        %v1219 = vsel %vm1203, %v1168, 128
        %v1220 = vsel %vm1204, %v1168, 128
        %v1221 = vsel %vm1205, %v1168, 128
        %v1222 = vsel %vm1206, %v1168, 128
        %v1223 = vsel %vm1207, %v1168, 128
        %v1224 = vsel %vm1208, %v1168, 128
        %v1225 = vsel %vm1209, %v1168, 128
        %v1226 = vsel %vm1210, %v1168, 128
        %v1227 = vsel %vm1211, %v1168, 128
        %v1228 = vsel %vm1212, %v1168, 128
        %v1229 = vsel %vm1213, %v1168, 128
        %v1230 = vsel %vm1214, %v1168, 128
        %v1231 = vsel %vm1215, %v1168, 128
        %v1232 = vsel %vm1216, %v1168, 128
        %v1233 = vand.u32 %v1217, 65535
        %v1234 = vshra.s32 %v1217, 16
        %v1235 = vcvt.s32.f32 %v1233
        %v1236 = vcvt.s32.f32 %v1234
        %1237 = vmin.xlane.f32.xlu0 %v1236
        %v1238 = vpop.xlane.xlu0 %1237
        %vm1239 = vcmp.eq.f32.partialorder %v1236, %v1238
        %v1240 = vsel %vm1239, %v1235, inf
        %1241 = vmin.xlane.f32.xlu0 %v1240
        %v1242 = vpop.xlane.xlu0 %1241
        %v1243 = vcvt.f32.s32 %v1242
        %v1244 = vcvt.f32.s32 %v1238
        %v1245 = vshll.u32 %v1244, 16
        %v1246 = vadd.s32 %v1245, %v1243
        %v1247 = vand.u32 %v1218, 65535
        %v1248 = vshra.s32 %v1218, 16
        %v1249 = vcvt.s32.f32 %v1247
        %v1250 = vcvt.s32.f32 %v1248
        %1251 = vmin.xlane.f32.xlu0 %v1250
        %v1252 = vpop.xlane.xlu0 %1251
        %vm1253 = vcmp.eq.f32.partialorder %v1250, %v1252
        %v1254 = vsel %vm1253, %v1249, inf
        %1255 = vmin.xlane.f32.xlu0 %v1254
        %v1256 = vpop.xlane.xlu0 %1255
        %v1257 = vcvt.f32.s32 %v1256
        %v1258 = vcvt.f32.s32 %v1252
        %v1259 = vshll.u32 %v1258, 16
        %v1260 = vadd.s32 %v1259, %v1257
        %v1261 = vand.u32 %v1219, 65535
        %v1262 = vshra.s32 %v1219, 16
        %v1263 = vcvt.s32.f32 %v1261
        %v1264 = vcvt.s32.f32 %v1262
        %1265 = vmin.xlane.f32.xlu0 %v1264
        %v1266 = vpop.xlane.xlu0 %1265
        %vm1267 = vcmp.eq.f32.partialorder %v1264, %v1266
        %v1268 = vsel %vm1267, %v1263, inf
        %1269 = vmin.xlane.f32.xlu0 %v1268
        %v1270 = vpop.xlane.xlu0 %1269
        %v1271 = vcvt.f32.s32 %v1270
        %v1272 = vcvt.f32.s32 %v1266
        %v1273 = vshll.u32 %v1272, 16
        %v1274 = vadd.s32 %v1273, %v1271
        %v1275 = vand.u32 %v1220, 65535
        %v1276 = vshra.s32 %v1220, 16
        %v1277 = vcvt.s32.f32 %v1275
        %v1278 = vcvt.s32.f32 %v1276
        %1279 = vmin.xlane.f32.xlu0 %v1278
        %v1280 = vpop.xlane.xlu0 %1279
        %vm1281 = vcmp.eq.f32.partialorder %v1278, %v1280
        %v1282 = vsel %vm1281, %v1277, inf
        %1283 = vmin.xlane.f32.xlu0 %v1282
        %v1284 = vpop.xlane.xlu0 %1283
        %v1285 = vcvt.f32.s32 %v1284
        %v1286 = vcvt.f32.s32 %v1280
        %v1287 = vshll.u32 %v1286, 16
        %v1288 = vadd.s32 %v1287, %v1285
        %v1289 = vand.u32 %v1221, 65535
        %v1290 = vshra.s32 %v1221, 16
        %v1291 = vcvt.s32.f32 %v1289
        %v1292 = vcvt.s32.f32 %v1290
        %1293 = vmin.xlane.f32.xlu0 %v1292
        %v1294 = vpop.xlane.xlu0 %1293
        %vm1295 = vcmp.eq.f32.partialorder %v1292, %v1294
        %v1296 = vsel %vm1295, %v1291, inf
        %1297 = vmin.xlane.f32.xlu0 %v1296
        %v1298 = vpop.xlane.xlu0 %1297
        %v1299 = vcvt.f32.s32 %v1298
        %v1300 = vcvt.f32.s32 %v1294
        %v1301 = vshll.u32 %v1300, 16
        %v1302 = vadd.s32 %v1301, %v1299
        %v1303 = vand.u32 %v1222, 65535
        %v1304 = vshra.s32 %v1222, 16
        %v1305 = vcvt.s32.f32 %v1303
        %v1306 = vcvt.s32.f32 %v1304
        %1307 = vmin.xlane.f32.xlu0 %v1306
        %v1308 = vpop.xlane.xlu0 %1307
        %vm1309 = vcmp.eq.f32.partialorder %v1306, %v1308
        %v1310 = vsel %vm1309, %v1305, inf
        %1311 = vmin.xlane.f32.xlu0 %v1310
        %v1312 = vpop.xlane.xlu0 %1311
        %v1313 = vcvt.f32.s32 %v1312
        %v1314 = vcvt.f32.s32 %v1308
        %v1315 = vshll.u32 %v1314, 16
        %v1316 = vadd.s32 %v1315, %v1313
        %v1317 = vand.u32 %v1223, 65535
        %v1318 = vshra.s32 %v1223, 16
        %v1319 = vcvt.s32.f32 %v1317
        %v1320 = vcvt.s32.f32 %v1318
        %1321 = vmin.xlane.f32.xlu0 %v1320
        %v1322 = vpop.xlane.xlu0 %1321
        %vm1323 = vcmp.eq.f32.partialorder %v1320, %v1322
        %v1324 = vsel %vm1323, %v1319, inf
        %1325 = vmin.xlane.f32.xlu0 %v1324
        %v1326 = vpop.xlane.xlu0 %1325
        %v1327 = vcvt.f32.s32 %v1326
        %v1328 = vcvt.f32.s32 %v1322
        %v1329 = vshll.u32 %v1328, 16
        %v1330 = vadd.s32 %v1329, %v1327
        %v1331 = vand.u32 %v1224, 65535
        %v1332 = vshra.s32 %v1224, 16
        %v1333 = vcvt.s32.f32 %v1331
        %v1334 = vcvt.s32.f32 %v1332
        %1335 = vmin.xlane.f32.xlu0 %v1334
        %v1336 = vpop.xlane.xlu0 %1335
        %vm1337 = vcmp.eq.f32.partialorder %v1334, %v1336
        %v1338 = vsel %vm1337, %v1333, inf
        %1339 = vmin.xlane.f32.xlu0 %v1338
        %v1340 = vpop.xlane.xlu0 %1339
        %v1341 = vcvt.f32.s32 %v1340
        %v1342 = vcvt.f32.s32 %v1336
        %v1343 = vshll.u32 %v1342, 16
        %v1344 = vadd.s32 %v1343, %v1341
        %v1345 = vand.u32 %v1225, 65535
        %v1346 = vshra.s32 %v1225, 16
        %v1347 = vcvt.s32.f32 %v1345
        %v1348 = vcvt.s32.f32 %v1346
        %1349 = vmin.xlane.f32.xlu0 %v1348
        %v1350 = vpop.xlane.xlu0 %1349
        %vm1351 = vcmp.eq.f32.partialorder %v1348, %v1350
        %v1352 = vsel %vm1351, %v1347, inf
        %1353 = vmin.xlane.f32.xlu0 %v1352
        %v1354 = vpop.xlane.xlu0 %1353
        %v1355 = vcvt.f32.s32 %v1354
        %v1356 = vcvt.f32.s32 %v1350
        %v1357 = vshll.u32 %v1356, 16
        %v1358 = vadd.s32 %v1357, %v1355
        %v1359 = vand.u32 %v1226, 65535
        %v1360 = vshra.s32 %v1226, 16
        %v1361 = vcvt.s32.f32 %v1359
        %v1362 = vcvt.s32.f32 %v1360
        %1363 = vmin.xlane.f32.xlu0 %v1362
        %v1364 = vpop.xlane.xlu0 %1363
        %vm1365 = vcmp.eq.f32.partialorder %v1362, %v1364
        %v1366 = vsel %vm1365, %v1361, inf
        %1367 = vmin.xlane.f32.xlu0 %v1366
        %v1368 = vpop.xlane.xlu0 %1367
        %v1369 = vcvt.f32.s32 %v1368
        %v1370 = vcvt.f32.s32 %v1364
        %v1371 = vshll.u32 %v1370, 16
        %v1372 = vadd.s32 %v1371, %v1369
        %v1373 = vand.u32 %v1227, 65535
        %v1374 = vshra.s32 %v1227, 16
        %v1375 = vcvt.s32.f32 %v1373
        %v1376 = vcvt.s32.f32 %v1374
        %1377 = vmin.xlane.f32.xlu0 %v1376
        %v1378 = vpop.xlane.xlu0 %1377
        %vm1379 = vcmp.eq.f32.partialorder %v1376, %v1378
        %v1380 = vsel %vm1379, %v1375, inf
        %1381 = vmin.xlane.f32.xlu0 %v1380
        %v1382 = vpop.xlane.xlu0 %1381
        %v1383 = vcvt.f32.s32 %v1382
        %v1384 = vcvt.f32.s32 %v1378
        %v1385 = vshll.u32 %v1384, 16
        %v1386 = vadd.s32 %v1385, %v1383
        %v1387 = vand.u32 %v1228, 65535
        %v1388 = vshra.s32 %v1228, 16
        %v1389 = vcvt.s32.f32 %v1387
        %v1390 = vcvt.s32.f32 %v1388
        %1391 = vmin.xlane.f32.xlu0 %v1390
        %v1392 = vpop.xlane.xlu0 %1391
        %vm1393 = vcmp.eq.f32.partialorder %v1390, %v1392
        %v1394 = vsel %vm1393, %v1389, inf
        %1395 = vmin.xlane.f32.xlu0 %v1394
        %v1396 = vpop.xlane.xlu0 %1395
        %v1397 = vcvt.f32.s32 %v1396
        %v1398 = vcvt.f32.s32 %v1392
        %v1399 = vshll.u32 %v1398, 16
        %v1400 = vadd.s32 %v1399, %v1397
        %v1401 = vand.u32 %v1229, 65535
        %v1402 = vshra.s32 %v1229, 16
        %v1403 = vcvt.s32.f32 %v1401
        %v1404 = vcvt.s32.f32 %v1402
        %1405 = vmin.xlane.f32.xlu0 %v1404
        %v1406 = vpop.xlane.xlu0 %1405
        %vm1407 = vcmp.eq.f32.partialorder %v1404, %v1406
        %v1408 = vsel %vm1407, %v1403, inf
        %1409 = vmin.xlane.f32.xlu0 %v1408
        %v1410 = vpop.xlane.xlu0 %1409
        %v1411 = vcvt.f32.s32 %v1410
        %v1412 = vcvt.f32.s32 %v1406
        %v1413 = vshll.u32 %v1412, 16
        %v1414 = vadd.s32 %v1413, %v1411
        %v1415 = vand.u32 %v1230, 65535
        %v1416 = vshra.s32 %v1230, 16
        %v1417 = vcvt.s32.f32 %v1415
        %v1418 = vcvt.s32.f32 %v1416
        %1419 = vmin.xlane.f32.xlu0 %v1418
        %v1420 = vpop.xlane.xlu0 %1419
        %vm1421 = vcmp.eq.f32.partialorder %v1418, %v1420
        %v1422 = vsel %vm1421, %v1417, inf
        %1423 = vmin.xlane.f32.xlu0 %v1422
        %v1424 = vpop.xlane.xlu0 %1423
        %v1425 = vcvt.f32.s32 %v1424
        %v1426 = vcvt.f32.s32 %v1420
        %v1427 = vshll.u32 %v1426, 16
        %v1428 = vadd.s32 %v1427, %v1425
        %v1429 = vand.u32 %v1231, 65535
        %v1430 = vshra.s32 %v1231, 16
        %v1431 = vcvt.s32.f32 %v1429
        %v1432 = vcvt.s32.f32 %v1430
        %1433 = vmin.xlane.f32.xlu0 %v1432
        %v1434 = vpop.xlane.xlu0 %1433
        %vm1435 = vcmp.eq.f32.partialorder %v1432, %v1434
        %v1436 = vsel %vm1435, %v1431, inf
        %1437 = vmin.xlane.f32.xlu0 %v1436
        %v1438 = vpop.xlane.xlu0 %1437
        %v1439 = vcvt.f32.s32 %v1438
        %v1440 = vcvt.f32.s32 %v1434
        %v1441 = vshll.u32 %v1440, 16
        %v1442 = vadd.s32 %v1441, %v1439
        %v1443 = vand.u32 %v1232, 65535
        %v1444 = vshra.s32 %v1232, 16
        %v1445 = vcvt.s32.f32 %v1443
        %v1446 = vcvt.s32.f32 %v1444
        %1447 = vmin.xlane.f32.xlu0 %v1446
        %v1448 = vpop.xlane.xlu0 %1447
        %vm1449 = vcmp.eq.f32.partialorder %v1446, %v1448
        %v1450 = vsel %vm1449, %v1445, inf
        %1451 = vmin.xlane.f32.xlu0 %v1450
        %v1452 = vpop.xlane.xlu0 %1451
        %v1453 = vcvt.f32.s32 %v1452
        %v1454 = vcvt.f32.s32 %v1448
        %v1455 = vshll.u32 %v1454, 16
        %v1456 = vadd.s32 %v1455, %v1453
        %vm1457 = vcmp.eq.s32.totalorder %v1168, %v1246
        %vm1458 = vcmp.eq.s32.totalorder %v1168, %v1260
        %vm1459 = vcmp.eq.s32.totalorder %v1168, %v1274
        %vm1460 = vcmp.eq.s32.totalorder %v1168, %v1288
        %vm1461 = vcmp.eq.s32.totalorder %v1168, %v1302
        %vm1462 = vcmp.eq.s32.totalorder %v1168, %v1316
        %vm1463 = vcmp.eq.s32.totalorder %v1168, %v1330
        %vm1464 = vcmp.eq.s32.totalorder %v1168, %v1344
        %vm1465 = vcmp.eq.s32.totalorder %v1168, %v1358
        %vm1466 = vcmp.eq.s32.totalorder %v1168, %v1372
        %vm1467 = vcmp.eq.s32.totalorder %v1168, %v1386
        %vm1468 = vcmp.eq.s32.totalorder %v1168, %v1400
        %vm1469 = vcmp.eq.s32.totalorder %v1168, %v1414
        %vm1470 = vcmp.eq.s32.totalorder %v1168, %v1428
        %vm1471 = vcmp.eq.s32.totalorder %v1168, %v1442
        %vm1472 = vcmp.eq.s32.totalorder %v1168, %v1456
        %v1473 = vsel %vm1457, 1, 0
        %v1474 = vsel %vm1458, 1, 0
        %v1475 = vsel %vm1459, 1, 0
        %v1476 = vsel %vm1460, 1, 0
        %v1477 = vsel %vm1461, 1, 0
        %v1478 = vsel %vm1462, 1, 0
        %v1479 = vsel %vm1463, 1, 0
        %v1480 = vsel %vm1464, 1, 0
        %v1481 = vsel %vm1465, 1, 0
        %v1482 = vsel %vm1466, 1, 0
        %v1483 = vsel %vm1467, 1, 0
        %v1484 = vsel %vm1468, 1, 0
        %v1485 = vsel %vm1469, 1, 0
        %v1486 = vsel %vm1470, 1, 0
        %v1487 = vsel %vm1471, 1, 0
        %v1488 = vsel %vm1472, 1, 0
        %v1489 = vcvt.s32.f32 %v1473
        %v1490 = vcvt.s32.f32 %v1474
        %v1491 = vcvt.s32.f32 %v1475
        %v1492 = vcvt.s32.f32 %v1476
        %v1493 = vcvt.s32.f32 %v1477
        %v1494 = vcvt.s32.f32 %v1478
        %v1495 = vcvt.s32.f32 %v1479
        %v1496 = vcvt.s32.f32 %v1480
        %v1497 = vcvt.s32.f32 %v1481
        %v1498 = vcvt.s32.f32 %v1482
        %v1499 = vcvt.s32.f32 %v1483
        %v1500 = vcvt.s32.f32 %v1484
        %v1501 = vcvt.s32.f32 %v1485
        %v1502 = vcvt.s32.f32 %v1486
        %v1503 = vcvt.s32.f32 %v1487
        %v1504 = vcvt.s32.f32 %v1488
        %v1505 = vpack.c.bf16 %v1490, %v1489
        %v1506 = vpack.c.bf16 %v1492, %v1491
        %v1507 = vpack.c.bf16 %v1494, %v1493
        %v1508 = vpack.c.bf16 %v1496, %v1495
        %v1509 = vpack.c.bf16 %v1498, %v1497
        %v1510 = vpack.c.bf16 %v1500, %v1499
        %v1511 = vpack.c.bf16 %v1502, %v1501
        %v1512 = vpack.c.bf16 %v1504, %v1503
        %1513 = vst [vmem:[#allocation2] sm:$0xff] %v1505
        %1514 = vst [vmem:[#allocation2 + $0x40] sm:$0xff] %v1506
        %1515 = vst [vmem:[#allocation2 + $0x80] sm:$0xff] %v1507
        %1516 = vst [vmem:[#allocation2 + $0xc0] sm:$0xff] %v1508
        %1517 = vst [vmem:[#allocation2 + $0x100] sm:$0xff] %v1509
        %1518 = vst [vmem:[#allocation2 + $0x140] sm:$0xff] %v1510
        %1519 = vst [vmem:[#allocation2 + $0x180] sm:$0xff] %v1511
        %1520 = vst [vmem:[#allocation2 + $0x1c0] sm:$0xff] %v1512
        %1521 = vmax.xlane.f32.xlu0 %v752
        %v1522 = vpop.xlane.xlu0 %1521
        %1523 = vmax.xlane.f32.xlu0 %v756
        %v1524 = vpop.xlane.xlu0 %1523
        %1525 = vmax.xlane.f32.xlu0 %v762
        %v1526 = vpop.xlane.xlu0 %1525
        %1527 = vmax.xlane.f32.xlu0 %v766
        %v1528 = vpop.xlane.xlu0 %1527
        %1529 = vmax.xlane.f32.xlu0 %v772
        %v1530 = vpop.xlane.xlu0 %1529
        %1531 = vmax.xlane.f32.xlu0 %v776
        %v1532 = vpop.xlane.xlu0 %1531
        %1533 = vmax.xlane.f32.xlu0 %v782
        %v1534 = vpop.xlane.xlu0 %1533
        %1535 = vmax.xlane.f32.xlu0 %v786
        %v1536 = vpop.xlane.xlu0 %1535
        %1537 = vmax.xlane.f32.xlu0 %v792
        %v1538 = vpop.xlane.xlu0 %1537
        %1539 = vmax.xlane.f32.xlu0 %v796
        %v1540 = vpop.xlane.xlu0 %1539
        %1541 = vmax.xlane.f32.xlu0 %v802
        %v1542 = vpop.xlane.xlu0 %1541
        %1543 = vmax.xlane.f32.xlu0 %v806
        %v1544 = vpop.xlane.xlu0 %1543
        %1545 = vmax.xlane.f32.xlu0 %v812
        %v1546 = vpop.xlane.xlu0 %1545
        %1547 = vmax.xlane.f32.xlu0 %v816
        %v1548 = vpop.xlane.xlu0 %1547
        %1549 = vmax.xlane.f32.xlu0 %v822
        %v1550 = vpop.xlane.xlu0 %1549
        %1551 = vmax.xlane.f32.xlu0 %v826
        %v1552 = vpop.xlane.xlu0 %1551
        %vm1553 = vcmp.eq.f32.partialorder %v752, %v1522
        %vm1554 = vcmp.eq.f32.partialorder %v756, %v1524
        %vm1555 = vcmp.eq.f32.partialorder %v762, %v1526
        %vm1556 = vcmp.eq.f32.partialorder %v766, %v1528
        %vm1557 = vcmp.eq.f32.partialorder %v772, %v1530
        %vm1558 = vcmp.eq.f32.partialorder %v776, %v1532
        %vm1559 = vcmp.eq.f32.partialorder %v782, %v1534
        %vm1560 = vcmp.eq.f32.partialorder %v786, %v1536
        %vm1561 = vcmp.eq.f32.partialorder %v792, %v1538
        %vm1562 = vcmp.eq.f32.partialorder %v796, %v1540
        %vm1563 = vcmp.eq.f32.partialorder %v802, %v1542
        %vm1564 = vcmp.eq.f32.partialorder %v806, %v1544
        %vm1565 = vcmp.eq.f32.partialorder %v812, %v1546
        %vm1566 = vcmp.eq.f32.partialorder %v816, %v1548
        %vm1567 = vcmp.eq.f32.partialorder %v822, %v1550
        %vm1568 = vcmp.eq.f32.partialorder %v826, %v1552
        %v1569 = vsel %vm1553, %v1168, 128
        %v1570 = vsel %vm1554, %v1168, 128
        %v1571 = vsel %vm1555, %v1168, 128
        %v1572 = vsel %vm1556, %v1168, 128
        %v1573 = vsel %vm1557, %v1168, 128
        %v1574 = vsel %vm1558, %v1168, 128
        %v1575 = vsel %vm1559, %v1168, 128
        %v1576 = vsel %vm1560, %v1168, 128
        %v1577 = vsel %vm1561, %v1168, 128
        %v1578 = vsel %vm1562, %v1168, 128
        %v1579 = vsel %vm1563, %v1168, 128
        %v1580 = vsel %vm1564, %v1168, 128
        %v1581 = vsel %vm1565, %v1168, 128
        %v1582 = vsel %vm1566, %v1168, 128
        %v1583 = vsel %vm1567, %v1168, 128
        %v1584 = vsel %vm1568, %v1168, 128
        %v1585 = vand.u32 %v1569, 65535
        %v1586 = vshra.s32 %v1569, 16
        %v1587 = vcvt.s32.f32 %v1585
        %v1588 = vcvt.s32.f32 %v1586
        %1589 = vmin.xlane.f32.xlu0 %v1588
        %v1590 = vpop.xlane.xlu0 %1589
        %vm1591 = vcmp.eq.f32.partialorder %v1588, %v1590
        %v1592 = vsel %vm1591, %v1587, inf
        %1593 = vmin.xlane.f32.xlu0 %v1592
        %v1594 = vpop.xlane.xlu0 %1593
        %v1595 = vcvt.f32.s32 %v1594
        %v1596 = vcvt.f32.s32 %v1590
        %v1597 = vshll.u32 %v1596, 16
        %v1598 = vadd.s32 %v1597, %v1595
        %v1599 = vand.u32 %v1570, 65535
        %v1600 = vshra.s32 %v1570, 16
        %v1601 = vcvt.s32.f32 %v1599
        %v1602 = vcvt.s32.f32 %v1600
        %1603 = vmin.xlane.f32.xlu0 %v1602
        %v1604 = vpop.xlane.xlu0 %1603
        %vm1605 = vcmp.eq.f32.partialorder %v1602, %v1604
        %v1606 = vsel %vm1605, %v1601, inf
        %1607 = vmin.xlane.f32.xlu0 %v1606
        %v1608 = vpop.xlane.xlu0 %1607
        %v1609 = vcvt.f32.s32 %v1608
        %v1610 = vcvt.f32.s32 %v1604
        %v1611 = vshll.u32 %v1610, 16
        %v1612 = vadd.s32 %v1611, %v1609
        %v1613 = vand.u32 %v1571, 65535
        %v1614 = vshra.s32 %v1571, 16
        %v1615 = vcvt.s32.f32 %v1613
        %v1616 = vcvt.s32.f32 %v1614
        %1617 = vmin.xlane.f32.xlu0 %v1616
        %v1618 = vpop.xlane.xlu0 %1617
        %vm1619 = vcmp.eq.f32.partialorder %v1616, %v1618
        %v1620 = vsel %vm1619, %v1615, inf
        %1621 = vmin.xlane.f32.xlu0 %v1620
        %v1622 = vpop.xlane.xlu0 %1621
        %v1623 = vcvt.f32.s32 %v1622
        %v1624 = vcvt.f32.s32 %v1618
        %v1625 = vshll.u32 %v1624, 16
        %v1626 = vadd.s32 %v1625, %v1623
        %v1627 = vand.u32 %v1572, 65535
        %v1628 = vshra.s32 %v1572, 16
        %v1629 = vcvt.s32.f32 %v1627
        %v1630 = vcvt.s32.f32 %v1628
        %1631 = vmin.xlane.f32.xlu0 %v1630
        %v1632 = vpop.xlane.xlu0 %1631
        %vm1633 = vcmp.eq.f32.partialorder %v1630, %v1632
        %v1634 = vsel %vm1633, %v1629, inf
        %1635 = vmin.xlane.f32.xlu0 %v1634
        %v1636 = vpop.xlane.xlu0 %1635
        %v1637 = vcvt.f32.s32 %v1636
        %v1638 = vcvt.f32.s32 %v1632
        %v1639 = vshll.u32 %v1638, 16
        %v1640 = vadd.s32 %v1639, %v1637
        %v1641 = vand.u32 %v1573, 65535
        %v1642 = vshra.s32 %v1573, 16
        %v1643 = vcvt.s32.f32 %v1641
        %v1644 = vcvt.s32.f32 %v1642
        %1645 = vmin.xlane.f32.xlu0 %v1644
        %v1646 = vpop.xlane.xlu0 %1645
        %vm1647 = vcmp.eq.f32.partialorder %v1644, %v1646
        %v1648 = vsel %vm1647, %v1643, inf
        %1649 = vmin.xlane.f32.xlu0 %v1648
        %v1650 = vpop.xlane.xlu0 %1649
        %v1651 = vcvt.f32.s32 %v1650
        %v1652 = vcvt.f32.s32 %v1646
        %v1653 = vshll.u32 %v1652, 16
        %v1654 = vadd.s32 %v1653, %v1651
        %v1655 = vand.u32 %v1574, 65535
        %v1656 = vshra.s32 %v1574, 16
        %v1657 = vcvt.s32.f32 %v1655
        %v1658 = vcvt.s32.f32 %v1656
        %1659 = vmin.xlane.f32.xlu0 %v1658
        %v1660 = vpop.xlane.xlu0 %1659
        %vm1661 = vcmp.eq.f32.partialorder %v1658, %v1660
        %v1662 = vsel %vm1661, %v1657, inf
        %1663 = vmin.xlane.f32.xlu0 %v1662
        %v1664 = vpop.xlane.xlu0 %1663
        %v1665 = vcvt.f32.s32 %v1664
        %v1666 = vcvt.f32.s32 %v1660
        %v1667 = vshll.u32 %v1666, 16
        %v1668 = vadd.s32 %v1667, %v1665
        %v1669 = vand.u32 %v1575, 65535
        %v1670 = vshra.s32 %v1575, 16
        %v1671 = vcvt.s32.f32 %v1669
        %v1672 = vcvt.s32.f32 %v1670
        %1673 = vmin.xlane.f32.xlu0 %v1672
        %v1674 = vpop.xlane.xlu0 %1673
        %vm1675 = vcmp.eq.f32.partialorder %v1672, %v1674
        %v1676 = vsel %vm1675, %v1671, inf
        %1677 = vmin.xlane.f32.xlu0 %v1676
        %v1678 = vpop.xlane.xlu0 %1677
        %v1679 = vcvt.f32.s32 %v1678
        %v1680 = vcvt.f32.s32 %v1674
        %v1681 = vshll.u32 %v1680, 16
        %v1682 = vadd.s32 %v1681, %v1679
        %v1683 = vand.u32 %v1576, 65535
        %v1684 = vshra.s32 %v1576, 16
        %v1685 = vcvt.s32.f32 %v1683
        %v1686 = vcvt.s32.f32 %v1684
        %1687 = vmin.xlane.f32.xlu0 %v1686
        %v1688 = vpop.xlane.xlu0 %1687
        %vm1689 = vcmp.eq.f32.partialorder %v1686, %v1688
        %v1690 = vsel %vm1689, %v1685, inf
        %1691 = vmin.xlane.f32.xlu0 %v1690
        %v1692 = vpop.xlane.xlu0 %1691
        %v1693 = vcvt.f32.s32 %v1692
        %v1694 = vcvt.f32.s32 %v1688
        %v1695 = vshll.u32 %v1694, 16
        %v1696 = vadd.s32 %v1695, %v1693
        %v1697 = vand.u32 %v1577, 65535
        %v1698 = vshra.s32 %v1577, 16
        %v1699 = vcvt.s32.f32 %v1697
        %v1700 = vcvt.s32.f32 %v1698
        %1701 = vmin.xlane.f32.xlu0 %v1700
        %v1702 = vpop.xlane.xlu0 %1701
        %vm1703 = vcmp.eq.f32.partialorder %v1700, %v1702
        %v1704 = vsel %vm1703, %v1699, inf
        %1705 = vmin.xlane.f32.xlu0 %v1704
        %v1706 = vpop.xlane.xlu0 %1705
        %v1707 = vcvt.f32.s32 %v1706
        %v1708 = vcvt.f32.s32 %v1702
        %v1709 = vshll.u32 %v1708, 16
        %v1710 = vadd.s32 %v1709, %v1707
        %v1711 = vand.u32 %v1578, 65535
        %v1712 = vshra.s32 %v1578, 16
        %v1713 = vcvt.s32.f32 %v1711
        %v1714 = vcvt.s32.f32 %v1712
        %1715 = vmin.xlane.f32.xlu0 %v1714
        %v1716 = vpop.xlane.xlu0 %1715
        %vm1717 = vcmp.eq.f32.partialorder %v1714, %v1716
        %v1718 = vsel %vm1717, %v1713, inf
        %1719 = vmin.xlane.f32.xlu0 %v1718
        %v1720 = vpop.xlane.xlu0 %1719
        %v1721 = vcvt.f32.s32 %v1720
        %v1722 = vcvt.f32.s32 %v1716
        %v1723 = vshll.u32 %v1722, 16
        %v1724 = vadd.s32 %v1723, %v1721
        %v1725 = vand.u32 %v1579, 65535
        %v1726 = vshra.s32 %v1579, 16
        %v1727 = vcvt.s32.f32 %v1725
        %v1728 = vcvt.s32.f32 %v1726
        %1729 = vmin.xlane.f32.xlu0 %v1728
        %v1730 = vpop.xlane.xlu0 %1729
        %vm1731 = vcmp.eq.f32.partialorder %v1728, %v1730
        %v1732 = vsel %vm1731, %v1727, inf
        %1733 = vmin.xlane.f32.xlu0 %v1732
        %v1734 = vpop.xlane.xlu0 %1733
        %v1735 = vcvt.f32.s32 %v1734
        %v1736 = vcvt.f32.s32 %v1730
        %v1737 = vshll.u32 %v1736, 16
        %v1738 = vadd.s32 %v1737, %v1735
        %v1739 = vand.u32 %v1580, 65535
        %v1740 = vshra.s32 %v1580, 16
        %v1741 = vcvt.s32.f32 %v1739
        %v1742 = vcvt.s32.f32 %v1740
        %1743 = vmin.xlane.f32.xlu0 %v1742
        %v1744 = vpop.xlane.xlu0 %1743
        %vm1745 = vcmp.eq.f32.partialorder %v1742, %v1744
        %v1746 = vsel %vm1745, %v1741, inf
        %1747 = vmin.xlane.f32.xlu0 %v1746
        %v1748 = vpop.xlane.xlu0 %1747
        %v1749 = vcvt.f32.s32 %v1748
        %v1750 = vcvt.f32.s32 %v1744
        %v1751 = vshll.u32 %v1750, 16
        %v1752 = vadd.s32 %v1751, %v1749
        %v1753 = vand.u32 %v1581, 65535
        %v1754 = vshra.s32 %v1581, 16
        %v1755 = vcvt.s32.f32 %v1753
        %v1756 = vcvt.s32.f32 %v1754
        %1757 = vmin.xlane.f32.xlu0 %v1756
        %v1758 = vpop.xlane.xlu0 %1757
        %vm1759 = vcmp.eq.f32.partialorder %v1756, %v1758
        %v1760 = vsel %vm1759, %v1755, inf
        %1761 = vmin.xlane.f32.xlu0 %v1760
        %v1762 = vpop.xlane.xlu0 %1761
        %v1763 = vcvt.f32.s32 %v1762
        %v1764 = vcvt.f32.s32 %v1758
        %v1765 = vshll.u32 %v1764, 16
        %v1766 = vadd.s32 %v1765, %v1763
        %v1767 = vand.u32 %v1582, 65535
        %v1768 = vshra.s32 %v1582, 16
        %v1769 = vcvt.s32.f32 %v1767
        %v1770 = vcvt.s32.f32 %v1768
        %1771 = vmin.xlane.f32.xlu0 %v1770
        %v1772 = vpop.xlane.xlu0 %1771
        %vm1773 = vcmp.eq.f32.partialorder %v1770, %v1772
        %v1774 = vsel %vm1773, %v1769, inf
        %1775 = vmin.xlane.f32.xlu0 %v1774
        %v1776 = vpop.xlane.xlu0 %1775
        %v1777 = vcvt.f32.s32 %v1776
        %v1778 = vcvt.f32.s32 %v1772
        %v1779 = vshll.u32 %v1778, 16
        %v1780 = vadd.s32 %v1779, %v1777
        %v1781 = vand.u32 %v1583, 65535
        %v1782 = vshra.s32 %v1583, 16
        %v1783 = vcvt.s32.f32 %v1781
        %v1784 = vcvt.s32.f32 %v1782
        %1785 = vmin.xlane.f32.xlu0 %v1784
        %v1786 = vpop.xlane.xlu0 %1785
        %vm1787 = vcmp.eq.f32.partialorder %v1784, %v1786
        %v1788 = vsel %vm1787, %v1783, inf
        %1789 = vmin.xlane.f32.xlu0 %v1788
        %v1790 = vpop.xlane.xlu0 %1789
        %v1791 = vcvt.f32.s32 %v1790
        %v1792 = vcvt.f32.s32 %v1786
        %v1793 = vshll.u32 %v1792, 16
        %v1794 = vadd.s32 %v1793, %v1791
        %v1795 = vand.u32 %v1584, 65535
        %v1796 = vshra.s32 %v1584, 16
        %v1797 = vcvt.s32.f32 %v1795
        %v1798 = vcvt.s32.f32 %v1796
        %1799 = vmin.xlane.f32.xlu0 %v1798
        %v1800 = vpop.xlane.xlu0 %1799
        %vm1801 = vcmp.eq.f32.partialorder %v1798, %v1800
        %v1802 = vsel %vm1801, %v1797, inf
        %1803 = vmin.xlane.f32.xlu0 %v1802
        %v1804 = vpop.xlane.xlu0 %1803
        %v1805 = vcvt.f32.s32 %v1804
        %v1806 = vcvt.f32.s32 %v1800
        %v1807 = vshll.u32 %v1806, 16
        %v1808 = vadd.s32 %v1807, %v1805
        %vm1809 = vcmp.eq.s32.totalorder %v1168, %v1598
        %vm1810 = vcmp.eq.s32.totalorder %v1168, %v1612
        %vm1811 = vcmp.eq.s32.totalorder %v1168, %v1626
        %vm1812 = vcmp.eq.s32.totalorder %v1168, %v1640
        %vm1813 = vcmp.eq.s32.totalorder %v1168, %v1654
        %vm1814 = vcmp.eq.s32.totalorder %v1168, %v1668
        %vm1815 = vcmp.eq.s32.totalorder %v1168, %v1682
        %vm1816 = vcmp.eq.s32.totalorder %v1168, %v1696
        %vm1817 = vcmp.eq.s32.totalorder %v1168, %v1710
        %vm1818 = vcmp.eq.s32.totalorder %v1168, %v1724
        %vm1819 = vcmp.eq.s32.totalorder %v1168, %v1738
        %vm1820 = vcmp.eq.s32.totalorder %v1168, %v1752
        %vm1821 = vcmp.eq.s32.totalorder %v1168, %v1766
        %vm1822 = vcmp.eq.s32.totalorder %v1168, %v1780
        %vm1823 = vcmp.eq.s32.totalorder %v1168, %v1794
        %vm1824 = vcmp.eq.s32.totalorder %v1168, %v1808
        %v1825 = vsel %vm1809, 1, 0
        %v1826 = vsel %vm1810, 1, 0
        %v1827 = vsel %vm1811, 1, 0
        %v1828 = vsel %vm1812, 1, 0
        %v1829 = vsel %vm1813, 1, 0
        %v1830 = vsel %vm1814, 1, 0
        %v1831 = vsel %vm1815, 1, 0
        %v1832 = vsel %vm1816, 1, 0
        %v1833 = vsel %vm1817, 1, 0
        %v1834 = vsel %vm1818, 1, 0
        %v1835 = vsel %vm1819, 1, 0
        %v1836 = vsel %vm1820, 1, 0
        %v1837 = vsel %vm1821, 1, 0
        %v1838 = vsel %vm1822, 1, 0
        %v1839 = vsel %vm1823, 1, 0
        %v1840 = vsel %vm1824, 1, 0
        %v1841 = vcvt.s32.f32 %v1825
        %v1842 = vcvt.s32.f32 %v1826
        %v1843 = vcvt.s32.f32 %v1827
        %v1844 = vcvt.s32.f32 %v1828
        %v1845 = vcvt.s32.f32 %v1829
        %v1846 = vcvt.s32.f32 %v1830
        %v1847 = vcvt.s32.f32 %v1831
        %v1848 = vcvt.s32.f32 %v1832
        %v1849 = vcvt.s32.f32 %v1833
        %v1850 = vcvt.s32.f32 %v1834
        %v1851 = vcvt.s32.f32 %v1835
        %v1852 = vcvt.s32.f32 %v1836
        %v1853 = vcvt.s32.f32 %v1837
        %v1854 = vcvt.s32.f32 %v1838
        %v1855 = vcvt.s32.f32 %v1839
        %v1856 = vcvt.s32.f32 %v1840
        %v1857 = vpack.c.bf16 %v1842, %v1841
        %v1858 = vpack.c.bf16 %v1844, %v1843
        %v1859 = vpack.c.bf16 %v1846, %v1845
        %v1860 = vpack.c.bf16 %v1848, %v1847
        %v1861 = vpack.c.bf16 %v1850, %v1849
        %v1862 = vpack.c.bf16 %v1852, %v1851
        %v1863 = vpack.c.bf16 %v1854, %v1853
        %v1864 = vpack.c.bf16 %v1856, %v1855
        %1865 = vst [vmem:[#allocation2 + $0x8] sm:$0xff] %v1857
        %1866 = vst [vmem:[#allocation2 + $0x48] sm:$0xff] %v1858
        %1867 = vst [vmem:[#allocation2 + $0x88] sm:$0xff] %v1859
        %1868 = vst [vmem:[#allocation2 + $0xc8] sm:$0xff] %v1860
        %1869 = vst [vmem:[#allocation2 + $0x108] sm:$0xff] %v1861
        %1870 = vst [vmem:[#allocation2 + $0x148] sm:$0xff] %v1862
        %1871 = vst [vmem:[#allocation2 + $0x188] sm:$0xff] %v1863
        %1872 = vst [vmem:[#allocation2 + $0x1c8] sm:$0xff] %v1864
        %1873 = vmax.xlane.f32.xlu0 %v863
        %v1874 = vpop.xlane.xlu0 %1873
        %1875 = vmax.xlane.f32.xlu0 %v867
        %v1876 = vpop.xlane.xlu0 %1875
        %1877 = vmax.xlane.f32.xlu0 %v873
        %v1878 = vpop.xlane.xlu0 %1877
        %1879 = vmax.xlane.f32.xlu0 %v877
        %v1880 = vpop.xlane.xlu0 %1879
        %1881 = vmax.xlane.f32.xlu0 %v883
        %v1882 = vpop.xlane.xlu0 %1881
        %1883 = vmax.xlane.f32.xlu0 %v887
        %v1884 = vpop.xlane.xlu0 %1883
        %1885 = vmax.xlane.f32.xlu0 %v893
        %v1886 = vpop.xlane.xlu0 %1885
        %1887 = vmax.xlane.f32.xlu0 %v897
        %v1888 = vpop.xlane.xlu0 %1887
        %1889 = vmax.xlane.f32.xlu0 %v903
        %v1890 = vpop.xlane.xlu0 %1889
        %1891 = vmax.xlane.f32.xlu0 %v907
        %v1892 = vpop.xlane.xlu0 %1891
        %1893 = vmax.xlane.f32.xlu0 %v913
        %v1894 = vpop.xlane.xlu0 %1893
        %1895 = vmax.xlane.f32.xlu0 %v917
        %v1896 = vpop.xlane.xlu0 %1895
        %1897 = vmax.xlane.f32.xlu0 %v923
        %v1898 = vpop.xlane.xlu0 %1897
        %1899 = vmax.xlane.f32.xlu0 %v927
        %v1900 = vpop.xlane.xlu0 %1899
        %1901 = vmax.xlane.f32.xlu0 %v933
        %v1902 = vpop.xlane.xlu0 %1901
        %1903 = vmax.xlane.f32.xlu0 %v937
        %v1904 = vpop.xlane.xlu0 %1903
        %vm1905 = vcmp.eq.f32.partialorder %v863, %v1874
        %vm1906 = vcmp.eq.f32.partialorder %v867, %v1876
        %vm1907 = vcmp.eq.f32.partialorder %v873, %v1878
        %vm1908 = vcmp.eq.f32.partialorder %v877, %v1880
        %vm1909 = vcmp.eq.f32.partialorder %v883, %v1882
        %vm1910 = vcmp.eq.f32.partialorder %v887, %v1884
        %vm1911 = vcmp.eq.f32.partialorder %v893, %v1886
        %vm1912 = vcmp.eq.f32.partialorder %v897, %v1888
        %vm1913 = vcmp.eq.f32.partialorder %v903, %v1890
        %vm1914 = vcmp.eq.f32.partialorder %v907, %v1892
        %vm1915 = vcmp.eq.f32.partialorder %v913, %v1894
        %vm1916 = vcmp.eq.f32.partialorder %v917, %v1896
        %vm1917 = vcmp.eq.f32.partialorder %v923, %v1898
        %vm1918 = vcmp.eq.f32.partialorder %v927, %v1900
        %vm1919 = vcmp.eq.f32.partialorder %v933, %v1902
        %vm1920 = vcmp.eq.f32.partialorder %v937, %v1904
        %v1921 = vsel %vm1905, %v1168, 128
        %v1922 = vsel %vm1906, %v1168, 128
        %v1923 = vsel %vm1907, %v1168, 128
        %v1924 = vsel %vm1908, %v1168, 128
        %v1925 = vsel %vm1909, %v1168, 128
        %v1926 = vsel %vm1910, %v1168, 128
        %v1927 = vsel %vm1911, %v1168, 128
        %v1928 = vsel %vm1912, %v1168, 128
        %v1929 = vsel %vm1913, %v1168, 128
        %v1930 = vsel %vm1914, %v1168, 128
        %v1931 = vsel %vm1915, %v1168, 128
        %v1932 = vsel %vm1916, %v1168, 128
        %v1933 = vsel %vm1917, %v1168, 128
        %v1934 = vsel %vm1918, %v1168, 128
        %v1935 = vsel %vm1919, %v1168, 128
        %v1936 = vsel %vm1920, %v1168, 128
        %v1937 = vand.u32 %v1921, 65535
        %v1938 = vshra.s32 %v1921, 16
        %v1939 = vcvt.s32.f32 %v1937
        %v1940 = vcvt.s32.f32 %v1938
        %1941 = vmin.xlane.f32.xlu0 %v1940
        %v1942 = vpop.xlane.xlu0 %1941
        %vm1943 = vcmp.eq.f32.partialorder %v1940, %v1942
        %v1944 = vsel %vm1943, %v1939, inf
        %1945 = vmin.xlane.f32.xlu0 %v1944
        %v1946 = vpop.xlane.xlu0 %1945
        %v1947 = vcvt.f32.s32 %v1946
        %v1948 = vcvt.f32.s32 %v1942
        %v1949 = vshll.u32 %v1948, 16
        %v1950 = vadd.s32 %v1949, %v1947
        %v1951 = vand.u32 %v1922, 65535
        %v1952 = vshra.s32 %v1922, 16
        %v1953 = vcvt.s32.f32 %v1951
        %v1954 = vcvt.s32.f32 %v1952
        %1955 = vmin.xlane.f32.xlu0 %v1954
        %v1956 = vpop.xlane.xlu0 %1955
        %vm1957 = vcmp.eq.f32.partialorder %v1954, %v1956
        %v1958 = vsel %vm1957, %v1953, inf
        %1959 = vmin.xlane.f32.xlu0 %v1958
        %v1960 = vpop.xlane.xlu0 %1959
        %v1961 = vcvt.f32.s32 %v1960
        %v1962 = vcvt.f32.s32 %v1956
        %v1963 = vshll.u32 %v1962, 16
        %v1964 = vadd.s32 %v1963, %v1961
        %v1965 = vand.u32 %v1923, 65535
        %v1966 = vshra.s32 %v1923, 16
        %v1967 = vcvt.s32.f32 %v1965
        %v1968 = vcvt.s32.f32 %v1966
        %1969 = vmin.xlane.f32.xlu0 %v1968
        %v1970 = vpop.xlane.xlu0 %1969
        %vm1971 = vcmp.eq.f32.partialorder %v1968, %v1970
        %v1972 = vsel %vm1971, %v1967, inf
        %1973 = vmin.xlane.f32.xlu0 %v1972
        %v1974 = vpop.xlane.xlu0 %1973
        %v1975 = vcvt.f32.s32 %v1974
        %v1976 = vcvt.f32.s32 %v1970
        %v1977 = vshll.u32 %v1976, 16
        %v1978 = vadd.s32 %v1977, %v1975
        %v1979 = vand.u32 %v1924, 65535
        %v1980 = vshra.s32 %v1924, 16
        %v1981 = vcvt.s32.f32 %v1979
        %v1982 = vcvt.s32.f32 %v1980
        %1983 = vmin.xlane.f32.xlu0 %v1982
        %v1984 = vpop.xlane.xlu0 %1983
        %vm1985 = vcmp.eq.f32.partialorder %v1982, %v1984
        %v1986 = vsel %vm1985, %v1981, inf
        %1987 = vmin.xlane.f32.xlu0 %v1986
        %v1988 = vpop.xlane.xlu0 %1987
        %v1989 = vcvt.f32.s32 %v1988
        %v1990 = vcvt.f32.s32 %v1984
        %v1991 = vshll.u32 %v1990, 16
        %v1992 = vadd.s32 %v1991, %v1989
        %v1993 = vand.u32 %v1925, 65535
        %v1994 = vshra.s32 %v1925, 16
        %v1995 = vcvt.s32.f32 %v1993
        %v1996 = vcvt.s32.f32 %v1994
        %1997 = vmin.xlane.f32.xlu0 %v1996
        %v1998 = vpop.xlane.xlu0 %1997
        %vm1999 = vcmp.eq.f32.partialorder %v1996, %v1998
        %v2000 = vsel %vm1999, %v1995, inf
        %2001 = vmin.xlane.f32.xlu0 %v2000
        %v2002 = vpop.xlane.xlu0 %2001
        %v2003 = vcvt.f32.s32 %v2002
        %v2004 = vcvt.f32.s32 %v1998
        %v2005 = vshll.u32 %v2004, 16
        %v2006 = vadd.s32 %v2005, %v2003
        %v2007 = vand.u32 %v1926, 65535
        %v2008 = vshra.s32 %v1926, 16
        %v2009 = vcvt.s32.f32 %v2007
        %v2010 = vcvt.s32.f32 %v2008
        %2011 = vmin.xlane.f32.xlu0 %v2010
        %v2012 = vpop.xlane.xlu0 %2011
        %vm2013 = vcmp.eq.f32.partialorder %v2010, %v2012
        %v2014 = vsel %vm2013, %v2009, inf
        %2015 = vmin.xlane.f32.xlu0 %v2014
        %v2016 = vpop.xlane.xlu0 %2015
        %v2017 = vcvt.f32.s32 %v2016
        %v2018 = vcvt.f32.s32 %v2012
        %v2019 = vshll.u32 %v2018, 16
        %v2020 = vadd.s32 %v2019, %v2017
        %v2021 = vand.u32 %v1927, 65535
        %v2022 = vshra.s32 %v1927, 16
        %v2023 = vcvt.s32.f32 %v2021
        %v2024 = vcvt.s32.f32 %v2022
        %2025 = vmin.xlane.f32.xlu0 %v2024
        %v2026 = vpop.xlane.xlu0 %2025
        %vm2027 = vcmp.eq.f32.partialorder %v2024, %v2026
        %v2028 = vsel %vm2027, %v2023, inf
        %2029 = vmin.xlane.f32.xlu0 %v2028
        %v2030 = vpop.xlane.xlu0 %2029
        %v2031 = vcvt.f32.s32 %v2030
        %v2032 = vcvt.f32.s32 %v2026
        %v2033 = vshll.u32 %v2032, 16
        %v2034 = vadd.s32 %v2033, %v2031
        %v2035 = vand.u32 %v1928, 65535
        %v2036 = vshra.s32 %v1928, 16
        %v2037 = vcvt.s32.f32 %v2035
        %v2038 = vcvt.s32.f32 %v2036
        %2039 = vmin.xlane.f32.xlu0 %v2038
        %v2040 = vpop.xlane.xlu0 %2039
        %vm2041 = vcmp.eq.f32.partialorder %v2038, %v2040
        %v2042 = vsel %vm2041, %v2037, inf
        %2043 = vmin.xlane.f32.xlu0 %v2042
        %v2044 = vpop.xlane.xlu0 %2043
        %v2045 = vcvt.f32.s32 %v2044
        %v2046 = vcvt.f32.s32 %v2040
        %v2047 = vshll.u32 %v2046, 16
        %v2048 = vadd.s32 %v2047, %v2045
        %v2049 = vand.u32 %v1929, 65535
        %v2050 = vshra.s32 %v1929, 16
        %v2051 = vcvt.s32.f32 %v2049
        %v2052 = vcvt.s32.f32 %v2050
        %2053 = vmin.xlane.f32.xlu0 %v2052
        %v2054 = vpop.xlane.xlu0 %2053
        %vm2055 = vcmp.eq.f32.partialorder %v2052, %v2054
        %v2056 = vsel %vm2055, %v2051, inf
        %2057 = vmin.xlane.f32.xlu0 %v2056
        %v2058 = vpop.xlane.xlu0 %2057
        %v2059 = vcvt.f32.s32 %v2058
        %v2060 = vcvt.f32.s32 %v2054
        %v2061 = vshll.u32 %v2060, 16
        %v2062 = vadd.s32 %v2061, %v2059
        %v2063 = vand.u32 %v1930, 65535
        %v2064 = vshra.s32 %v1930, 16
        %v2065 = vcvt.s32.f32 %v2063
        %v2066 = vcvt.s32.f32 %v2064
        %2067 = vmin.xlane.f32.xlu0 %v2066
        %v2068 = vpop.xlane.xlu0 %2067
        %vm2069 = vcmp.eq.f32.partialorder %v2066, %v2068
        %v2070 = vsel %vm2069, %v2065, inf
        %2071 = vmin.xlane.f32.xlu0 %v2070
        %v2072 = vpop.xlane.xlu0 %2071
        %v2073 = vcvt.f32.s32 %v2072
        %v2074 = vcvt.f32.s32 %v2068
        %v2075 = vshll.u32 %v2074, 16
        %v2076 = vadd.s32 %v2075, %v2073
        %v2077 = vand.u32 %v1931, 65535
        %v2078 = vshra.s32 %v1931, 16
        %v2079 = vcvt.s32.f32 %v2077
        %v2080 = vcvt.s32.f32 %v2078
        %2081 = vmin.xlane.f32.xlu0 %v2080
        %v2082 = vpop.xlane.xlu0 %2081
        %vm2083 = vcmp.eq.f32.partialorder %v2080, %v2082
        %v2084 = vsel %vm2083, %v2079, inf
        %2085 = vmin.xlane.f32.xlu0 %v2084
        %v2086 = vpop.xlane.xlu0 %2085
        %v2087 = vcvt.f32.s32 %v2086
        %v2088 = vcvt.f32.s32 %v2082
        %v2089 = vshll.u32 %v2088, 16
        %v2090 = vadd.s32 %v2089, %v2087
        %v2091 = vand.u32 %v1932, 65535
        %v2092 = vshra.s32 %v1932, 16
        %v2093 = vcvt.s32.f32 %v2091
        %v2094 = vcvt.s32.f32 %v2092
        %2095 = vmin.xlane.f32.xlu0 %v2094
        %v2096 = vpop.xlane.xlu0 %2095
        %vm2097 = vcmp.eq.f32.partialorder %v2094, %v2096
        %v2098 = vsel %vm2097, %v2093, inf
        %2099 = vmin.xlane.f32.xlu0 %v2098
        %v2100 = vpop.xlane.xlu0 %2099
        %v2101 = vcvt.f32.s32 %v2100
        %v2102 = vcvt.f32.s32 %v2096
        %v2103 = vshll.u32 %v2102, 16
        %v2104 = vadd.s32 %v2103, %v2101
        %v2105 = vand.u32 %v1933, 65535
        %v2106 = vshra.s32 %v1933, 16
        %v2107 = vcvt.s32.f32 %v2105
        %v2108 = vcvt.s32.f32 %v2106
        %2109 = vmin.xlane.f32.xlu0 %v2108
        %v2110 = vpop.xlane.xlu0 %2109
        %vm2111 = vcmp.eq.f32.partialorder %v2108, %v2110
        %v2112 = vsel %vm2111, %v2107, inf
        %2113 = vmin.xlane.f32.xlu0 %v2112
        %v2114 = vpop.xlane.xlu0 %2113
        %v2115 = vcvt.f32.s32 %v2114
        %v2116 = vcvt.f32.s32 %v2110
        %v2117 = vshll.u32 %v2116, 16
        %v2118 = vadd.s32 %v2117, %v2115
        %v2119 = vand.u32 %v1934, 65535
        %v2120 = vshra.s32 %v1934, 16
        %v2121 = vcvt.s32.f32 %v2119
        %v2122 = vcvt.s32.f32 %v2120
        %2123 = vmin.xlane.f32.xlu0 %v2122
        %v2124 = vpop.xlane.xlu0 %2123
        %vm2125 = vcmp.eq.f32.partialorder %v2122, %v2124
        %v2126 = vsel %vm2125, %v2121, inf
        %2127 = vmin.xlane.f32.xlu0 %v2126
        %v2128 = vpop.xlane.xlu0 %2127
        %v2129 = vcvt.f32.s32 %v2128
        %v2130 = vcvt.f32.s32 %v2124
        %v2131 = vshll.u32 %v2130, 16
        %v2132 = vadd.s32 %v2131, %v2129
        %v2133 = vand.u32 %v1935, 65535
        %v2134 = vshra.s32 %v1935, 16
        %v2135 = vcvt.s32.f32 %v2133
        %v2136 = vcvt.s32.f32 %v2134
        %2137 = vmin.xlane.f32.xlu0 %v2136
        %v2138 = vpop.xlane.xlu0 %2137
        %vm2139 = vcmp.eq.f32.partialorder %v2136, %v2138
        %v2140 = vsel %vm2139, %v2135, inf
        %2141 = vmin.xlane.f32.xlu0 %v2140
        %v2142 = vpop.xlane.xlu0 %2141
        %v2143 = vcvt.f32.s32 %v2142
        %v2144 = vcvt.f32.s32 %v2138
        %v2145 = vshll.u32 %v2144, 16
        %v2146 = vadd.s32 %v2145, %v2143
        %v2147 = vand.u32 %v1936, 65535
        %v2148 = vshra.s32 %v1936, 16
        %v2149 = vcvt.s32.f32 %v2147
        %v2150 = vcvt.s32.f32 %v2148
        %2151 = vmin.xlane.f32.xlu0 %v2150
        %v2152 = vpop.xlane.xlu0 %2151
        %vm2153 = vcmp.eq.f32.partialorder %v2150, %v2152
        %v2154 = vsel %vm2153, %v2149, inf
        %2155 = vmin.xlane.f32.xlu0 %v2154
        %v2156 = vpop.xlane.xlu0 %2155
        %v2157 = vcvt.f32.s32 %v2156
        %v2158 = vcvt.f32.s32 %v2152
        %v2159 = vshll.u32 %v2158, 16
        %v2160 = vadd.s32 %v2159, %v2157
        %vm2161 = vcmp.eq.s32.totalorder %v1168, %v1950
        %vm2162 = vcmp.eq.s32.totalorder %v1168, %v1964
        %vm2163 = vcmp.eq.s32.totalorder %v1168, %v1978
        %vm2164 = vcmp.eq.s32.totalorder %v1168, %v1992
        %vm2165 = vcmp.eq.s32.totalorder %v1168, %v2006
        %vm2166 = vcmp.eq.s32.totalorder %v1168, %v2020
        %vm2167 = vcmp.eq.s32.totalorder %v1168, %v2034
        %vm2168 = vcmp.eq.s32.totalorder %v1168, %v2048
        %vm2169 = vcmp.eq.s32.totalorder %v1168, %v2062
        %vm2170 = vcmp.eq.s32.totalorder %v1168, %v2076
        %vm2171 = vcmp.eq.s32.totalorder %v1168, %v2090
        %vm2172 = vcmp.eq.s32.totalorder %v1168, %v2104
        %vm2173 = vcmp.eq.s32.totalorder %v1168, %v2118
        %vm2174 = vcmp.eq.s32.totalorder %v1168, %v2132
        %vm2175 = vcmp.eq.s32.totalorder %v1168, %v2146
        %vm2176 = vcmp.eq.s32.totalorder %v1168, %v2160
        %v2177 = vsel %vm2161, 1, 0
        %v2178 = vsel %vm2162, 1, 0
        %v2179 = vsel %vm2163, 1, 0
        %v2180 = vsel %vm2164, 1, 0
        %v2181 = vsel %vm2165, 1, 0
        %v2182 = vsel %vm2166, 1, 0
        %v2183 = vsel %vm2167, 1, 0
        %v2184 = vsel %vm2168, 1, 0
        %v2185 = vsel %vm2169, 1, 0
        %v2186 = vsel %vm2170, 1, 0
        %v2187 = vsel %vm2171, 1, 0
        %v2188 = vsel %vm2172, 1, 0
        %v2189 = vsel %vm2173, 1, 0
        %v2190 = vsel %vm2174, 1, 0
        %v2191 = vsel %vm2175, 1, 0
        %v2192 = vsel %vm2176, 1, 0
        %v2193 = vcvt.s32.f32 %v2177
        %v2194 = vcvt.s32.f32 %v2178
        %v2195 = vcvt.s32.f32 %v2179
        %v2196 = vcvt.s32.f32 %v2180
        %v2197 = vcvt.s32.f32 %v2181
        %v2198 = vcvt.s32.f32 %v2182
        %v2199 = vcvt.s32.f32 %v2183
        %v2200 = vcvt.s32.f32 %v2184
        %v2201 = vcvt.s32.f32 %v2185
        %v2202 = vcvt.s32.f32 %v2186
        %v2203 = vcvt.s32.f32 %v2187
        %v2204 = vcvt.s32.f32 %v2188
        %v2205 = vcvt.s32.f32 %v2189
        %v2206 = vcvt.s32.f32 %v2190
        %v2207 = vcvt.s32.f32 %v2191
        %v2208 = vcvt.s32.f32 %v2192
        %v2209 = vpack.c.bf16 %v2194, %v2193
        %v2210 = vpack.c.bf16 %v2196, %v2195
        %v2211 = vpack.c.bf16 %v2198, %v2197
        %v2212 = vpack.c.bf16 %v2200, %v2199
        %v2213 = vpack.c.bf16 %v2202, %v2201
        %v2214 = vpack.c.bf16 %v2204, %v2203
        %v2215 = vpack.c.bf16 %v2206, %v2205
        %v2216 = vpack.c.bf16 %v2208, %v2207
        %2217 = vst [vmem:[#allocation2 + $0x10] sm:$0xff] %v2209
        %2218 = vst [vmem:[#allocation2 + $0x50] sm:$0xff] %v2210
        %2219 = vst [vmem:[#allocation2 + $0x90] sm:$0xff] %v2211
        %2220 = vst [vmem:[#allocation2 + $0xd0] sm:$0xff] %v2212
        %2221 = vst [vmem:[#allocation2 + $0x110] sm:$0xff] %v2213
        %2222 = vst [vmem:[#allocation2 + $0x150] sm:$0xff] %v2214
        %2223 = vst [vmem:[#allocation2 + $0x190] sm:$0xff] %v2215
        %2224 = vst [vmem:[#allocation2 + $0x1d0] sm:$0xff] %v2216
        %2225 = vmax.xlane.f32.xlu0 %v865
        %v2226 = vpop.xlane.xlu0 %2225
        %2227 = vmax.xlane.f32.xlu0 %v869
        %v2228 = vpop.xlane.xlu0 %2227
        %2229 = vmax.xlane.f32.xlu0 %v875
        %v2230 = vpop.xlane.xlu0 %2229
        %2231 = vmax.xlane.f32.xlu0 %v879
        %v2232 = vpop.xlane.xlu0 %2231
        %2233 = vmax.xlane.f32.xlu0 %v885
        %v2234 = vpop.xlane.xlu0 %2233
        %2235 = vmax.xlane.f32.xlu0 %v889
        %v2236 = vpop.xlane.xlu0 %2235
        %2237 = vmax.xlane.f32.xlu0 %v895
        %v2238 = vpop.xlane.xlu0 %2237
        %2239 = vmax.xlane.f32.xlu0 %v899
        %v2240 = vpop.xlane.xlu0 %2239
        %2241 = vmax.xlane.f32.xlu0 %v905
        %v2242 = vpop.xlane.xlu0 %2241
        %2243 = vmax.xlane.f32.xlu0 %v909
        %v2244 = vpop.xlane.xlu0 %2243
        %2245 = vmax.xlane.f32.xlu0 %v915
        %v2246 = vpop.xlane.xlu0 %2245
        %2247 = vmax.xlane.f32.xlu0 %v919
        %v2248 = vpop.xlane.xlu0 %2247
        %2249 = vmax.xlane.f32.xlu0 %v925
        %v2250 = vpop.xlane.xlu0 %2249
        %2251 = vmax.xlane.f32.xlu0 %v929
        %v2252 = vpop.xlane.xlu0 %2251
        %2253 = vmax.xlane.f32.xlu0 %v935
        %v2254 = vpop.xlane.xlu0 %2253
        %2255 = vmax.xlane.f32.xlu0 %v939
        %v2256 = vpop.xlane.xlu0 %2255
        %vm2257 = vcmp.eq.f32.partialorder %v865, %v2226
        %vm2258 = vcmp.eq.f32.partialorder %v869, %v2228
        %vm2259 = vcmp.eq.f32.partialorder %v875, %v2230
        %vm2260 = vcmp.eq.f32.partialorder %v879, %v2232
        %vm2261 = vcmp.eq.f32.partialorder %v885, %v2234
        %vm2262 = vcmp.eq.f32.partialorder %v889, %v2236
        %vm2263 = vcmp.eq.f32.partialorder %v895, %v2238
        %vm2264 = vcmp.eq.f32.partialorder %v899, %v2240
        %vm2265 = vcmp.eq.f32.partialorder %v905, %v2242
        %vm2266 = vcmp.eq.f32.partialorder %v909, %v2244
        %vm2267 = vcmp.eq.f32.partialorder %v915, %v2246
        %vm2268 = vcmp.eq.f32.partialorder %v919, %v2248
        %vm2269 = vcmp.eq.f32.partialorder %v925, %v2250
        %vm2270 = vcmp.eq.f32.partialorder %v929, %v2252
        %vm2271 = vcmp.eq.f32.partialorder %v935, %v2254
        %vm2272 = vcmp.eq.f32.partialorder %v939, %v2256
        %v2273 = vsel %vm2257, %v1168, 128
        %v2274 = vsel %vm2258, %v1168, 128
        %v2275 = vsel %vm2259, %v1168, 128
        %v2276 = vsel %vm2260, %v1168, 128
        %v2277 = vsel %vm2261, %v1168, 128
        %v2278 = vsel %vm2262, %v1168, 128
        %v2279 = vsel %vm2263, %v1168, 128
        %v2280 = vsel %vm2264, %v1168, 128
        %v2281 = vsel %vm2265, %v1168, 128
        %v2282 = vsel %vm2266, %v1168, 128
        %v2283 = vsel %vm2267, %v1168, 128
        %v2284 = vsel %vm2268, %v1168, 128
        %v2285 = vsel %vm2269, %v1168, 128
        %v2286 = vsel %vm2270, %v1168, 128
        %v2287 = vsel %vm2271, %v1168, 128
        %v2288 = vsel %vm2272, %v1168, 128
        %v2289 = vand.u32 %v2273, 65535
        %v2290 = vshra.s32 %v2273, 16
        %v2291 = vcvt.s32.f32 %v2289
        %v2292 = vcvt.s32.f32 %v2290
        %2293 = vmin.xlane.f32.xlu0 %v2292
        %v2294 = vpop.xlane.xlu0 %2293
        %vm2295 = vcmp.eq.f32.partialorder %v2292, %v2294
        %v2296 = vsel %vm2295, %v2291, inf
        %2297 = vmin.xlane.f32.xlu0 %v2296
        %v2298 = vpop.xlane.xlu0 %2297
        %v2299 = vcvt.f32.s32 %v2298
        %v2300 = vcvt.f32.s32 %v2294
        %v2301 = vshll.u32 %v2300, 16
        %v2302 = vadd.s32 %v2301, %v2299
        %v2303 = vand.u32 %v2274, 65535
        %v2304 = vshra.s32 %v2274, 16
        %v2305 = vcvt.s32.f32 %v2303
        %v2306 = vcvt.s32.f32 %v2304
        %2307 = vmin.xlane.f32.xlu0 %v2306
        %v2308 = vpop.xlane.xlu0 %2307
        %vm2309 = vcmp.eq.f32.partialorder %v2306, %v2308
        %v2310 = vsel %vm2309, %v2305, inf
        %2311 = vmin.xlane.f32.xlu0 %v2310
        %v2312 = vpop.xlane.xlu0 %2311
        %v2313 = vcvt.f32.s32 %v2312
        %v2314 = vcvt.f32.s32 %v2308
        %v2315 = vshll.u32 %v2314, 16
        %v2316 = vadd.s32 %v2315, %v2313
        %v2317 = vand.u32 %v2275, 65535
        %v2318 = vshra.s32 %v2275, 16
        %v2319 = vcvt.s32.f32 %v2317
        %v2320 = vcvt.s32.f32 %v2318
        %2321 = vmin.xlane.f32.xlu0 %v2320
        %v2322 = vpop.xlane.xlu0 %2321
        %vm2323 = vcmp.eq.f32.partialorder %v2320, %v2322
        %v2324 = vsel %vm2323, %v2319, inf
        %2325 = vmin.xlane.f32.xlu0 %v2324
        %v2326 = vpop.xlane.xlu0 %2325
        %v2327 = vcvt.f32.s32 %v2326
        %v2328 = vcvt.f32.s32 %v2322
        %v2329 = vshll.u32 %v2328, 16
        %v2330 = vadd.s32 %v2329, %v2327
        %v2331 = vand.u32 %v2276, 65535
        %v2332 = vshra.s32 %v2276, 16
        %v2333 = vcvt.s32.f32 %v2331
        %v2334 = vcvt.s32.f32 %v2332
        %2335 = vmin.xlane.f32.xlu0 %v2334
        %v2336 = vpop.xlane.xlu0 %2335
        %vm2337 = vcmp.eq.f32.partialorder %v2334, %v2336
        %v2338 = vsel %vm2337, %v2333, inf
        %2339 = vmin.xlane.f32.xlu0 %v2338
        %v2340 = vpop.xlane.xlu0 %2339
        %v2341 = vcvt.f32.s32 %v2340
        %v2342 = vcvt.f32.s32 %v2336
        %v2343 = vshll.u32 %v2342, 16
        %v2344 = vadd.s32 %v2343, %v2341
        %v2345 = vand.u32 %v2277, 65535
        %v2346 = vshra.s32 %v2277, 16
        %v2347 = vcvt.s32.f32 %v2345
        %v2348 = vcvt.s32.f32 %v2346
        %2349 = vmin.xlane.f32.xlu0 %v2348
        %v2350 = vpop.xlane.xlu0 %2349
        %vm2351 = vcmp.eq.f32.partialorder %v2348, %v2350
        %v2352 = vsel %vm2351, %v2347, inf
        %2353 = vmin.xlane.f32.xlu0 %v2352
        %v2354 = vpop.xlane.xlu0 %2353
        %v2355 = vcvt.f32.s32 %v2354
        %v2356 = vcvt.f32.s32 %v2350
        %v2357 = vshll.u32 %v2356, 16
        %v2358 = vadd.s32 %v2357, %v2355
        %v2359 = vand.u32 %v2278, 65535
        %v2360 = vshra.s32 %v2278, 16
        %v2361 = vcvt.s32.f32 %v2359
        %v2362 = vcvt.s32.f32 %v2360
        %2363 = vmin.xlane.f32.xlu0 %v2362
        %v2364 = vpop.xlane.xlu0 %2363
        %vm2365 = vcmp.eq.f32.partialorder %v2362, %v2364
        %v2366 = vsel %vm2365, %v2361, inf
        %2367 = vmin.xlane.f32.xlu0 %v2366
        %v2368 = vpop.xlane.xlu0 %2367
        %v2369 = vcvt.f32.s32 %v2368
        %v2370 = vcvt.f32.s32 %v2364
        %v2371 = vshll.u32 %v2370, 16
        %v2372 = vadd.s32 %v2371, %v2369
        %v2373 = vand.u32 %v2279, 65535
        %v2374 = vshra.s32 %v2279, 16
        %v2375 = vcvt.s32.f32 %v2373
        %v2376 = vcvt.s32.f32 %v2374
        %2377 = vmin.xlane.f32.xlu0 %v2376
        %v2378 = vpop.xlane.xlu0 %2377
        %vm2379 = vcmp.eq.f32.partialorder %v2376, %v2378
        %v2380 = vsel %vm2379, %v2375, inf
        %2381 = vmin.xlane.f32.xlu0 %v2380
        %v2382 = vpop.xlane.xlu0 %2381
        %v2383 = vcvt.f32.s32 %v2382
        %v2384 = vcvt.f32.s32 %v2378
        %v2385 = vshll.u32 %v2384, 16
        %v2386 = vadd.s32 %v2385, %v2383
        %v2387 = vand.u32 %v2280, 65535
        %v2388 = vshra.s32 %v2280, 16
        %v2389 = vcvt.s32.f32 %v2387
        %v2390 = vcvt.s32.f32 %v2388
        %2391 = vmin.xlane.f32.xlu0 %v2390
        %v2392 = vpop.xlane.xlu0 %2391
        %vm2393 = vcmp.eq.f32.partialorder %v2390, %v2392
        %v2394 = vsel %vm2393, %v2389, inf
        %2395 = vmin.xlane.f32.xlu0 %v2394
        %v2396 = vpop.xlane.xlu0 %2395
        %v2397 = vcvt.f32.s32 %v2396
        %v2398 = vcvt.f32.s32 %v2392
        %v2399 = vshll.u32 %v2398, 16
        %v2400 = vadd.s32 %v2399, %v2397
        %v2401 = vand.u32 %v2281, 65535
        %v2402 = vshra.s32 %v2281, 16
        %v2403 = vcvt.s32.f32 %v2401
        %v2404 = vcvt.s32.f32 %v2402
        %2405 = vmin.xlane.f32.xlu0 %v2404
        %v2406 = vpop.xlane.xlu0 %2405
        %vm2407 = vcmp.eq.f32.partialorder %v2404, %v2406
        %v2408 = vsel %vm2407, %v2403, inf
        %2409 = vmin.xlane.f32.xlu0 %v2408
        %v2410 = vpop.xlane.xlu0 %2409
        %v2411 = vcvt.f32.s32 %v2410
        %v2412 = vcvt.f32.s32 %v2406
        %v2413 = vshll.u32 %v2412, 16
        %v2414 = vadd.s32 %v2413, %v2411
        %v2415 = vand.u32 %v2282, 65535
        %v2416 = vshra.s32 %v2282, 16
        %v2417 = vcvt.s32.f32 %v2415
        %v2418 = vcvt.s32.f32 %v2416
        %2419 = vmin.xlane.f32.xlu0 %v2418
        %v2420 = vpop.xlane.xlu0 %2419
        %vm2421 = vcmp.eq.f32.partialorder %v2418, %v2420
        %v2422 = vsel %vm2421, %v2417, inf
        %2423 = vmin.xlane.f32.xlu0 %v2422
        %v2424 = vpop.xlane.xlu0 %2423
        %v2425 = vcvt.f32.s32 %v2424
        %v2426 = vcvt.f32.s32 %v2420
        %v2427 = vshll.u32 %v2426, 16
        %v2428 = vadd.s32 %v2427, %v2425
        %v2429 = vand.u32 %v2283, 65535
        %v2430 = vshra.s32 %v2283, 16
        %v2431 = vcvt.s32.f32 %v2429
        %v2432 = vcvt.s32.f32 %v2430
        %2433 = vmin.xlane.f32.xlu0 %v2432
        %v2434 = vpop.xlane.xlu0 %2433
        %vm2435 = vcmp.eq.f32.partialorder %v2432, %v2434
        %v2436 = vsel %vm2435, %v2431, inf
        %2437 = vmin.xlane.f32.xlu0 %v2436
        %v2438 = vpop.xlane.xlu0 %2437
        %v2439 = vcvt.f32.s32 %v2438
        %v2440 = vcvt.f32.s32 %v2434
        %v2441 = vshll.u32 %v2440, 16
        %v2442 = vadd.s32 %v2441, %v2439
        %v2443 = vand.u32 %v2284, 65535
        %v2444 = vshra.s32 %v2284, 16
        %v2445 = vcvt.s32.f32 %v2443
        %v2446 = vcvt.s32.f32 %v2444
        %2447 = vmin.xlane.f32.xlu0 %v2446
        %v2448 = vpop.xlane.xlu0 %2447
        %vm2449 = vcmp.eq.f32.partialorder %v2446, %v2448
        %v2450 = vsel %vm2449, %v2445, inf
        %2451 = vmin.xlane.f32.xlu0 %v2450
        %v2452 = vpop.xlane.xlu0 %2451
        %v2453 = vcvt.f32.s32 %v2452
        %v2454 = vcvt.f32.s32 %v2448
        %v2455 = vshll.u32 %v2454, 16
        %v2456 = vadd.s32 %v2455, %v2453
        %v2457 = vand.u32 %v2285, 65535
        %v2458 = vshra.s32 %v2285, 16
        %v2459 = vcvt.s32.f32 %v2457
        %v2460 = vcvt.s32.f32 %v2458
        %2461 = vmin.xlane.f32.xlu0 %v2460
        %v2462 = vpop.xlane.xlu0 %2461
        %vm2463 = vcmp.eq.f32.partialorder %v2460, %v2462
        %v2464 = vsel %vm2463, %v2459, inf
        %2465 = vmin.xlane.f32.xlu0 %v2464
        %v2466 = vpop.xlane.xlu0 %2465
        %v2467 = vcvt.f32.s32 %v2466
        %v2468 = vcvt.f32.s32 %v2462
        %v2469 = vshll.u32 %v2468, 16
        %v2470 = vadd.s32 %v2469, %v2467
        %v2471 = vand.u32 %v2286, 65535
        %v2472 = vshra.s32 %v2286, 16
        %v2473 = vcvt.s32.f32 %v2471
        %v2474 = vcvt.s32.f32 %v2472
        %2475 = vmin.xlane.f32.xlu0 %v2474
        %v2476 = vpop.xlane.xlu0 %2475
        %vm2477 = vcmp.eq.f32.partialorder %v2474, %v2476
        %v2478 = vsel %vm2477, %v2473, inf
        %2479 = vmin.xlane.f32.xlu0 %v2478
        %v2480 = vpop.xlane.xlu0 %2479
        %v2481 = vcvt.f32.s32 %v2480
        %v2482 = vcvt.f32.s32 %v2476
        %v2483 = vshll.u32 %v2482, 16
        %v2484 = vadd.s32 %v2483, %v2481
        %v2485 = vand.u32 %v2287, 65535
        %v2486 = vshra.s32 %v2287, 16
        %v2487 = vcvt.s32.f32 %v2485
        %v2488 = vcvt.s32.f32 %v2486
        %2489 = vmin.xlane.f32.xlu0 %v2488
        %v2490 = vpop.xlane.xlu0 %2489
        %vm2491 = vcmp.eq.f32.partialorder %v2488, %v2490
        %v2492 = vsel %vm2491, %v2487, inf
        %2493 = vmin.xlane.f32.xlu0 %v2492
        %v2494 = vpop.xlane.xlu0 %2493
        %v2495 = vcvt.f32.s32 %v2494
        %v2496 = vcvt.f32.s32 %v2490
        %v2497 = vshll.u32 %v2496, 16
        %v2498 = vadd.s32 %v2497, %v2495
        %v2499 = vand.u32 %v2288, 65535
        %v2500 = vshra.s32 %v2288, 16
        %v2501 = vcvt.s32.f32 %v2499
        %v2502 = vcvt.s32.f32 %v2500
        %2503 = vmin.xlane.f32.xlu0 %v2502
        %v2504 = vpop.xlane.xlu0 %2503
        %vm2505 = vcmp.eq.f32.partialorder %v2502, %v2504
        %v2506 = vsel %vm2505, %v2501, inf
        %2507 = vmin.xlane.f32.xlu0 %v2506
        %v2508 = vpop.xlane.xlu0 %2507
        %v2509 = vcvt.f32.s32 %v2508
        %v2510 = vcvt.f32.s32 %v2504
        %v2511 = vshll.u32 %v2510, 16
        %v2512 = vadd.s32 %v2511, %v2509
        %vm2513 = vcmp.eq.s32.totalorder %v1168, %v2302
        %vm2514 = vcmp.eq.s32.totalorder %v1168, %v2316
        %vm2515 = vcmp.eq.s32.totalorder %v1168, %v2330
        %vm2516 = vcmp.eq.s32.totalorder %v1168, %v2344
        %vm2517 = vcmp.eq.s32.totalorder %v1168, %v2358
        %vm2518 = vcmp.eq.s32.totalorder %v1168, %v2372
        %vm2519 = vcmp.eq.s32.totalorder %v1168, %v2386
        %vm2520 = vcmp.eq.s32.totalorder %v1168, %v2400
        %vm2521 = vcmp.eq.s32.totalorder %v1168, %v2414
        %vm2522 = vcmp.eq.s32.totalorder %v1168, %v2428
        %vm2523 = vcmp.eq.s32.totalorder %v1168, %v2442
        %vm2524 = vcmp.eq.s32.totalorder %v1168, %v2456
        %vm2525 = vcmp.eq.s32.totalorder %v1168, %v2470
        %vm2526 = vcmp.eq.s32.totalorder %v1168, %v2484
        %vm2527 = vcmp.eq.s32.totalorder %v1168, %v2498
        %vm2528 = vcmp.eq.s32.totalorder %v1168, %v2512
        %v2529 = vsel %vm2513, 1, 0
        %v2530 = vsel %vm2514, 1, 0
        %v2531 = vsel %vm2515, 1, 0
        %v2532 = vsel %vm2516, 1, 0
        %v2533 = vsel %vm2517, 1, 0
        %v2534 = vsel %vm2518, 1, 0
        %v2535 = vsel %vm2519, 1, 0
        %v2536 = vsel %vm2520, 1, 0
        %v2537 = vsel %vm2521, 1, 0
        %v2538 = vsel %vm2522, 1, 0
        %v2539 = vsel %vm2523, 1, 0
        %v2540 = vsel %vm2524, 1, 0
        %v2541 = vsel %vm2525, 1, 0
        %v2542 = vsel %vm2526, 1, 0
        %v2543 = vsel %vm2527, 1, 0
        %v2544 = vsel %vm2528, 1, 0
        %v2545 = vcvt.s32.f32 %v2529
        %v2546 = vcvt.s32.f32 %v2530
        %v2547 = vcvt.s32.f32 %v2531
        %v2548 = vcvt.s32.f32 %v2532
        %v2549 = vcvt.s32.f32 %v2533
        %v2550 = vcvt.s32.f32 %v2534
        %v2551 = vcvt.s32.f32 %v2535
        %v2552 = vcvt.s32.f32 %v2536
        %v2553 = vcvt.s32.f32 %v2537
        %v2554 = vcvt.s32.f32 %v2538
        %v2555 = vcvt.s32.f32 %v2539
        %v2556 = vcvt.s32.f32 %v2540
        %v2557 = vcvt.s32.f32 %v2541
        %v2558 = vcvt.s32.f32 %v2542
        %v2559 = vcvt.s32.f32 %v2543
        %v2560 = vcvt.s32.f32 %v2544
        %v2561 = vpack.c.bf16 %v2546, %v2545
        %v2562 = vpack.c.bf16 %v2548, %v2547
        %v2563 = vpack.c.bf16 %v2550, %v2549
        %v2564 = vpack.c.bf16 %v2552, %v2551
        %v2565 = vpack.c.bf16 %v2554, %v2553
        %v2566 = vpack.c.bf16 %v2556, %v2555
        %v2567 = vpack.c.bf16 %v2558, %v2557
        %v2568 = vpack.c.bf16 %v2560, %v2559
        %2569 = vst [vmem:[#allocation2 + $0x18] sm:$0xff] %v2561
        %2570 = vst [vmem:[#allocation2 + $0x58] sm:$0xff] %v2562
        %2571 = vst [vmem:[#allocation2 + $0x98] sm:$0xff] %v2563
        %2572 = vst [vmem:[#allocation2 + $0xd8] sm:$0xff] %v2564
        %2573 = vst [vmem:[#allocation2 + $0x118] sm:$0xff] %v2565
        %2574 = vst [vmem:[#allocation2 + $0x158] sm:$0xff] %v2566
        %2575 = vst [vmem:[#allocation2 + $0x198] sm:$0xff] %v2567
        %2576 = vst [vmem:[#allocation2 + $0x1d8] sm:$0xff] %v2568
        %2577 = vmax.xlane.f32.xlu0 %v976
        %v2578 = vpop.xlane.xlu0 %2577
        %2579 = vmax.xlane.f32.xlu0 %v980
        %v2580 = vpop.xlane.xlu0 %2579
        %2581 = vmax.xlane.f32.xlu0 %v986
        %v2582 = vpop.xlane.xlu0 %2581
        %2583 = vmax.xlane.f32.xlu0 %v990
        %v2584 = vpop.xlane.xlu0 %2583
        %2585 = vmax.xlane.f32.xlu0 %v996
        %v2586 = vpop.xlane.xlu0 %2585
        %2587 = vmax.xlane.f32.xlu0 %v1000
        %v2588 = vpop.xlane.xlu0 %2587
        %2589 = vmax.xlane.f32.xlu0 %v1006
        %v2590 = vpop.xlane.xlu0 %2589
        %2591 = vmax.xlane.f32.xlu0 %v1010
        %v2592 = vpop.xlane.xlu0 %2591
        %2593 = vmax.xlane.f32.xlu0 %v1016
        %v2594 = vpop.xlane.xlu0 %2593
        %2595 = vmax.xlane.f32.xlu0 %v1020
        %v2596 = vpop.xlane.xlu0 %2595
        %2597 = vmax.xlane.f32.xlu0 %v1026
        %v2598 = vpop.xlane.xlu0 %2597
        %2599 = vmax.xlane.f32.xlu0 %v1030
        %v2600 = vpop.xlane.xlu0 %2599
        %2601 = vmax.xlane.f32.xlu0 %v1036
        %v2602 = vpop.xlane.xlu0 %2601
        %2603 = vmax.xlane.f32.xlu0 %v1040
        %v2604 = vpop.xlane.xlu0 %2603
        %2605 = vmax.xlane.f32.xlu0 %v1046
        %v2606 = vpop.xlane.xlu0 %2605
        %2607 = vmax.xlane.f32.xlu0 %v1050
        %v2608 = vpop.xlane.xlu0 %2607
        %vm2609 = vcmp.eq.f32.partialorder %v976, %v2578
        %vm2610 = vcmp.eq.f32.partialorder %v980, %v2580
        %vm2611 = vcmp.eq.f32.partialorder %v986, %v2582
        %vm2612 = vcmp.eq.f32.partialorder %v990, %v2584
        %vm2613 = vcmp.eq.f32.partialorder %v996, %v2586
        %vm2614 = vcmp.eq.f32.partialorder %v1000, %v2588
        %vm2615 = vcmp.eq.f32.partialorder %v1006, %v2590
        %vm2616 = vcmp.eq.f32.partialorder %v1010, %v2592
        %vm2617 = vcmp.eq.f32.partialorder %v1016, %v2594
        %vm2618 = vcmp.eq.f32.partialorder %v1020, %v2596
        %vm2619 = vcmp.eq.f32.partialorder %v1026, %v2598
        %vm2620 = vcmp.eq.f32.partialorder %v1030, %v2600
        %vm2621 = vcmp.eq.f32.partialorder %v1036, %v2602
        %vm2622 = vcmp.eq.f32.partialorder %v1040, %v2604
        %vm2623 = vcmp.eq.f32.partialorder %v1046, %v2606
        %vm2624 = vcmp.eq.f32.partialorder %v1050, %v2608
        %v2625 = vsel %vm2609, %v1168, 128
        %v2626 = vsel %vm2610, %v1168, 128
        %v2627 = vsel %vm2611, %v1168, 128
        %v2628 = vsel %vm2612, %v1168, 128
        %v2629 = vsel %vm2613, %v1168, 128
        %v2630 = vsel %vm2614, %v1168, 128
        %v2631 = vsel %vm2615, %v1168, 128
        %v2632 = vsel %vm2616, %v1168, 128
        %v2633 = vsel %vm2617, %v1168, 128
        %v2634 = vsel %vm2618, %v1168, 128
        %v2635 = vsel %vm2619, %v1168, 128
        %v2636 = vsel %vm2620, %v1168, 128
        %v2637 = vsel %vm2621, %v1168, 128
        %v2638 = vsel %vm2622, %v1168, 128
        %v2639 = vsel %vm2623, %v1168, 128
        %v2640 = vsel %vm2624, %v1168, 128
        %v2641 = vand.u32 %v2625, 65535
        %v2642 = vshra.s32 %v2625, 16
        %v2643 = vcvt.s32.f32 %v2641
        %v2644 = vcvt.s32.f32 %v2642
        %2645 = vmin.xlane.f32.xlu0 %v2644
        %v2646 = vpop.xlane.xlu0 %2645
        %vm2647 = vcmp.eq.f32.partialorder %v2644, %v2646
        %v2648 = vsel %vm2647, %v2643, inf
        %2649 = vmin.xlane.f32.xlu0 %v2648
        %v2650 = vpop.xlane.xlu0 %2649
        %v2651 = vcvt.f32.s32 %v2650
        %v2652 = vcvt.f32.s32 %v2646
        %v2653 = vshll.u32 %v2652, 16
        %v2654 = vadd.s32 %v2653, %v2651
        %v2655 = vand.u32 %v2626, 65535
        %v2656 = vshra.s32 %v2626, 16
        %v2657 = vcvt.s32.f32 %v2655
        %v2658 = vcvt.s32.f32 %v2656
        %2659 = vmin.xlane.f32.xlu0 %v2658
        %v2660 = vpop.xlane.xlu0 %2659
        %vm2661 = vcmp.eq.f32.partialorder %v2658, %v2660
        %v2662 = vsel %vm2661, %v2657, inf
        %2663 = vmin.xlane.f32.xlu0 %v2662
        %v2664 = vpop.xlane.xlu0 %2663
        %v2665 = vcvt.f32.s32 %v2664
        %v2666 = vcvt.f32.s32 %v2660
        %v2667 = vshll.u32 %v2666, 16
        %v2668 = vadd.s32 %v2667, %v2665
        %v2669 = vand.u32 %v2627, 65535
        %v2670 = vshra.s32 %v2627, 16
        %v2671 = vcvt.s32.f32 %v2669
        %v2672 = vcvt.s32.f32 %v2670
        %2673 = vmin.xlane.f32.xlu0 %v2672
        %v2674 = vpop.xlane.xlu0 %2673
        %vm2675 = vcmp.eq.f32.partialorder %v2672, %v2674
        %v2676 = vsel %vm2675, %v2671, inf
        %2677 = vmin.xlane.f32.xlu0 %v2676
        %v2678 = vpop.xlane.xlu0 %2677
        %v2679 = vcvt.f32.s32 %v2678
        %v2680 = vcvt.f32.s32 %v2674
        %v2681 = vshll.u32 %v2680, 16
        %v2682 = vadd.s32 %v2681, %v2679
        %v2683 = vand.u32 %v2628, 65535
        %v2684 = vshra.s32 %v2628, 16
        %v2685 = vcvt.s32.f32 %v2683
        %v2686 = vcvt.s32.f32 %v2684
        %2687 = vmin.xlane.f32.xlu0 %v2686
        %v2688 = vpop.xlane.xlu0 %2687
        %vm2689 = vcmp.eq.f32.partialorder %v2686, %v2688
        %v2690 = vsel %vm2689, %v2685, inf
        %2691 = vmin.xlane.f32.xlu0 %v2690
        %v2692 = vpop.xlane.xlu0 %2691
        %v2693 = vcvt.f32.s32 %v2692
        %v2694 = vcvt.f32.s32 %v2688
        %v2695 = vshll.u32 %v2694, 16
        %v2696 = vadd.s32 %v2695, %v2693
        %v2697 = vand.u32 %v2629, 65535
        %v2698 = vshra.s32 %v2629, 16
        %v2699 = vcvt.s32.f32 %v2697
        %v2700 = vcvt.s32.f32 %v2698
        %2701 = vmin.xlane.f32.xlu0 %v2700
        %v2702 = vpop.xlane.xlu0 %2701
        %vm2703 = vcmp.eq.f32.partialorder %v2700, %v2702
        %v2704 = vsel %vm2703, %v2699, inf
        %2705 = vmin.xlane.f32.xlu0 %v2704
        %v2706 = vpop.xlane.xlu0 %2705
        %v2707 = vcvt.f32.s32 %v2706
        %v2708 = vcvt.f32.s32 %v2702
        %v2709 = vshll.u32 %v2708, 16
        %v2710 = vadd.s32 %v2709, %v2707
        %v2711 = vand.u32 %v2630, 65535
        %v2712 = vshra.s32 %v2630, 16
        %v2713 = vcvt.s32.f32 %v2711
        %v2714 = vcvt.s32.f32 %v2712
        %2715 = vmin.xlane.f32.xlu0 %v2714
        %v2716 = vpop.xlane.xlu0 %2715
        %vm2717 = vcmp.eq.f32.partialorder %v2714, %v2716
        %v2718 = vsel %vm2717, %v2713, inf
        %2719 = vmin.xlane.f32.xlu0 %v2718
        %v2720 = vpop.xlane.xlu0 %2719
        %v2721 = vcvt.f32.s32 %v2720
        %v2722 = vcvt.f32.s32 %v2716
        %v2723 = vshll.u32 %v2722, 16
        %v2724 = vadd.s32 %v2723, %v2721
        %v2725 = vand.u32 %v2631, 65535
        %v2726 = vshra.s32 %v2631, 16
        %v2727 = vcvt.s32.f32 %v2725
        %v2728 = vcvt.s32.f32 %v2726
        %2729 = vmin.xlane.f32.xlu0 %v2728
        %v2730 = vpop.xlane.xlu0 %2729
        %vm2731 = vcmp.eq.f32.partialorder %v2728, %v2730
        %v2732 = vsel %vm2731, %v2727, inf
        %2733 = vmin.xlane.f32.xlu0 %v2732
        %v2734 = vpop.xlane.xlu0 %2733
        %v2735 = vcvt.f32.s32 %v2734
        %v2736 = vcvt.f32.s32 %v2730
        %v2737 = vshll.u32 %v2736, 16
        %v2738 = vadd.s32 %v2737, %v2735
        %v2739 = vand.u32 %v2632, 65535
        %v2740 = vshra.s32 %v2632, 16
        %v2741 = vcvt.s32.f32 %v2739
        %v2742 = vcvt.s32.f32 %v2740
        %2743 = vmin.xlane.f32.xlu0 %v2742
        %v2744 = vpop.xlane.xlu0 %2743
        %vm2745 = vcmp.eq.f32.partialorder %v2742, %v2744
        %v2746 = vsel %vm2745, %v2741, inf
        %2747 = vmin.xlane.f32.xlu0 %v2746
        %v2748 = vpop.xlane.xlu0 %2747
        %v2749 = vcvt.f32.s32 %v2748
        %v2750 = vcvt.f32.s32 %v2744
        %v2751 = vshll.u32 %v2750, 16
        %v2752 = vadd.s32 %v2751, %v2749
        %v2753 = vand.u32 %v2633, 65535
        %v2754 = vshra.s32 %v2633, 16
        %v2755 = vcvt.s32.f32 %v2753
        %v2756 = vcvt.s32.f32 %v2754
        %2757 = vmin.xlane.f32.xlu0 %v2756
        %v2758 = vpop.xlane.xlu0 %2757
        %vm2759 = vcmp.eq.f32.partialorder %v2756, %v2758
        %v2760 = vsel %vm2759, %v2755, inf
        %2761 = vmin.xlane.f32.xlu0 %v2760
        %v2762 = vpop.xlane.xlu0 %2761
        %v2763 = vcvt.f32.s32 %v2762
        %v2764 = vcvt.f32.s32 %v2758
        %v2765 = vshll.u32 %v2764, 16
        %v2766 = vadd.s32 %v2765, %v2763
        %v2767 = vand.u32 %v2634, 65535
        %v2768 = vshra.s32 %v2634, 16
        %v2769 = vcvt.s32.f32 %v2767
        %v2770 = vcvt.s32.f32 %v2768
        %2771 = vmin.xlane.f32.xlu0 %v2770
        %v2772 = vpop.xlane.xlu0 %2771
        %vm2773 = vcmp.eq.f32.partialorder %v2770, %v2772
        %v2774 = vsel %vm2773, %v2769, inf
        %2775 = vmin.xlane.f32.xlu0 %v2774
        %v2776 = vpop.xlane.xlu0 %2775
        %v2777 = vcvt.f32.s32 %v2776
        %v2778 = vcvt.f32.s32 %v2772
        %v2779 = vshll.u32 %v2778, 16
        %v2780 = vadd.s32 %v2779, %v2777
        %v2781 = vand.u32 %v2635, 65535
        %v2782 = vshra.s32 %v2635, 16
        %v2783 = vcvt.s32.f32 %v2781
        %v2784 = vcvt.s32.f32 %v2782
        %2785 = vmin.xlane.f32.xlu0 %v2784
        %v2786 = vpop.xlane.xlu0 %2785
        %vm2787 = vcmp.eq.f32.partialorder %v2784, %v2786
        %v2788 = vsel %vm2787, %v2783, inf
        %2789 = vmin.xlane.f32.xlu0 %v2788
        %v2790 = vpop.xlane.xlu0 %2789
        %v2791 = vcvt.f32.s32 %v2790
        %v2792 = vcvt.f32.s32 %v2786
        %v2793 = vshll.u32 %v2792, 16
        %v2794 = vadd.s32 %v2793, %v2791
        %v2795 = vand.u32 %v2636, 65535
        %v2796 = vshra.s32 %v2636, 16
        %v2797 = vcvt.s32.f32 %v2795
        %v2798 = vcvt.s32.f32 %v2796
        %2799 = vmin.xlane.f32.xlu0 %v2798
        %v2800 = vpop.xlane.xlu0 %2799
        %vm2801 = vcmp.eq.f32.partialorder %v2798, %v2800
        %v2802 = vsel %vm2801, %v2797, inf
        %2803 = vmin.xlane.f32.xlu0 %v2802
        %v2804 = vpop.xlane.xlu0 %2803
        %v2805 = vcvt.f32.s32 %v2804
        %v2806 = vcvt.f32.s32 %v2800
        %v2807 = vshll.u32 %v2806, 16
        %v2808 = vadd.s32 %v2807, %v2805
        %v2809 = vand.u32 %v2637, 65535
        %v2810 = vshra.s32 %v2637, 16
        %v2811 = vcvt.s32.f32 %v2809
        %v2812 = vcvt.s32.f32 %v2810
        %2813 = vmin.xlane.f32.xlu0 %v2812
        %v2814 = vpop.xlane.xlu0 %2813
        %vm2815 = vcmp.eq.f32.partialorder %v2812, %v2814
        %v2816 = vsel %vm2815, %v2811, inf
        %2817 = vmin.xlane.f32.xlu0 %v2816
        %v2818 = vpop.xlane.xlu0 %2817
        %v2819 = vcvt.f32.s32 %v2818
        %v2820 = vcvt.f32.s32 %v2814
        %v2821 = vshll.u32 %v2820, 16
        %v2822 = vadd.s32 %v2821, %v2819
        %v2823 = vand.u32 %v2638, 65535
        %v2824 = vshra.s32 %v2638, 16
        %v2825 = vcvt.s32.f32 %v2823
        %v2826 = vcvt.s32.f32 %v2824
        %2827 = vmin.xlane.f32.xlu0 %v2826
        %v2828 = vpop.xlane.xlu0 %2827
        %vm2829 = vcmp.eq.f32.partialorder %v2826, %v2828
        %v2830 = vsel %vm2829, %v2825, inf
        %2831 = vmin.xlane.f32.xlu0 %v2830
        %v2832 = vpop.xlane.xlu0 %2831
        %v2833 = vcvt.f32.s32 %v2832
        %v2834 = vcvt.f32.s32 %v2828
        %v2835 = vshll.u32 %v2834, 16
        %v2836 = vadd.s32 %v2835, %v2833
        %v2837 = vand.u32 %v2639, 65535
        %v2838 = vshra.s32 %v2639, 16
        %v2839 = vcvt.s32.f32 %v2837
        %v2840 = vcvt.s32.f32 %v2838
        %2841 = vmin.xlane.f32.xlu0 %v2840
        %v2842 = vpop.xlane.xlu0 %2841
        %vm2843 = vcmp.eq.f32.partialorder %v2840, %v2842
        %v2844 = vsel %vm2843, %v2839, inf
        %2845 = vmin.xlane.f32.xlu0 %v2844
        %v2846 = vpop.xlane.xlu0 %2845
        %v2847 = vcvt.f32.s32 %v2846
        %v2848 = vcvt.f32.s32 %v2842
        %v2849 = vshll.u32 %v2848, 16
        %v2850 = vadd.s32 %v2849, %v2847
        %v2851 = vand.u32 %v2640, 65535
        %v2852 = vshra.s32 %v2640, 16
        %v2853 = vcvt.s32.f32 %v2851
        %v2854 = vcvt.s32.f32 %v2852
        %2855 = vmin.xlane.f32.xlu0 %v2854
        %v2856 = vpop.xlane.xlu0 %2855
        %vm2857 = vcmp.eq.f32.partialorder %v2854, %v2856
        %v2858 = vsel %vm2857, %v2853, inf
        %2859 = vmin.xlane.f32.xlu0 %v2858
        %v2860 = vpop.xlane.xlu0 %2859
        %v2861 = vcvt.f32.s32 %v2860
        %v2862 = vcvt.f32.s32 %v2856
        %v2863 = vshll.u32 %v2862, 16
        %v2864 = vadd.s32 %v2863, %v2861
        %vm2865 = vcmp.eq.s32.totalorder %v1168, %v2654
        %vm2866 = vcmp.eq.s32.totalorder %v1168, %v2668
        %vm2867 = vcmp.eq.s32.totalorder %v1168, %v2682
        %vm2868 = vcmp.eq.s32.totalorder %v1168, %v2696
        %vm2869 = vcmp.eq.s32.totalorder %v1168, %v2710
        %vm2870 = vcmp.eq.s32.totalorder %v1168, %v2724
        %vm2871 = vcmp.eq.s32.totalorder %v1168, %v2738
        %vm2872 = vcmp.eq.s32.totalorder %v1168, %v2752
        %vm2873 = vcmp.eq.s32.totalorder %v1168, %v2766
        %vm2874 = vcmp.eq.s32.totalorder %v1168, %v2780
        %vm2875 = vcmp.eq.s32.totalorder %v1168, %v2794
        %vm2876 = vcmp.eq.s32.totalorder %v1168, %v2808
        %vm2877 = vcmp.eq.s32.totalorder %v1168, %v2822
        %vm2878 = vcmp.eq.s32.totalorder %v1168, %v2836
        %vm2879 = vcmp.eq.s32.totalorder %v1168, %v2850
        %vm2880 = vcmp.eq.s32.totalorder %v1168, %v2864
        %v2881 = vsel %vm2865, 1, 0
        %v2882 = vsel %vm2866, 1, 0
        %v2883 = vsel %vm2867, 1, 0
        %v2884 = vsel %vm2868, 1, 0
        %v2885 = vsel %vm2869, 1, 0
        %v2886 = vsel %vm2870, 1, 0
        %v2887 = vsel %vm2871, 1, 0
        %v2888 = vsel %vm2872, 1, 0
        %v2889 = vsel %vm2873, 1, 0
        %v2890 = vsel %vm2874, 1, 0
        %v2891 = vsel %vm2875, 1, 0
        %v2892 = vsel %vm2876, 1, 0
        %v2893 = vsel %vm2877, 1, 0
        %v2894 = vsel %vm2878, 1, 0
        %v2895 = vsel %vm2879, 1, 0
        %v2896 = vsel %vm2880, 1, 0
        %v2897 = vcvt.s32.f32 %v2881
        %v2898 = vcvt.s32.f32 %v2882
        %v2899 = vcvt.s32.f32 %v2883
        %v2900 = vcvt.s32.f32 %v2884
        %v2901 = vcvt.s32.f32 %v2885
        %v2902 = vcvt.s32.f32 %v2886
        %v2903 = vcvt.s32.f32 %v2887
        %v2904 = vcvt.s32.f32 %v2888
        %v2905 = vcvt.s32.f32 %v2889
        %v2906 = vcvt.s32.f32 %v2890
        %v2907 = vcvt.s32.f32 %v2891
        %v2908 = vcvt.s32.f32 %v2892
        %v2909 = vcvt.s32.f32 %v2893
        %v2910 = vcvt.s32.f32 %v2894
        %v2911 = vcvt.s32.f32 %v2895
        %v2912 = vcvt.s32.f32 %v2896
        %v2913 = vpack.c.bf16 %v2898, %v2897
        %v2914 = vpack.c.bf16 %v2900, %v2899
        %v2915 = vpack.c.bf16 %v2902, %v2901
        %v2916 = vpack.c.bf16 %v2904, %v2903
        %v2917 = vpack.c.bf16 %v2906, %v2905
        %v2918 = vpack.c.bf16 %v2908, %v2907
        %v2919 = vpack.c.bf16 %v2910, %v2909
        %v2920 = vpack.c.bf16 %v2912, %v2911
        %2921 = vst [vmem:[#allocation2 + $0x20] sm:$0xff] %v2913
        %2922 = vst [vmem:[#allocation2 + $0x60] sm:$0xff] %v2914
        %2923 = vst [vmem:[#allocation2 + $0xa0] sm:$0xff] %v2915
        %2924 = vst [vmem:[#allocation2 + $0xe0] sm:$0xff] %v2916
        %2925 = vst [vmem:[#allocation2 + $0x120] sm:$0xff] %v2917
        %2926 = vst [vmem:[#allocation2 + $0x160] sm:$0xff] %v2918
        %2927 = vst [vmem:[#allocation2 + $0x1a0] sm:$0xff] %v2919
        %2928 = vst [vmem:[#allocation2 + $0x1e0] sm:$0xff] %v2920
        %2929 = vmax.xlane.f32.xlu0 %v978
        %v2930 = vpop.xlane.xlu0 %2929
        %2931 = vmax.xlane.f32.xlu0 %v982
        %v2932 = vpop.xlane.xlu0 %2931
        %2933 = vmax.xlane.f32.xlu0 %v988
        %v2934 = vpop.xlane.xlu0 %2933
        %2935 = vmax.xlane.f32.xlu0 %v992
        %v2936 = vpop.xlane.xlu0 %2935
        %2937 = vmax.xlane.f32.xlu0 %v998
        %v2938 = vpop.xlane.xlu0 %2937
        %2939 = vmax.xlane.f32.xlu0 %v1002
        %v2940 = vpop.xlane.xlu0 %2939
        %2941 = vmax.xlane.f32.xlu0 %v1008
        %v2942 = vpop.xlane.xlu0 %2941
        %2943 = vmax.xlane.f32.xlu0 %v1012
        %v2944 = vpop.xlane.xlu0 %2943
        %2945 = vmax.xlane.f32.xlu0 %v1018
        %v2946 = vpop.xlane.xlu0 %2945
        %2947 = vmax.xlane.f32.xlu0 %v1022
        %v2948 = vpop.xlane.xlu0 %2947
        %2949 = vmax.xlane.f32.xlu0 %v1028
        %v2950 = vpop.xlane.xlu0 %2949
        %2951 = vmax.xlane.f32.xlu0 %v1032
        %v2952 = vpop.xlane.xlu0 %2951
        %2953 = vmax.xlane.f32.xlu0 %v1038
        %v2954 = vpop.xlane.xlu0 %2953
        %2955 = vmax.xlane.f32.xlu0 %v1042
        %v2956 = vpop.xlane.xlu0 %2955
        %2957 = vmax.xlane.f32.xlu0 %v1048
        %v2958 = vpop.xlane.xlu0 %2957
        %2959 = vmax.xlane.f32.xlu0 %v1052
        %v2960 = vpop.xlane.xlu0 %2959
        %vm2961 = vcmp.eq.f32.partialorder %v978, %v2930
        %vm2962 = vcmp.eq.f32.partialorder %v982, %v2932
        %vm2963 = vcmp.eq.f32.partialorder %v988, %v2934
        %vm2964 = vcmp.eq.f32.partialorder %v992, %v2936
        %vm2965 = vcmp.eq.f32.partialorder %v998, %v2938
        %vm2966 = vcmp.eq.f32.partialorder %v1002, %v2940
        %vm2967 = vcmp.eq.f32.partialorder %v1008, %v2942
        %vm2968 = vcmp.eq.f32.partialorder %v1012, %v2944
        %vm2969 = vcmp.eq.f32.partialorder %v1018, %v2946
        %vm2970 = vcmp.eq.f32.partialorder %v1022, %v2948
        %vm2971 = vcmp.eq.f32.partialorder %v1028, %v2950
        %vm2972 = vcmp.eq.f32.partialorder %v1032, %v2952
        %vm2973 = vcmp.eq.f32.partialorder %v1038, %v2954
        %vm2974 = vcmp.eq.f32.partialorder %v1042, %v2956
        %vm2975 = vcmp.eq.f32.partialorder %v1048, %v2958
        %vm2976 = vcmp.eq.f32.partialorder %v1052, %v2960
        %v2977 = vsel %vm2961, %v1168, 128
        %v2978 = vsel %vm2962, %v1168, 128
        %v2979 = vsel %vm2963, %v1168, 128
        %v2980 = vsel %vm2964, %v1168, 128
        %v2981 = vsel %vm2965, %v1168, 128
        %v2982 = vsel %vm2966, %v1168, 128
        %v2983 = vsel %vm2967, %v1168, 128
        %v2984 = vsel %vm2968, %v1168, 128
        %v2985 = vsel %vm2969, %v1168, 128
        %v2986 = vsel %vm2970, %v1168, 128
        %v2987 = vsel %vm2971, %v1168, 128
        %v2988 = vsel %vm2972, %v1168, 128
        %v2989 = vsel %vm2973, %v1168, 128
        %v2990 = vsel %vm2974, %v1168, 128
        %v2991 = vsel %vm2975, %v1168, 128
        %v2992 = vsel %vm2976, %v1168, 128
        %v2993 = vand.u32 %v2977, 65535
        %v2994 = vshra.s32 %v2977, 16
        %v2995 = vcvt.s32.f32 %v2993
        %v2996 = vcvt.s32.f32 %v2994
        %2997 = vmin.xlane.f32.xlu0 %v2996
        %v2998 = vpop.xlane.xlu0 %2997
        %vm2999 = vcmp.eq.f32.partialorder %v2996, %v2998
        %v3000 = vsel %vm2999, %v2995, inf
        %3001 = vmin.xlane.f32.xlu0 %v3000
        %v3002 = vpop.xlane.xlu0 %3001
        %v3003 = vcvt.f32.s32 %v3002
        %v3004 = vcvt.f32.s32 %v2998
        %v3005 = vshll.u32 %v3004, 16
        %v3006 = vadd.s32 %v3005, %v3003
        %v3007 = vand.u32 %v2978, 65535
        %v3008 = vshra.s32 %v2978, 16
        %v3009 = vcvt.s32.f32 %v3007
        %v3010 = vcvt.s32.f32 %v3008
        %3011 = vmin.xlane.f32.xlu0 %v3010
        %v3012 = vpop.xlane.xlu0 %3011
        %vm3013 = vcmp.eq.f32.partialorder %v3010, %v3012
        %v3014 = vsel %vm3013, %v3009, inf
        %3015 = vmin.xlane.f32.xlu0 %v3014
        %v3016 = vpop.xlane.xlu0 %3015
        %v3017 = vcvt.f32.s32 %v3016
        %v3018 = vcvt.f32.s32 %v3012
        %v3019 = vshll.u32 %v3018, 16
        %v3020 = vadd.s32 %v3019, %v3017
        %v3021 = vand.u32 %v2979, 65535
        %v3022 = vshra.s32 %v2979, 16
        %v3023 = vcvt.s32.f32 %v3021
        %v3024 = vcvt.s32.f32 %v3022
        %3025 = vmin.xlane.f32.xlu0 %v3024
        %v3026 = vpop.xlane.xlu0 %3025
        %vm3027 = vcmp.eq.f32.partialorder %v3024, %v3026
        %v3028 = vsel %vm3027, %v3023, inf
        %3029 = vmin.xlane.f32.xlu0 %v3028
        %v3030 = vpop.xlane.xlu0 %3029
        %v3031 = vcvt.f32.s32 %v3030
        %v3032 = vcvt.f32.s32 %v3026
        %v3033 = vshll.u32 %v3032, 16
        %v3034 = vadd.s32 %v3033, %v3031
        %v3035 = vand.u32 %v2980, 65535
        %v3036 = vshra.s32 %v2980, 16
        %v3037 = vcvt.s32.f32 %v3035
        %v3038 = vcvt.s32.f32 %v3036
        %3039 = vmin.xlane.f32.xlu0 %v3038
        %v3040 = vpop.xlane.xlu0 %3039
        %vm3041 = vcmp.eq.f32.partialorder %v3038, %v3040
        %v3042 = vsel %vm3041, %v3037, inf
        %3043 = vmin.xlane.f32.xlu0 %v3042
        %v3044 = vpop.xlane.xlu0 %3043
        %v3045 = vcvt.f32.s32 %v3044
        %v3046 = vcvt.f32.s32 %v3040
        %v3047 = vshll.u32 %v3046, 16
        %v3048 = vadd.s32 %v3047, %v3045
        %v3049 = vand.u32 %v2981, 65535
        %v3050 = vshra.s32 %v2981, 16
        %v3051 = vcvt.s32.f32 %v3049
        %v3052 = vcvt.s32.f32 %v3050
        %3053 = vmin.xlane.f32.xlu0 %v3052
        %v3054 = vpop.xlane.xlu0 %3053
        %vm3055 = vcmp.eq.f32.partialorder %v3052, %v3054
        %v3056 = vsel %vm3055, %v3051, inf
        %3057 = vmin.xlane.f32.xlu0 %v3056
        %v3058 = vpop.xlane.xlu0 %3057
        %v3059 = vcvt.f32.s32 %v3058
        %v3060 = vcvt.f32.s32 %v3054
        %v3061 = vshll.u32 %v3060, 16
        %v3062 = vadd.s32 %v3061, %v3059
        %v3063 = vand.u32 %v2982, 65535
        %v3064 = vshra.s32 %v2982, 16
        %v3065 = vcvt.s32.f32 %v3063
        %v3066 = vcvt.s32.f32 %v3064
        %3067 = vmin.xlane.f32.xlu0 %v3066
        %v3068 = vpop.xlane.xlu0 %3067
        %vm3069 = vcmp.eq.f32.partialorder %v3066, %v3068
        %v3070 = vsel %vm3069, %v3065, inf
        %3071 = vmin.xlane.f32.xlu0 %v3070
        %v3072 = vpop.xlane.xlu0 %3071
        %v3073 = vcvt.f32.s32 %v3072
        %v3074 = vcvt.f32.s32 %v3068
        %v3075 = vshll.u32 %v3074, 16
        %v3076 = vadd.s32 %v3075, %v3073
        %v3077 = vand.u32 %v2983, 65535
        %v3078 = vshra.s32 %v2983, 16
        %v3079 = vcvt.s32.f32 %v3077
        %v3080 = vcvt.s32.f32 %v3078
        %3081 = vmin.xlane.f32.xlu0 %v3080
        %v3082 = vpop.xlane.xlu0 %3081
        %vm3083 = vcmp.eq.f32.partialorder %v3080, %v3082
        %v3084 = vsel %vm3083, %v3079, inf
        %3085 = vmin.xlane.f32.xlu0 %v3084
        %v3086 = vpop.xlane.xlu0 %3085
        %v3087 = vcvt.f32.s32 %v3086
        %v3088 = vcvt.f32.s32 %v3082
        %v3089 = vshll.u32 %v3088, 16
        %v3090 = vadd.s32 %v3089, %v3087
        %v3091 = vand.u32 %v2984, 65535
        %v3092 = vshra.s32 %v2984, 16
        %v3093 = vcvt.s32.f32 %v3091
        %v3094 = vcvt.s32.f32 %v3092
        %3095 = vmin.xlane.f32.xlu0 %v3094
        %v3096 = vpop.xlane.xlu0 %3095
        %vm3097 = vcmp.eq.f32.partialorder %v3094, %v3096
        %v3098 = vsel %vm3097, %v3093, inf
        %3099 = vmin.xlane.f32.xlu0 %v3098
        %v3100 = vpop.xlane.xlu0 %3099
        %v3101 = vcvt.f32.s32 %v3100
        %v3102 = vcvt.f32.s32 %v3096
        %v3103 = vshll.u32 %v3102, 16
        %v3104 = vadd.s32 %v3103, %v3101
        %v3105 = vand.u32 %v2985, 65535
        %v3106 = vshra.s32 %v2985, 16
        %v3107 = vcvt.s32.f32 %v3105
        %v3108 = vcvt.s32.f32 %v3106
        %3109 = vmin.xlane.f32.xlu0 %v3108
        %v3110 = vpop.xlane.xlu0 %3109
        %vm3111 = vcmp.eq.f32.partialorder %v3108, %v3110
        %v3112 = vsel %vm3111, %v3107, inf
        %3113 = vmin.xlane.f32.xlu0 %v3112
        %v3114 = vpop.xlane.xlu0 %3113
        %v3115 = vcvt.f32.s32 %v3114
        %v3116 = vcvt.f32.s32 %v3110
        %v3117 = vshll.u32 %v3116, 16
        %v3118 = vadd.s32 %v3117, %v3115
        %v3119 = vand.u32 %v2986, 65535
        %v3120 = vshra.s32 %v2986, 16
        %v3121 = vcvt.s32.f32 %v3119
        %v3122 = vcvt.s32.f32 %v3120
        %3123 = vmin.xlane.f32.xlu0 %v3122
        %v3124 = vpop.xlane.xlu0 %3123
        %vm3125 = vcmp.eq.f32.partialorder %v3122, %v3124
        %v3126 = vsel %vm3125, %v3121, inf
        %3127 = vmin.xlane.f32.xlu0 %v3126
        %v3128 = vpop.xlane.xlu0 %3127
        %v3129 = vcvt.f32.s32 %v3128
        %v3130 = vcvt.f32.s32 %v3124
        %v3131 = vshll.u32 %v3130, 16
        %v3132 = vadd.s32 %v3131, %v3129
        %v3133 = vand.u32 %v2987, 65535
        %v3134 = vshra.s32 %v2987, 16
        %v3135 = vcvt.s32.f32 %v3133
        %v3136 = vcvt.s32.f32 %v3134
        %3137 = vmin.xlane.f32.xlu0 %v3136
        %v3138 = vpop.xlane.xlu0 %3137
        %vm3139 = vcmp.eq.f32.partialorder %v3136, %v3138
        %v3140 = vsel %vm3139, %v3135, inf
        %3141 = vmin.xlane.f32.xlu0 %v3140
        %v3142 = vpop.xlane.xlu0 %3141
        %v3143 = vcvt.f32.s32 %v3142
        %v3144 = vcvt.f32.s32 %v3138
        %v3145 = vshll.u32 %v3144, 16
        %v3146 = vadd.s32 %v3145, %v3143
        %v3147 = vand.u32 %v2988, 65535
        %v3148 = vshra.s32 %v2988, 16
        %v3149 = vcvt.s32.f32 %v3147
        %v3150 = vcvt.s32.f32 %v3148
        %3151 = vmin.xlane.f32.xlu0 %v3150
        %v3152 = vpop.xlane.xlu0 %3151
        %vm3153 = vcmp.eq.f32.partialorder %v3150, %v3152
        %v3154 = vsel %vm3153, %v3149, inf
        %3155 = vmin.xlane.f32.xlu0 %v3154
        %v3156 = vpop.xlane.xlu0 %3155
        %v3157 = vcvt.f32.s32 %v3156
        %v3158 = vcvt.f32.s32 %v3152
        %v3159 = vshll.u32 %v3158, 16
        %v3160 = vadd.s32 %v3159, %v3157
        %v3161 = vand.u32 %v2989, 65535
        %v3162 = vshra.s32 %v2989, 16
        %v3163 = vcvt.s32.f32 %v3161
        %v3164 = vcvt.s32.f32 %v3162
        %3165 = vmin.xlane.f32.xlu0 %v3164
        %v3166 = vpop.xlane.xlu0 %3165
        %vm3167 = vcmp.eq.f32.partialorder %v3164, %v3166
        %v3168 = vsel %vm3167, %v3163, inf
        %3169 = vmin.xlane.f32.xlu0 %v3168
        %v3170 = vpop.xlane.xlu0 %3169
        %v3171 = vcvt.f32.s32 %v3170
        %v3172 = vcvt.f32.s32 %v3166
        %v3173 = vshll.u32 %v3172, 16
        %v3174 = vadd.s32 %v3173, %v3171
        %v3175 = vand.u32 %v2990, 65535
        %v3176 = vshra.s32 %v2990, 16
        %v3177 = vcvt.s32.f32 %v3175
        %v3178 = vcvt.s32.f32 %v3176
        %3179 = vmin.xlane.f32.xlu0 %v3178
        %v3180 = vpop.xlane.xlu0 %3179
        %vm3181 = vcmp.eq.f32.partialorder %v3178, %v3180
        %v3182 = vsel %vm3181, %v3177, inf
        %3183 = vmin.xlane.f32.xlu0 %v3182
        %v3184 = vpop.xlane.xlu0 %3183
        %v3185 = vcvt.f32.s32 %v3184
        %v3186 = vcvt.f32.s32 %v3180
        %v3187 = vshll.u32 %v3186, 16
        %v3188 = vadd.s32 %v3187, %v3185
        %v3189 = vand.u32 %v2991, 65535
        %v3190 = vshra.s32 %v2991, 16
        %v3191 = vcvt.s32.f32 %v3189
        %v3192 = vcvt.s32.f32 %v3190
        %3193 = vmin.xlane.f32.xlu0 %v3192
        %v3194 = vpop.xlane.xlu0 %3193
        %vm3195 = vcmp.eq.f32.partialorder %v3192, %v3194
        %v3196 = vsel %vm3195, %v3191, inf
        %3197 = vmin.xlane.f32.xlu0 %v3196
        %v3198 = vpop.xlane.xlu0 %3197
        %v3199 = vcvt.f32.s32 %v3198
        %v3200 = vcvt.f32.s32 %v3194
        %v3201 = vshll.u32 %v3200, 16
        %v3202 = vadd.s32 %v3201, %v3199
        %v3203 = vand.u32 %v2992, 65535
        %v3204 = vshra.s32 %v2992, 16
        %v3205 = vcvt.s32.f32 %v3203
        %v3206 = vcvt.s32.f32 %v3204
        %3207 = vmin.xlane.f32.xlu0 %v3206
        %v3208 = vpop.xlane.xlu0 %3207
        %vm3209 = vcmp.eq.f32.partialorder %v3206, %v3208
        %v3210 = vsel %vm3209, %v3205, inf
        %3211 = vmin.xlane.f32.xlu0 %v3210
        %v3212 = vpop.xlane.xlu0 %3211
        %v3213 = vcvt.f32.s32 %v3212
        %v3214 = vcvt.f32.s32 %v3208
        %v3215 = vshll.u32 %v3214, 16
        %v3216 = vadd.s32 %v3215, %v3213
        %vm3217 = vcmp.eq.s32.totalorder %v1168, %v3006
        %vm3218 = vcmp.eq.s32.totalorder %v1168, %v3020
        %vm3219 = vcmp.eq.s32.totalorder %v1168, %v3034
        %vm3220 = vcmp.eq.s32.totalorder %v1168, %v3048
        %vm3221 = vcmp.eq.s32.totalorder %v1168, %v3062
        %vm3222 = vcmp.eq.s32.totalorder %v1168, %v3076
        %vm3223 = vcmp.eq.s32.totalorder %v1168, %v3090
        %vm3224 = vcmp.eq.s32.totalorder %v1168, %v3104
        %vm3225 = vcmp.eq.s32.totalorder %v1168, %v3118
        %vm3226 = vcmp.eq.s32.totalorder %v1168, %v3132
        %vm3227 = vcmp.eq.s32.totalorder %v1168, %v3146
        %vm3228 = vcmp.eq.s32.totalorder %v1168, %v3160
        %vm3229 = vcmp.eq.s32.totalorder %v1168, %v3174
        %vm3230 = vcmp.eq.s32.totalorder %v1168, %v3188
        %vm3231 = vcmp.eq.s32.totalorder %v1168, %v3202
        %vm3232 = vcmp.eq.s32.totalorder %v1168, %v3216
        %v3233 = vsel %vm3217, 1, 0
        %v3234 = vsel %vm3218, 1, 0
        %v3235 = vsel %vm3219, 1, 0
        %v3236 = vsel %vm3220, 1, 0
        %v3237 = vsel %vm3221, 1, 0
        %v3238 = vsel %vm3222, 1, 0
        %v3239 = vsel %vm3223, 1, 0
        %v3240 = vsel %vm3224, 1, 0
        %v3241 = vsel %vm3225, 1, 0
        %v3242 = vsel %vm3226, 1, 0
        %v3243 = vsel %vm3227, 1, 0
        %v3244 = vsel %vm3228, 1, 0
        %v3245 = vsel %vm3229, 1, 0
        %v3246 = vsel %vm3230, 1, 0
        %v3247 = vsel %vm3231, 1, 0
        %v3248 = vsel %vm3232, 1, 0
        %v3249 = vcvt.s32.f32 %v3233
        %v3250 = vcvt.s32.f32 %v3234
        %v3251 = vcvt.s32.f32 %v3235
        %v3252 = vcvt.s32.f32 %v3236
        %v3253 = vcvt.s32.f32 %v3237
        %v3254 = vcvt.s32.f32 %v3238
        %v3255 = vcvt.s32.f32 %v3239
        %v3256 = vcvt.s32.f32 %v3240
        %v3257 = vcvt.s32.f32 %v3241
        %v3258 = vcvt.s32.f32 %v3242
        %v3259 = vcvt.s32.f32 %v3243
        %v3260 = vcvt.s32.f32 %v3244
        %v3261 = vcvt.s32.f32 %v3245
        %v3262 = vcvt.s32.f32 %v3246
        %v3263 = vcvt.s32.f32 %v3247
        %v3264 = vcvt.s32.f32 %v3248
        %v3265 = vpack.c.bf16 %v3250, %v3249
        %v3266 = vpack.c.bf16 %v3252, %v3251
        %v3267 = vpack.c.bf16 %v3254, %v3253
        %v3268 = vpack.c.bf16 %v3256, %v3255
        %v3269 = vpack.c.bf16 %v3258, %v3257
        %v3270 = vpack.c.bf16 %v3260, %v3259
        %v3271 = vpack.c.bf16 %v3262, %v3261
        %v3272 = vpack.c.bf16 %v3264, %v3263
        %3273 = vst [vmem:[#allocation2 + $0x28] sm:$0xff] %v3265
        %3274 = vst [vmem:[#allocation2 + $0x68] sm:$0xff] %v3266
        %3275 = vst [vmem:[#allocation2 + $0xa8] sm:$0xff] %v3267
        %3276 = vst [vmem:[#allocation2 + $0xe8] sm:$0xff] %v3268
        %3277 = vst [vmem:[#allocation2 + $0x128] sm:$0xff] %v3269
        %3278 = vst [vmem:[#allocation2 + $0x168] sm:$0xff] %v3270
        %3279 = vst [vmem:[#allocation2 + $0x1a8] sm:$0xff] %v3271
        %3280 = vst [vmem:[#allocation2 + $0x1e8] sm:$0xff] %v3272
        %3281 = vmax.xlane.f32.xlu0 %v1089
        %v3282 = vpop.xlane.xlu0 %3281
        %3283 = vmax.xlane.f32.xlu0 %v1093
        %v3284 = vpop.xlane.xlu0 %3283
        %3285 = vmax.xlane.f32.xlu0 %v1099
        %v3286 = vpop.xlane.xlu0 %3285
        %3287 = vmax.xlane.f32.xlu0 %v1103
        %v3288 = vpop.xlane.xlu0 %3287
        %3289 = vmax.xlane.f32.xlu0 %v1109
        %v3290 = vpop.xlane.xlu0 %3289
        %3291 = vmax.xlane.f32.xlu0 %v1113
        %v3292 = vpop.xlane.xlu0 %3291
        %3293 = vmax.xlane.f32.xlu0 %v1119
        %v3294 = vpop.xlane.xlu0 %3293
        %3295 = vmax.xlane.f32.xlu0 %v1123
        %v3296 = vpop.xlane.xlu0 %3295
        %3297 = vmax.xlane.f32.xlu0 %v1129
        %v3298 = vpop.xlane.xlu0 %3297
        %3299 = vmax.xlane.f32.xlu0 %v1133
        %v3300 = vpop.xlane.xlu0 %3299
        %3301 = vmax.xlane.f32.xlu0 %v1139
        %v3302 = vpop.xlane.xlu0 %3301
        %3303 = vmax.xlane.f32.xlu0 %v1143
        %v3304 = vpop.xlane.xlu0 %3303
        %3305 = vmax.xlane.f32.xlu0 %v1149
        %v3306 = vpop.xlane.xlu0 %3305
        %3307 = vmax.xlane.f32.xlu0 %v1153
        %v3308 = vpop.xlane.xlu0 %3307
        %3309 = vmax.xlane.f32.xlu0 %v1159
        %v3310 = vpop.xlane.xlu0 %3309
        %3311 = vmax.xlane.f32.xlu0 %v1163
        %v3312 = vpop.xlane.xlu0 %3311
        %vm3313 = vcmp.eq.f32.partialorder %v1089, %v3282
        %vm3314 = vcmp.eq.f32.partialorder %v1093, %v3284
        %vm3315 = vcmp.eq.f32.partialorder %v1099, %v3286
        %vm3316 = vcmp.eq.f32.partialorder %v1103, %v3288
        %vm3317 = vcmp.eq.f32.partialorder %v1109, %v3290
        %vm3318 = vcmp.eq.f32.partialorder %v1113, %v3292
        %vm3319 = vcmp.eq.f32.partialorder %v1119, %v3294
        %vm3320 = vcmp.eq.f32.partialorder %v1123, %v3296
        %vm3321 = vcmp.eq.f32.partialorder %v1129, %v3298
        %vm3322 = vcmp.eq.f32.partialorder %v1133, %v3300
        %vm3323 = vcmp.eq.f32.partialorder %v1139, %v3302
        %vm3324 = vcmp.eq.f32.partialorder %v1143, %v3304
        %vm3325 = vcmp.eq.f32.partialorder %v1149, %v3306
        %vm3326 = vcmp.eq.f32.partialorder %v1153, %v3308
        %vm3327 = vcmp.eq.f32.partialorder %v1159, %v3310
        %vm3328 = vcmp.eq.f32.partialorder %v1163, %v3312
        %v3329 = vsel %vm3313, %v1168, 128
        %v3330 = vsel %vm3314, %v1168, 128
        %v3331 = vsel %vm3315, %v1168, 128
        %v3332 = vsel %vm3316, %v1168, 128
        %v3333 = vsel %vm3317, %v1168, 128
        %v3334 = vsel %vm3318, %v1168, 128
        %v3335 = vsel %vm3319, %v1168, 128
        %v3336 = vsel %vm3320, %v1168, 128
        %v3337 = vsel %vm3321, %v1168, 128
        %v3338 = vsel %vm3322, %v1168, 128
        %v3339 = vsel %vm3323, %v1168, 128
        %v3340 = vsel %vm3324, %v1168, 128
        %v3341 = vsel %vm3325, %v1168, 128
        %v3342 = vsel %vm3326, %v1168, 128
        %v3343 = vsel %vm3327, %v1168, 128
        %v3344 = vsel %vm3328, %v1168, 128
        %v3345 = vand.u32 %v3329, 65535
        %v3346 = vshra.s32 %v3329, 16
        %v3347 = vcvt.s32.f32 %v3345
        %v3348 = vcvt.s32.f32 %v3346
        %3349 = vmin.xlane.f32.xlu0 %v3348
        %v3350 = vpop.xlane.xlu0 %3349
        %vm3351 = vcmp.eq.f32.partialorder %v3348, %v3350
        %v3352 = vsel %vm3351, %v3347, inf
        %3353 = vmin.xlane.f32.xlu0 %v3352
        %v3354 = vpop.xlane.xlu0 %3353
        %v3355 = vcvt.f32.s32 %v3354
        %v3356 = vcvt.f32.s32 %v3350
        %v3357 = vshll.u32 %v3356, 16
        %v3358 = vadd.s32 %v3357, %v3355
        %v3359 = vand.u32 %v3330, 65535
        %v3360 = vshra.s32 %v3330, 16
        %v3361 = vcvt.s32.f32 %v3359
        %v3362 = vcvt.s32.f32 %v3360
        %3363 = vmin.xlane.f32.xlu0 %v3362
        %v3364 = vpop.xlane.xlu0 %3363
        %vm3365 = vcmp.eq.f32.partialorder %v3362, %v3364
        %v3366 = vsel %vm3365, %v3361, inf
        %3367 = vmin.xlane.f32.xlu0 %v3366
        %v3368 = vpop.xlane.xlu0 %3367
        %v3369 = vcvt.f32.s32 %v3368
        %v3370 = vcvt.f32.s32 %v3364
        %v3371 = vshll.u32 %v3370, 16
        %v3372 = vadd.s32 %v3371, %v3369
        %v3373 = vand.u32 %v3331, 65535
        %v3374 = vshra.s32 %v3331, 16
        %v3375 = vcvt.s32.f32 %v3373
        %v3376 = vcvt.s32.f32 %v3374
        %3377 = vmin.xlane.f32.xlu0 %v3376
        %v3378 = vpop.xlane.xlu0 %3377
        %vm3379 = vcmp.eq.f32.partialorder %v3376, %v3378
        %v3380 = vsel %vm3379, %v3375, inf
        %3381 = vmin.xlane.f32.xlu0 %v3380
        %v3382 = vpop.xlane.xlu0 %3381
        %v3383 = vcvt.f32.s32 %v3382
        %v3384 = vcvt.f32.s32 %v3378
        %v3385 = vshll.u32 %v3384, 16
        %v3386 = vadd.s32 %v3385, %v3383
        %v3387 = vand.u32 %v3332, 65535
        %v3388 = vshra.s32 %v3332, 16
        %v3389 = vcvt.s32.f32 %v3387
        %v3390 = vcvt.s32.f32 %v3388
        %3391 = vmin.xlane.f32.xlu0 %v3390
        %v3392 = vpop.xlane.xlu0 %3391
        %vm3393 = vcmp.eq.f32.partialorder %v3390, %v3392
        %v3394 = vsel %vm3393, %v3389, inf
        %3395 = vmin.xlane.f32.xlu0 %v3394
        %v3396 = vpop.xlane.xlu0 %3395
        %v3397 = vcvt.f32.s32 %v3396
        %v3398 = vcvt.f32.s32 %v3392
        %v3399 = vshll.u32 %v3398, 16
        %v3400 = vadd.s32 %v3399, %v3397
        %v3401 = vand.u32 %v3333, 65535
        %v3402 = vshra.s32 %v3333, 16
        %v3403 = vcvt.s32.f32 %v3401
        %v3404 = vcvt.s32.f32 %v3402
        %3405 = vmin.xlane.f32.xlu0 %v3404
        %v3406 = vpop.xlane.xlu0 %3405
        %vm3407 = vcmp.eq.f32.partialorder %v3404, %v3406
        %v3408 = vsel %vm3407, %v3403, inf
        %3409 = vmin.xlane.f32.xlu0 %v3408
        %v3410 = vpop.xlane.xlu0 %3409
        %v3411 = vcvt.f32.s32 %v3410
        %v3412 = vcvt.f32.s32 %v3406
        %v3413 = vshll.u32 %v3412, 16
        %v3414 = vadd.s32 %v3413, %v3411
        %v3415 = vand.u32 %v3334, 65535
        %v3416 = vshra.s32 %v3334, 16
        %v3417 = vcvt.s32.f32 %v3415
        %v3418 = vcvt.s32.f32 %v3416
        %3419 = vmin.xlane.f32.xlu0 %v3418
        %v3420 = vpop.xlane.xlu0 %3419
        %vm3421 = vcmp.eq.f32.partialorder %v3418, %v3420
        %v3422 = vsel %vm3421, %v3417, inf
        %3423 = vmin.xlane.f32.xlu0 %v3422
        %v3424 = vpop.xlane.xlu0 %3423
        %v3425 = vcvt.f32.s32 %v3424
        %v3426 = vcvt.f32.s32 %v3420
        %v3427 = vshll.u32 %v3426, 16
        %v3428 = vadd.s32 %v3427, %v3425
        %v3429 = vand.u32 %v3335, 65535
        %v3430 = vshra.s32 %v3335, 16
        %v3431 = vcvt.s32.f32 %v3429
        %v3432 = vcvt.s32.f32 %v3430
        %3433 = vmin.xlane.f32.xlu0 %v3432
        %v3434 = vpop.xlane.xlu0 %3433
        %vm3435 = vcmp.eq.f32.partialorder %v3432, %v3434
        %v3436 = vsel %vm3435, %v3431, inf
        %3437 = vmin.xlane.f32.xlu0 %v3436
        %v3438 = vpop.xlane.xlu0 %3437
        %v3439 = vcvt.f32.s32 %v3438
        %v3440 = vcvt.f32.s32 %v3434
        %v3441 = vshll.u32 %v3440, 16
        %v3442 = vadd.s32 %v3441, %v3439
        %v3443 = vand.u32 %v3336, 65535
        %v3444 = vshra.s32 %v3336, 16
        %v3445 = vcvt.s32.f32 %v3443
        %v3446 = vcvt.s32.f32 %v3444
        %3447 = vmin.xlane.f32.xlu0 %v3446
        %v3448 = vpop.xlane.xlu0 %3447
        %vm3449 = vcmp.eq.f32.partialorder %v3446, %v3448
        %v3450 = vsel %vm3449, %v3445, inf
        %3451 = vmin.xlane.f32.xlu0 %v3450
        %v3452 = vpop.xlane.xlu0 %3451
        %v3453 = vcvt.f32.s32 %v3452
        %v3454 = vcvt.f32.s32 %v3448
        %v3455 = vshll.u32 %v3454, 16
        %v3456 = vadd.s32 %v3455, %v3453
        %v3457 = vand.u32 %v3337, 65535
        %v3458 = vshra.s32 %v3337, 16
        %v3459 = vcvt.s32.f32 %v3457
        %v3460 = vcvt.s32.f32 %v3458
        %3461 = vmin.xlane.f32.xlu0 %v3460
        %v3462 = vpop.xlane.xlu0 %3461
        %vm3463 = vcmp.eq.f32.partialorder %v3460, %v3462
        %v3464 = vsel %vm3463, %v3459, inf
        %3465 = vmin.xlane.f32.xlu0 %v3464
        %v3466 = vpop.xlane.xlu0 %3465
        %v3467 = vcvt.f32.s32 %v3466
        %v3468 = vcvt.f32.s32 %v3462
        %v3469 = vshll.u32 %v3468, 16
        %v3470 = vadd.s32 %v3469, %v3467
        %v3471 = vand.u32 %v3338, 65535
        %v3472 = vshra.s32 %v3338, 16
        %v3473 = vcvt.s32.f32 %v3471
        %v3474 = vcvt.s32.f32 %v3472
        %3475 = vmin.xlane.f32.xlu0 %v3474
        %v3476 = vpop.xlane.xlu0 %3475
        %vm3477 = vcmp.eq.f32.partialorder %v3474, %v3476
        %v3478 = vsel %vm3477, %v3473, inf
        %3479 = vmin.xlane.f32.xlu0 %v3478
        %v3480 = vpop.xlane.xlu0 %3479
        %v3481 = vcvt.f32.s32 %v3480
        %v3482 = vcvt.f32.s32 %v3476
        %v3483 = vshll.u32 %v3482, 16
        %v3484 = vadd.s32 %v3483, %v3481
        %v3485 = vand.u32 %v3339, 65535
        %v3486 = vshra.s32 %v3339, 16
        %v3487 = vcvt.s32.f32 %v3485
        %v3488 = vcvt.s32.f32 %v3486
        %3489 = vmin.xlane.f32.xlu0 %v3488
        %v3490 = vpop.xlane.xlu0 %3489
        %vm3491 = vcmp.eq.f32.partialorder %v3488, %v3490
        %v3492 = vsel %vm3491, %v3487, inf
        %3493 = vmin.xlane.f32.xlu0 %v3492
        %v3494 = vpop.xlane.xlu0 %3493
        %v3495 = vcvt.f32.s32 %v3494
        %v3496 = vcvt.f32.s32 %v3490
        %v3497 = vshll.u32 %v3496, 16
        %v3498 = vadd.s32 %v3497, %v3495
        %v3499 = vand.u32 %v3340, 65535
        %v3500 = vshra.s32 %v3340, 16
        %v3501 = vcvt.s32.f32 %v3499
        %v3502 = vcvt.s32.f32 %v3500
        %3503 = vmin.xlane.f32.xlu0 %v3502
        %v3504 = vpop.xlane.xlu0 %3503
        %vm3505 = vcmp.eq.f32.partialorder %v3502, %v3504
        %v3506 = vsel %vm3505, %v3501, inf
        %3507 = vmin.xlane.f32.xlu0 %v3506
        %v3508 = vpop.xlane.xlu0 %3507
        %v3509 = vcvt.f32.s32 %v3508
        %v3510 = vcvt.f32.s32 %v3504
        %v3511 = vshll.u32 %v3510, 16
        %v3512 = vadd.s32 %v3511, %v3509
        %v3513 = vand.u32 %v3341, 65535
        %v3514 = vshra.s32 %v3341, 16
        %v3515 = vcvt.s32.f32 %v3513
        %v3516 = vcvt.s32.f32 %v3514
        %3517 = vmin.xlane.f32.xlu0 %v3516
        %v3518 = vpop.xlane.xlu0 %3517
        %vm3519 = vcmp.eq.f32.partialorder %v3516, %v3518
        %v3520 = vsel %vm3519, %v3515, inf
        %3521 = vmin.xlane.f32.xlu0 %v3520
        %v3522 = vpop.xlane.xlu0 %3521
        %v3523 = vcvt.f32.s32 %v3522
        %v3524 = vcvt.f32.s32 %v3518
        %v3525 = vshll.u32 %v3524, 16
        %v3526 = vadd.s32 %v3525, %v3523
        %v3527 = vand.u32 %v3342, 65535
        %v3528 = vshra.s32 %v3342, 16
        %v3529 = vcvt.s32.f32 %v3527
        %v3530 = vcvt.s32.f32 %v3528
        %3531 = vmin.xlane.f32.xlu0 %v3530
        %v3532 = vpop.xlane.xlu0 %3531
        %vm3533 = vcmp.eq.f32.partialorder %v3530, %v3532
        %v3534 = vsel %vm3533, %v3529, inf
        %3535 = vmin.xlane.f32.xlu0 %v3534
        %v3536 = vpop.xlane.xlu0 %3535
        %v3537 = vcvt.f32.s32 %v3536
        %v3538 = vcvt.f32.s32 %v3532
        %v3539 = vshll.u32 %v3538, 16
        %v3540 = vadd.s32 %v3539, %v3537
        %v3541 = vand.u32 %v3343, 65535
        %v3542 = vshra.s32 %v3343, 16
        %v3543 = vcvt.s32.f32 %v3541
        %v3544 = vcvt.s32.f32 %v3542
        %3545 = vmin.xlane.f32.xlu0 %v3544
        %v3546 = vpop.xlane.xlu0 %3545
        %vm3547 = vcmp.eq.f32.partialorder %v3544, %v3546
        %v3548 = vsel %vm3547, %v3543, inf
        %3549 = vmin.xlane.f32.xlu0 %v3548
        %v3550 = vpop.xlane.xlu0 %3549
        %v3551 = vcvt.f32.s32 %v3550
        %v3552 = vcvt.f32.s32 %v3546
        %v3553 = vshll.u32 %v3552, 16
        %v3554 = vadd.s32 %v3553, %v3551
        %v3555 = vand.u32 %v3344, 65535
        %v3556 = vshra.s32 %v3344, 16
        %v3557 = vcvt.s32.f32 %v3555
        %v3558 = vcvt.s32.f32 %v3556
        %3559 = vmin.xlane.f32.xlu0 %v3558
        %v3560 = vpop.xlane.xlu0 %3559
        %vm3561 = vcmp.eq.f32.partialorder %v3558, %v3560
        %v3562 = vsel %vm3561, %v3557, inf
        %3563 = vmin.xlane.f32.xlu0 %v3562
        %v3564 = vpop.xlane.xlu0 %3563
        %v3565 = vcvt.f32.s32 %v3564
        %v3566 = vcvt.f32.s32 %v3560
        %v3567 = vshll.u32 %v3566, 16
        %v3568 = vadd.s32 %v3567, %v3565
        %vm3569 = vcmp.eq.s32.totalorder %v1168, %v3358
        %vm3570 = vcmp.eq.s32.totalorder %v1168, %v3372
        %vm3571 = vcmp.eq.s32.totalorder %v1168, %v3386
        %vm3572 = vcmp.eq.s32.totalorder %v1168, %v3400
        %vm3573 = vcmp.eq.s32.totalorder %v1168, %v3414
        %vm3574 = vcmp.eq.s32.totalorder %v1168, %v3428
        %vm3575 = vcmp.eq.s32.totalorder %v1168, %v3442
        %vm3576 = vcmp.eq.s32.totalorder %v1168, %v3456
        %vm3577 = vcmp.eq.s32.totalorder %v1168, %v3470
        %vm3578 = vcmp.eq.s32.totalorder %v1168, %v3484
        %vm3579 = vcmp.eq.s32.totalorder %v1168, %v3498
        %vm3580 = vcmp.eq.s32.totalorder %v1168, %v3512
        %vm3581 = vcmp.eq.s32.totalorder %v1168, %v3526
        %vm3582 = vcmp.eq.s32.totalorder %v1168, %v3540
        %vm3583 = vcmp.eq.s32.totalorder %v1168, %v3554
        %vm3584 = vcmp.eq.s32.totalorder %v1168, %v3568
        %v3585 = vsel %vm3569, 1, 0
        %v3586 = vsel %vm3570, 1, 0
        %v3587 = vsel %vm3571, 1, 0
        %v3588 = vsel %vm3572, 1, 0
        %v3589 = vsel %vm3573, 1, 0
        %v3590 = vsel %vm3574, 1, 0
        %v3591 = vsel %vm3575, 1, 0
        %v3592 = vsel %vm3576, 1, 0
        %v3593 = vsel %vm3577, 1, 0
        %v3594 = vsel %vm3578, 1, 0
        %v3595 = vsel %vm3579, 1, 0
        %v3596 = vsel %vm3580, 1, 0
        %v3597 = vsel %vm3581, 1, 0
        %v3598 = vsel %vm3582, 1, 0
        %v3599 = vsel %vm3583, 1, 0
        %v3600 = vsel %vm3584, 1, 0
        %v3601 = vcvt.s32.f32 %v3585
        %v3602 = vcvt.s32.f32 %v3586
        %v3603 = vcvt.s32.f32 %v3587
        %v3604 = vcvt.s32.f32 %v3588
        %v3605 = vcvt.s32.f32 %v3589
        %v3606 = vcvt.s32.f32 %v3590
        %v3607 = vcvt.s32.f32 %v3591
        %v3608 = vcvt.s32.f32 %v3592
        %v3609 = vcvt.s32.f32 %v3593
        %v3610 = vcvt.s32.f32 %v3594
        %v3611 = vcvt.s32.f32 %v3595
        %v3612 = vcvt.s32.f32 %v3596
        %v3613 = vcvt.s32.f32 %v3597
        %v3614 = vcvt.s32.f32 %v3598
        %v3615 = vcvt.s32.f32 %v3599
        %v3616 = vcvt.s32.f32 %v3600
        %v3617 = vpack.c.bf16 %v3602, %v3601
        %v3618 = vpack.c.bf16 %v3604, %v3603
        %v3619 = vpack.c.bf16 %v3606, %v3605
        %v3620 = vpack.c.bf16 %v3608, %v3607
        %v3621 = vpack.c.bf16 %v3610, %v3609
        %v3622 = vpack.c.bf16 %v3612, %v3611
        %v3623 = vpack.c.bf16 %v3614, %v3613
        %v3624 = vpack.c.bf16 %v3616, %v3615
        %3625 = vst [vmem:[#allocation2 + $0x30] sm:$0xff] %v3617
        %3626 = vst [vmem:[#allocation2 + $0x70] sm:$0xff] %v3618
        %3627 = vst [vmem:[#allocation2 + $0xb0] sm:$0xff] %v3619
        %3628 = vst [vmem:[#allocation2 + $0xf0] sm:$0xff] %v3620
        %3629 = vst [vmem:[#allocation2 + $0x130] sm:$0xff] %v3621
        %3630 = vst [vmem:[#allocation2 + $0x170] sm:$0xff] %v3622
        %3631 = vst [vmem:[#allocation2 + $0x1b0] sm:$0xff] %v3623
        %3632 = vst [vmem:[#allocation2 + $0x1f0] sm:$0xff] %v3624
        %3633 = vmax.xlane.f32.xlu0 %v1091
        %v3634 = vpop.xlane.xlu0 %3633
        %3635 = vmax.xlane.f32.xlu0 %v1095
        %v3636 = vpop.xlane.xlu0 %3635
        %3637 = vmax.xlane.f32.xlu0 %v1101
        %v3638 = vpop.xlane.xlu0 %3637
        %3639 = vmax.xlane.f32.xlu0 %v1105
        %v3640 = vpop.xlane.xlu0 %3639
        %3641 = vmax.xlane.f32.xlu0 %v1111
        %v3642 = vpop.xlane.xlu0 %3641
        %3643 = vmax.xlane.f32.xlu0 %v1115
        %v3644 = vpop.xlane.xlu0 %3643
        %3645 = vmax.xlane.f32.xlu0 %v1121
        %v3646 = vpop.xlane.xlu0 %3645
        %3647 = vmax.xlane.f32.xlu0 %v1125
        %v3648 = vpop.xlane.xlu0 %3647
        %3649 = vmax.xlane.f32.xlu0 %v1131
        %v3650 = vpop.xlane.xlu0 %3649
        %3651 = vmax.xlane.f32.xlu0 %v1135
        %v3652 = vpop.xlane.xlu0 %3651
        %3653 = vmax.xlane.f32.xlu0 %v1141
        %v3654 = vpop.xlane.xlu0 %3653
        %3655 = vmax.xlane.f32.xlu0 %v1145
        %v3656 = vpop.xlane.xlu0 %3655
        %3657 = vmax.xlane.f32.xlu0 %v1151
        %v3658 = vpop.xlane.xlu0 %3657
        %3659 = vmax.xlane.f32.xlu0 %v1155
        %v3660 = vpop.xlane.xlu0 %3659
        %3661 = vmax.xlane.f32.xlu0 %v1161
        %v3662 = vpop.xlane.xlu0 %3661
        %3663 = vmax.xlane.f32.xlu0 %v1165
        %v3664 = vpop.xlane.xlu0 %3663
        %vm3665 = vcmp.eq.f32.partialorder %v1091, %v3634
        %vm3666 = vcmp.eq.f32.partialorder %v1095, %v3636
        %vm3667 = vcmp.eq.f32.partialorder %v1101, %v3638
        %vm3668 = vcmp.eq.f32.partialorder %v1105, %v3640
        %vm3669 = vcmp.eq.f32.partialorder %v1111, %v3642
        %vm3670 = vcmp.eq.f32.partialorder %v1115, %v3644
        %vm3671 = vcmp.eq.f32.partialorder %v1121, %v3646
        %vm3672 = vcmp.eq.f32.partialorder %v1125, %v3648
        %vm3673 = vcmp.eq.f32.partialorder %v1131, %v3650
        %vm3674 = vcmp.eq.f32.partialorder %v1135, %v3652
        %vm3675 = vcmp.eq.f32.partialorder %v1141, %v3654
        %vm3676 = vcmp.eq.f32.partialorder %v1145, %v3656
        %vm3677 = vcmp.eq.f32.partialorder %v1151, %v3658
        %vm3678 = vcmp.eq.f32.partialorder %v1155, %v3660
        %vm3679 = vcmp.eq.f32.partialorder %v1161, %v3662
        %vm3680 = vcmp.eq.f32.partialorder %v1165, %v3664
        %v3681 = vsel %vm3665, %v1168, 128
        %v3682 = vsel %vm3666, %v1168, 128
        %v3683 = vsel %vm3667, %v1168, 128
        %v3684 = vsel %vm3668, %v1168, 128
        %v3685 = vsel %vm3669, %v1168, 128
        %v3686 = vsel %vm3670, %v1168, 128
        %v3687 = vsel %vm3671, %v1168, 128
        %v3688 = vsel %vm3672, %v1168, 128
        %v3689 = vsel %vm3673, %v1168, 128
        %v3690 = vsel %vm3674, %v1168, 128
        %v3691 = vsel %vm3675, %v1168, 128
        %v3692 = vsel %vm3676, %v1168, 128
        %v3693 = vsel %vm3677, %v1168, 128
        %v3694 = vsel %vm3678, %v1168, 128
        %v3695 = vsel %vm3679, %v1168, 128
        %v3696 = vsel %vm3680, %v1168, 128
        %v3697 = vand.u32 %v3681, 65535
        %v3698 = vshra.s32 %v3681, 16
        %v3699 = vcvt.s32.f32 %v3697
        %v3700 = vcvt.s32.f32 %v3698
        %3701 = vmin.xlane.f32.xlu0 %v3700
        %v3702 = vpop.xlane.xlu0 %3701
        %vm3703 = vcmp.eq.f32.partialorder %v3700, %v3702
        %v3704 = vsel %vm3703, %v3699, inf
        %3705 = vmin.xlane.f32.xlu0 %v3704
        %v3706 = vpop.xlane.xlu0 %3705
        %v3707 = vcvt.f32.s32 %v3706
        %v3708 = vcvt.f32.s32 %v3702
        %v3709 = vshll.u32 %v3708, 16
        %v3710 = vadd.s32 %v3709, %v3707
        %v3711 = vand.u32 %v3682, 65535
        %v3712 = vshra.s32 %v3682, 16
        %v3713 = vcvt.s32.f32 %v3711
        %v3714 = vcvt.s32.f32 %v3712
        %3715 = vmin.xlane.f32.xlu0 %v3714
        %v3716 = vpop.xlane.xlu0 %3715
        %vm3717 = vcmp.eq.f32.partialorder %v3714, %v3716
        %v3718 = vsel %vm3717, %v3713, inf
        %3719 = vmin.xlane.f32.xlu0 %v3718
        %v3720 = vpop.xlane.xlu0 %3719
        %v3721 = vcvt.f32.s32 %v3720
        %v3722 = vcvt.f32.s32 %v3716
        %v3723 = vshll.u32 %v3722, 16
        %v3724 = vadd.s32 %v3723, %v3721
        %v3725 = vand.u32 %v3683, 65535
        %v3726 = vshra.s32 %v3683, 16
        %v3727 = vcvt.s32.f32 %v3725
        %v3728 = vcvt.s32.f32 %v3726
        %3729 = vmin.xlane.f32.xlu0 %v3728
        %v3730 = vpop.xlane.xlu0 %3729
        %vm3731 = vcmp.eq.f32.partialorder %v3728, %v3730
        %v3732 = vsel %vm3731, %v3727, inf
        %3733 = vmin.xlane.f32.xlu0 %v3732
        %v3734 = vpop.xlane.xlu0 %3733
        %v3735 = vcvt.f32.s32 %v3734
        %v3736 = vcvt.f32.s32 %v3730
        %v3737 = vshll.u32 %v3736, 16
        %v3738 = vadd.s32 %v3737, %v3735
        %v3739 = vand.u32 %v3684, 65535
        %v3740 = vshra.s32 %v3684, 16
        %v3741 = vcvt.s32.f32 %v3739
        %v3742 = vcvt.s32.f32 %v3740
        %3743 = vmin.xlane.f32.xlu0 %v3742
        %v3744 = vpop.xlane.xlu0 %3743
        %vm3745 = vcmp.eq.f32.partialorder %v3742, %v3744
        %v3746 = vsel %vm3745, %v3741, inf
        %3747 = vmin.xlane.f32.xlu0 %v3746
        %v3748 = vpop.xlane.xlu0 %3747
        %v3749 = vcvt.f32.s32 %v3748
        %v3750 = vcvt.f32.s32 %v3744
        %v3751 = vshll.u32 %v3750, 16
        %v3752 = vadd.s32 %v3751, %v3749
        %v3753 = vand.u32 %v3685, 65535
        %v3754 = vshra.s32 %v3685, 16
        %v3755 = vcvt.s32.f32 %v3753
        %v3756 = vcvt.s32.f32 %v3754
        %3757 = vmin.xlane.f32.xlu0 %v3756
        %v3758 = vpop.xlane.xlu0 %3757
        %vm3759 = vcmp.eq.f32.partialorder %v3756, %v3758
        %v3760 = vsel %vm3759, %v3755, inf
        %3761 = vmin.xlane.f32.xlu0 %v3760
        %v3762 = vpop.xlane.xlu0 %3761
        %v3763 = vcvt.f32.s32 %v3762
        %v3764 = vcvt.f32.s32 %v3758
        %v3765 = vshll.u32 %v3764, 16
        %v3766 = vadd.s32 %v3765, %v3763
        %v3767 = vand.u32 %v3686, 65535
        %v3768 = vshra.s32 %v3686, 16
        %v3769 = vcvt.s32.f32 %v3767
        %v3770 = vcvt.s32.f32 %v3768
        %3771 = vmin.xlane.f32.xlu0 %v3770
        %v3772 = vpop.xlane.xlu0 %3771
        %vm3773 = vcmp.eq.f32.partialorder %v3770, %v3772
        %v3774 = vsel %vm3773, %v3769, inf
        %3775 = vmin.xlane.f32.xlu0 %v3774
        %v3776 = vpop.xlane.xlu0 %3775
        %v3777 = vcvt.f32.s32 %v3776
        %v3778 = vcvt.f32.s32 %v3772
        %v3779 = vshll.u32 %v3778, 16
        %v3780 = vadd.s32 %v3779, %v3777
        %v3781 = vand.u32 %v3687, 65535
        %v3782 = vshra.s32 %v3687, 16
        %v3783 = vcvt.s32.f32 %v3781
        %v3784 = vcvt.s32.f32 %v3782
        %3785 = vmin.xlane.f32.xlu0 %v3784
        %v3786 = vpop.xlane.xlu0 %3785
        %vm3787 = vcmp.eq.f32.partialorder %v3784, %v3786
        %v3788 = vsel %vm3787, %v3783, inf
        %3789 = vmin.xlane.f32.xlu0 %v3788
        %v3790 = vpop.xlane.xlu0 %3789
        %v3791 = vcvt.f32.s32 %v3790
        %v3792 = vcvt.f32.s32 %v3786
        %v3793 = vshll.u32 %v3792, 16
        %v3794 = vadd.s32 %v3793, %v3791
        %v3795 = vand.u32 %v3688, 65535
        %v3796 = vshra.s32 %v3688, 16
        %v3797 = vcvt.s32.f32 %v3795
        %v3798 = vcvt.s32.f32 %v3796
        %3799 = vmin.xlane.f32.xlu0 %v3798
        %v3800 = vpop.xlane.xlu0 %3799
        %vm3801 = vcmp.eq.f32.partialorder %v3798, %v3800
        %v3802 = vsel %vm3801, %v3797, inf
        %3803 = vmin.xlane.f32.xlu0 %v3802
        %v3804 = vpop.xlane.xlu0 %3803
        %v3805 = vcvt.f32.s32 %v3804
        %v3806 = vcvt.f32.s32 %v3800
        %v3807 = vshll.u32 %v3806, 16
        %v3808 = vadd.s32 %v3807, %v3805
        %v3809 = vand.u32 %v3689, 65535
        %v3810 = vshra.s32 %v3689, 16
        %v3811 = vcvt.s32.f32 %v3809
        %v3812 = vcvt.s32.f32 %v3810
        %3813 = vmin.xlane.f32.xlu0 %v3812
        %v3814 = vpop.xlane.xlu0 %3813
        %vm3815 = vcmp.eq.f32.partialorder %v3812, %v3814
        %v3816 = vsel %vm3815, %v3811, inf
        %3817 = vmin.xlane.f32.xlu0 %v3816
        %v3818 = vpop.xlane.xlu0 %3817
        %v3819 = vcvt.f32.s32 %v3818
        %v3820 = vcvt.f32.s32 %v3814
        %v3821 = vshll.u32 %v3820, 16
        %v3822 = vadd.s32 %v3821, %v3819
        %v3823 = vand.u32 %v3690, 65535
        %v3824 = vshra.s32 %v3690, 16
        %v3825 = vcvt.s32.f32 %v3823
        %v3826 = vcvt.s32.f32 %v3824
        %3827 = vmin.xlane.f32.xlu0 %v3826
        %v3828 = vpop.xlane.xlu0 %3827
        %vm3829 = vcmp.eq.f32.partialorder %v3826, %v3828
        %v3830 = vsel %vm3829, %v3825, inf
        %3831 = vmin.xlane.f32.xlu0 %v3830
        %v3832 = vpop.xlane.xlu0 %3831
        %v3833 = vcvt.f32.s32 %v3832
        %v3834 = vcvt.f32.s32 %v3828
        %v3835 = vshll.u32 %v3834, 16
        %v3836 = vadd.s32 %v3835, %v3833
        %v3837 = vand.u32 %v3691, 65535
        %v3838 = vshra.s32 %v3691, 16
        %v3839 = vcvt.s32.f32 %v3837
        %v3840 = vcvt.s32.f32 %v3838
        %3841 = vmin.xlane.f32.xlu0 %v3840
        %v3842 = vpop.xlane.xlu0 %3841
        %vm3843 = vcmp.eq.f32.partialorder %v3840, %v3842
        %v3844 = vsel %vm3843, %v3839, inf
        %3845 = vmin.xlane.f32.xlu0 %v3844
        %v3846 = vpop.xlane.xlu0 %3845
        %v3847 = vcvt.f32.s32 %v3846
        %v3848 = vcvt.f32.s32 %v3842
        %v3849 = vshll.u32 %v3848, 16
        %v3850 = vadd.s32 %v3849, %v3847
        %v3851 = vand.u32 %v3692, 65535
        %v3852 = vshra.s32 %v3692, 16
        %v3853 = vcvt.s32.f32 %v3851
        %v3854 = vcvt.s32.f32 %v3852
        %3855 = vmin.xlane.f32.xlu0 %v3854
        %v3856 = vpop.xlane.xlu0 %3855
        %vm3857 = vcmp.eq.f32.partialorder %v3854, %v3856
        %v3858 = vsel %vm3857, %v3853, inf
        %3859 = vmin.xlane.f32.xlu0 %v3858
        %v3860 = vpop.xlane.xlu0 %3859
        %v3861 = vcvt.f32.s32 %v3860
        %v3862 = vcvt.f32.s32 %v3856
        %v3863 = vshll.u32 %v3862, 16
        %v3864 = vadd.s32 %v3863, %v3861
        %v3865 = vand.u32 %v3693, 65535
        %v3866 = vshra.s32 %v3693, 16
        %v3867 = vcvt.s32.f32 %v3865
        %v3868 = vcvt.s32.f32 %v3866
        %3869 = vmin.xlane.f32.xlu0 %v3868
        %v3870 = vpop.xlane.xlu0 %3869
        %vm3871 = vcmp.eq.f32.partialorder %v3868, %v3870
        %v3872 = vsel %vm3871, %v3867, inf
        %3873 = vmin.xlane.f32.xlu0 %v3872
        %v3874 = vpop.xlane.xlu0 %3873
        %v3875 = vcvt.f32.s32 %v3874
        %v3876 = vcvt.f32.s32 %v3870
        %v3877 = vshll.u32 %v3876, 16
        %v3878 = vadd.s32 %v3877, %v3875
        %v3879 = vand.u32 %v3694, 65535
        %v3880 = vshra.s32 %v3694, 16
        %v3881 = vcvt.s32.f32 %v3879
        %v3882 = vcvt.s32.f32 %v3880
        %3883 = vmin.xlane.f32.xlu0 %v3882
        %v3884 = vpop.xlane.xlu0 %3883
        %vm3885 = vcmp.eq.f32.partialorder %v3882, %v3884
        %v3886 = vsel %vm3885, %v3881, inf
        %3887 = vmin.xlane.f32.xlu0 %v3886
        %v3888 = vpop.xlane.xlu0 %3887
        %v3889 = vcvt.f32.s32 %v3888
        %v3890 = vcvt.f32.s32 %v3884
        %v3891 = vshll.u32 %v3890, 16
        %v3892 = vadd.s32 %v3891, %v3889
        %v3893 = vand.u32 %v3695, 65535
        %v3894 = vshra.s32 %v3695, 16
        %v3895 = vcvt.s32.f32 %v3893
        %v3896 = vcvt.s32.f32 %v3894
        %3897 = vmin.xlane.f32.xlu0 %v3896
        %v3898 = vpop.xlane.xlu0 %3897
        %vm3899 = vcmp.eq.f32.partialorder %v3896, %v3898
        %v3900 = vsel %vm3899, %v3895, inf
        %3901 = vmin.xlane.f32.xlu0 %v3900
        %v3902 = vpop.xlane.xlu0 %3901
        %v3903 = vcvt.f32.s32 %v3902
        %v3904 = vcvt.f32.s32 %v3898
        %v3905 = vshll.u32 %v3904, 16
        %v3906 = vadd.s32 %v3905, %v3903
        %v3907 = vand.u32 %v3696, 65535
        %v3908 = vshra.s32 %v3696, 16
        %v3909 = vcvt.s32.f32 %v3907
        %v3910 = vcvt.s32.f32 %v3908
        %3911 = vmin.xlane.f32.xlu0 %v3910
        %v3912 = vpop.xlane.xlu0 %3911
        %vm3913 = vcmp.eq.f32.partialorder %v3910, %v3912
        %v3914 = vsel %vm3913, %v3909, inf
        %3915 = vmin.xlane.f32.xlu0 %v3914
        %v3916 = vpop.xlane.xlu0 %3915
        %v3917 = vcvt.f32.s32 %v3916
        %v3918 = vcvt.f32.s32 %v3912
        %v3919 = vshll.u32 %v3918, 16
        %v3920 = vadd.s32 %v3919, %v3917
        %vm3921 = vcmp.eq.s32.totalorder %v1168, %v3710
        %vm3922 = vcmp.eq.s32.totalorder %v1168, %v3724
        %vm3923 = vcmp.eq.s32.totalorder %v1168, %v3738
        %vm3924 = vcmp.eq.s32.totalorder %v1168, %v3752
        %vm3925 = vcmp.eq.s32.totalorder %v1168, %v3766
        %vm3926 = vcmp.eq.s32.totalorder %v1168, %v3780
        %vm3927 = vcmp.eq.s32.totalorder %v1168, %v3794
        %vm3928 = vcmp.eq.s32.totalorder %v1168, %v3808
        %vm3929 = vcmp.eq.s32.totalorder %v1168, %v3822
        %vm3930 = vcmp.eq.s32.totalorder %v1168, %v3836
        %vm3931 = vcmp.eq.s32.totalorder %v1168, %v3850
        %vm3932 = vcmp.eq.s32.totalorder %v1168, %v3864
        %vm3933 = vcmp.eq.s32.totalorder %v1168, %v3878
        %vm3934 = vcmp.eq.s32.totalorder %v1168, %v3892
        %vm3935 = vcmp.eq.s32.totalorder %v1168, %v3906
        %vm3936 = vcmp.eq.s32.totalorder %v1168, %v3920
        %v3937 = vsel %vm3921, 1, 0
        %v3938 = vsel %vm3922, 1, 0
        %v3939 = vsel %vm3923, 1, 0
        %v3940 = vsel %vm3924, 1, 0
        %v3941 = vsel %vm3925, 1, 0
        %v3942 = vsel %vm3926, 1, 0
        %v3943 = vsel %vm3927, 1, 0
        %v3944 = vsel %vm3928, 1, 0
        %v3945 = vsel %vm3929, 1, 0
        %v3946 = vsel %vm3930, 1, 0
        %v3947 = vsel %vm3931, 1, 0
        %v3948 = vsel %vm3932, 1, 0
        %v3949 = vsel %vm3933, 1, 0
        %v3950 = vsel %vm3934, 1, 0
        %v3951 = vsel %vm3935, 1, 0
        %v3952 = vsel %vm3936, 1, 0
        %v3953 = vcvt.s32.f32 %v3937
        %v3954 = vcvt.s32.f32 %v3938
        %v3955 = vcvt.s32.f32 %v3939
        %v3956 = vcvt.s32.f32 %v3940
        %v3957 = vcvt.s32.f32 %v3941
        %v3958 = vcvt.s32.f32 %v3942
        %v3959 = vcvt.s32.f32 %v3943
        %v3960 = vcvt.s32.f32 %v3944
        %v3961 = vcvt.s32.f32 %v3945
        %v3962 = vcvt.s32.f32 %v3946
        %v3963 = vcvt.s32.f32 %v3947
        %v3964 = vcvt.s32.f32 %v3948
        %v3965 = vcvt.s32.f32 %v3949
        %v3966 = vcvt.s32.f32 %v3950
        %v3967 = vcvt.s32.f32 %v3951
        %v3968 = vcvt.s32.f32 %v3952
        %v3969 = vpack.c.bf16 %v3954, %v3953
        %v3970 = vpack.c.bf16 %v3956, %v3955
        %v3971 = vpack.c.bf16 %v3958, %v3957
        %v3972 = vpack.c.bf16 %v3960, %v3959
        %v3973 = vpack.c.bf16 %v3962, %v3961
        %v3974 = vpack.c.bf16 %v3964, %v3963
        %v3975 = vpack.c.bf16 %v3966, %v3965
        %v3976 = vpack.c.bf16 %v3968, %v3967
        %3977 = vst [vmem:[#allocation2 + $0x38] sm:$0xff] %v3969
        %3978 = vst [vmem:[#allocation2 + $0x78] sm:$0xff] %v3970
        %3979 = vst [vmem:[#allocation2 + $0xb8] sm:$0xff] %v3971
        %3980 = vst [vmem:[#allocation2 + $0xf8] sm:$0xff] %v3972
        %3981 = vst [vmem:[#allocation2 + $0x138] sm:$0xff] %v3973
        %3982 = vst [vmem:[#allocation2 + $0x178] sm:$0xff] %v3974
        %3983 = vst [vmem:[#allocation2 + $0x1b8] sm:$0xff] %v3975
        %3984 = vst [vmem:[#allocation2 + $0x1f8] sm:$0xff] %v3976
        %v3985 = vld [vmem:[#allocation2] sm:$0xff]
        %v3986 = vld [vmem:[#allocation2 + $0x8] sm:$0xff]
        %v3987 = vld [vmem:[#allocation2 + $0x10] sm:$0xff]
        %v3988 = vld [vmem:[#allocation2 + $0x18] sm:$0xff]
        %v3989 = vld [vmem:[#allocation2 + $0x20] sm:$0xff]
        %v3990 = vld [vmem:[#allocation2 + $0x28] sm:$0xff]
        %v3991 = vld [vmem:[#allocation2 + $0x30] sm:$0xff]
        %v3992 = vld [vmem:[#allocation2 + $0x38] sm:$0xff]
        %v3993 = vld [vmem:[#allocation2 + $0x40] sm:$0xff]
        %v3994 = vld [vmem:[#allocation2 + $0x48] sm:$0xff]
        %v3995 = vld [vmem:[#allocation2 + $0x50] sm:$0xff]
        %v3996 = vld [vmem:[#allocation2 + $0x58] sm:$0xff]
        %v3997 = vld [vmem:[#allocation2 + $0x60] sm:$0xff]
        %v3998 = vld [vmem:[#allocation2 + $0x68] sm:$0xff]
        %v3999 = vld [vmem:[#allocation2 + $0x70] sm:$0xff]
        %v4000 = vld [vmem:[#allocation2 + $0x78] sm:$0xff]
        %v4001 = vld [vmem:[#allocation2 + $0x80] sm:$0xff]
        %v4002 = vld [vmem:[#allocation2 + $0x88] sm:$0xff]
        %v4003 = vld [vmem:[#allocation2 + $0x90] sm:$0xff]
        %v4004 = vld [vmem:[#allocation2 + $0x98] sm:$0xff]
        %v4005 = vld [vmem:[#allocation2 + $0xa0] sm:$0xff]
        %v4006 = vld [vmem:[#allocation2 + $0xa8] sm:$0xff]
        %v4007 = vld [vmem:[#allocation2 + $0xb0] sm:$0xff]
        %v4008 = vld [vmem:[#allocation2 + $0xb8] sm:$0xff]
        %v4009 = vld [vmem:[#allocation2 + $0xc0] sm:$0xff]
        %v4010 = vld [vmem:[#allocation2 + $0xc8] sm:$0xff]
        %v4011 = vld [vmem:[#allocation2 + $0xd0] sm:$0xff]
        %v4012 = vld [vmem:[#allocation2 + $0xd8] sm:$0xff]
        %v4013 = vld [vmem:[#allocation2 + $0xe0] sm:$0xff]
        %v4014 = vld [vmem:[#allocation2 + $0xe8] sm:$0xff]
        %v4015 = vld [vmem:[#allocation2 + $0xf0] sm:$0xff]
        %v4016 = vld [vmem:[#allocation2 + $0xf8] sm:$0xff]
        %v4017 = vld [vmem:[#allocation2 + $0x100] sm:$0xff]
        %v4018 = vld [vmem:[#allocation2 + $0x108] sm:$0xff]
        %v4019 = vld [vmem:[#allocation2 + $0x110] sm:$0xff]
        %v4020 = vld [vmem:[#allocation2 + $0x118] sm:$0xff]
        %v4021 = vld [vmem:[#allocation2 + $0x120] sm:$0xff]
        %v4022 = vld [vmem:[#allocation2 + $0x128] sm:$0xff]
        %v4023 = vld [vmem:[#allocation2 + $0x130] sm:$0xff]
        %v4024 = vld [vmem:[#allocation2 + $0x138] sm:$0xff]
        %v4025 = vld [vmem:[#allocation2 + $0x140] sm:$0xff]
        %v4026 = vld [vmem:[#allocation2 + $0x148] sm:$0xff]
        %v4027 = vld [vmem:[#allocation2 + $0x150] sm:$0xff]
        %v4028 = vld [vmem:[#allocation2 + $0x158] sm:$0xff]
        %v4029 = vld [vmem:[#allocation2 + $0x160] sm:$0xff]
        %v4030 = vld [vmem:[#allocation2 + $0x168] sm:$0xff]
        %v4031 = vld [vmem:[#allocation2 + $0x170] sm:$0xff]
        %v4032 = vld [vmem:[#allocation2 + $0x178] sm:$0xff]
        %v4033 = vld [vmem:[#allocation2 + $0x180] sm:$0xff]
        %v4034 = vld [vmem:[#allocation2 + $0x188] sm:$0xff]
        %v4035 = vld [vmem:[#allocation2 + $0x190] sm:$0xff]
        %v4036 = vld [vmem:[#allocation2 + $0x198] sm:$0xff]
        %v4037 = vld [vmem:[#allocation2 + $0x1a0] sm:$0xff]
        %v4038 = vld [vmem:[#allocation2 + $0x1a8] sm:$0xff]
        %v4039 = vld [vmem:[#allocation2 + $0x1b0] sm:$0xff]
        %v4040 = vld [vmem:[#allocation2 + $0x1b8] sm:$0xff]
        %v4041 = vld [vmem:[#allocation2 + $0x1c0] sm:$0xff]
        %v4042 = vld [vmem:[#allocation2 + $0x1c8] sm:$0xff]
        %v4043 = vld [vmem:[#allocation2 + $0x1d0] sm:$0xff]
        %v4044 = vld [vmem:[#allocation2 + $0x1d8] sm:$0xff]
        %v4045 = vld [vmem:[#allocation2 + $0x1e0] sm:$0xff]
        %v4046 = vld [vmem:[#allocation2 + $0x1e8] sm:$0xff]
        %v4047 = vld [vmem:[#allocation2 + $0x1f0] sm:$0xff]
        %v4048 = vld [vmem:[#allocation2 + $0x1f8] sm:$0xff]
        %v4049 = vld [vmem:[%s5] sm:$0xf]
        %v4050 = vld [vmem:[%s5 + $0x4] sm:$0xf]
        %v4051 = vld [vmem:[%s5 + $0x8] sm:$0xf]
        %v4052 = vld [vmem:[%s5 + $0xc] sm:$0xf]
        %v4053 = vld [vmem:[%s5 + $0x10] sm:$0xf]
        %v4054 = vld [vmem:[%s5 + $0x14] sm:$0xf]
        %v4055 = vld [vmem:[%s5 + $0x18] sm:$0xf]
        %v4056 = vld [vmem:[%s5 + $0x1c] sm:$0xf]
        %v4057 = vld [vmem:[%s5 + $0x20] sm:$0xf]
        %v4058 = vld [vmem:[%s5 + $0x24] sm:$0xf]
        %v4059 = vld [vmem:[%s5 + $0x28] sm:$0xf]
        %v4060 = vld [vmem:[%s5 + $0x2c] sm:$0xf]
        %v4061 = vld [vmem:[%s5 + $0x30] sm:$0xf]
        %v4062 = vld [vmem:[%s5 + $0x34] sm:$0xf]
        %v4063 = vld [vmem:[%s5 + $0x38] sm:$0xf]
        %v4064 = vld [vmem:[%s5 + $0x3c] sm:$0xf]
        %v4065 = vld [vmem:[%s5 + $0x40] sm:$0xf]
        %v4066 = vld [vmem:[%s5 + $0x44] sm:$0xf]
        %v4067 = vld [vmem:[%s5 + $0x48] sm:$0xf]
        %v4068 = vld [vmem:[%s5 + $0x4c] sm:$0xf]
        %v4069 = vld [vmem:[%s5 + $0x50] sm:$0xf]
        %v4070 = vld [vmem:[%s5 + $0x54] sm:$0xf]
        %v4071 = vld [vmem:[%s5 + $0x58] sm:$0xf]
        %v4072 = vld [vmem:[%s5 + $0x5c] sm:$0xf]
        %v4073 = vld [vmem:[%s5 + $0x60] sm:$0xf]
        %v4074 = vld [vmem:[%s5 + $0x64] sm:$0xf]
        %v4075 = vld [vmem:[%s5 + $0x68] sm:$0xf]
        %v4076 = vld [vmem:[%s5 + $0x6c] sm:$0xf]
        %v4077 = vld [vmem:[%s5 + $0x70] sm:$0xf]
        %v4078 = vld [vmem:[%s5 + $0x74] sm:$0xf]
        %v4079 = vld [vmem:[%s5 + $0x78] sm:$0xf]
        %v4080 = vld [vmem:[%s5 + $0x7c] sm:$0xf]
        %v4081 = vld [vmem:[%s5 + $0x80] sm:$0xf]
        %v4082 = vld [vmem:[%s5 + $0x84] sm:$0xf]
        %v4083 = vld [vmem:[%s5 + $0x88] sm:$0xf]
        %v4084 = vld [vmem:[%s5 + $0x8c] sm:$0xf]
        %v4085 = vld [vmem:[%s5 + $0x90] sm:$0xf]
        %v4086 = vld [vmem:[%s5 + $0x94] sm:$0xf]
        %v4087 = vld [vmem:[%s5 + $0x98] sm:$0xf]
        %v4088 = vld [vmem:[%s5 + $0x9c] sm:$0xf]
        %v4089 = vld [vmem:[%s5 + $0xa0] sm:$0xf]
        %v4090 = vld [vmem:[%s5 + $0xa4] sm:$0xf]
        %v4091 = vld [vmem:[%s5 + $0xa8] sm:$0xf]
        %v4092 = vld [vmem:[%s5 + $0xac] sm:$0xf]
        %v4093 = vld [vmem:[%s5 + $0xb0] sm:$0xf]
        %v4094 = vld [vmem:[%s5 + $0xb4] sm:$0xf]
        %v4095 = vld [vmem:[%s5 + $0xb8] sm:$0xf]
        %v4096 = vld [vmem:[%s5 + $0xbc] sm:$0xf]
        %v4097 = vld [vmem:[%s5 + $0xc0] sm:$0xf]
        %v4098 = vld [vmem:[%s5 + $0xc4] sm:$0xf]
        %v4099 = vld [vmem:[%s5 + $0xc8] sm:$0xf]
        %v4100 = vld [vmem:[%s5 + $0xcc] sm:$0xf]
        %v4101 = vld [vmem:[%s5 + $0xd0] sm:$0xf]
        %v4102 = vld [vmem:[%s5 + $0xd4] sm:$0xf]
        %v4103 = vld [vmem:[%s5 + $0xd8] sm:$0xf]
        %v4104 = vld [vmem:[%s5 + $0xdc] sm:$0xf]
        %v4105 = vld [vmem:[%s5 + $0xe0] sm:$0xf]
        %v4106 = vld [vmem:[%s5 + $0xe4] sm:$0xf]
        %v4107 = vld [vmem:[%s5 + $0xe8] sm:$0xf]
        %v4108 = vld [vmem:[%s5 + $0xec] sm:$0xf]
        %v4109 = vld [vmem:[%s5 + $0xf0] sm:$0xf]
        %v4110 = vld [vmem:[%s5 + $0xf4] sm:$0xf]
        %v4111 = vld [vmem:[%s5 + $0xf8] sm:$0xf]
        %v4112 = vld [vmem:[%s5 + $0xfc] sm:$0xf]
        %v4113 = vld [vmem:[%s5 + $0x100] sm:$0xf]
        %v4114 = vld [vmem:[%s5 + $0x104] sm:$0xf]
        %v4115 = vld [vmem:[%s5 + $0x108] sm:$0xf]
        %v4116 = vld [vmem:[%s5 + $0x10c] sm:$0xf]
        %v4117 = vld [vmem:[%s5 + $0x110] sm:$0xf]
        %v4118 = vld [vmem:[%s5 + $0x114] sm:$0xf]
        %v4119 = vld [vmem:[%s5 + $0x118] sm:$0xf]
        %v4120 = vld [vmem:[%s5 + $0x11c] sm:$0xf]
        %v4121 = vld [vmem:[%s5 + $0x120] sm:$0xf]
        %v4122 = vld [vmem:[%s5 + $0x124] sm:$0xf]
        %v4123 = vld [vmem:[%s5 + $0x128] sm:$0xf]
        %v4124 = vld [vmem:[%s5 + $0x12c] sm:$0xf]
        %v4125 = vld [vmem:[%s5 + $0x130] sm:$0xf]
        %v4126 = vld [vmem:[%s5 + $0x134] sm:$0xf]
        %v4127 = vld [vmem:[%s5 + $0x138] sm:$0xf]
        %v4128 = vld [vmem:[%s5 + $0x13c] sm:$0xf]
        %v4129 = vld [vmem:[%s5 + $0x140] sm:$0xf]
        %v4130 = vld [vmem:[%s5 + $0x144] sm:$0xf]
        %v4131 = vld [vmem:[%s5 + $0x148] sm:$0xf]
        %v4132 = vld [vmem:[%s5 + $0x14c] sm:$0xf]
        %v4133 = vld [vmem:[%s5 + $0x150] sm:$0xf]
        %v4134 = vld [vmem:[%s5 + $0x154] sm:$0xf]
        %v4135 = vld [vmem:[%s5 + $0x158] sm:$0xf]
        %v4136 = vld [vmem:[%s5 + $0x15c] sm:$0xf]
        %v4137 = vld [vmem:[%s5 + $0x160] sm:$0xf]
        %v4138 = vld [vmem:[%s5 + $0x164] sm:$0xf]
        %v4139 = vld [vmem:[%s5 + $0x168] sm:$0xf]
        %v4140 = vld [vmem:[%s5 + $0x16c] sm:$0xf]
        %v4141 = vld [vmem:[%s5 + $0x170] sm:$0xf]
        %v4142 = vld [vmem:[%s5 + $0x174] sm:$0xf]
        %v4143 = vld [vmem:[%s5 + $0x178] sm:$0xf]
        %v4144 = vld [vmem:[%s5 + $0x17c] sm:$0xf]
        %v4145 = vld [vmem:[%s5 + $0x180] sm:$0xf]
        %v4146 = vld [vmem:[%s5 + $0x184] sm:$0xf]
        %v4147 = vld [vmem:[%s5 + $0x188] sm:$0xf]
        %v4148 = vld [vmem:[%s5 + $0x18c] sm:$0xf]
        %v4149 = vld [vmem:[%s5 + $0x190] sm:$0xf]
        %v4150 = vld [vmem:[%s5 + $0x194] sm:$0xf]
        %v4151 = vld [vmem:[%s5 + $0x198] sm:$0xf]
        %v4152 = vld [vmem:[%s5 + $0x19c] sm:$0xf]
        %v4153 = vld [vmem:[%s5 + $0x1a0] sm:$0xf]
        %v4154 = vld [vmem:[%s5 + $0x1a4] sm:$0xf]
        %v4155 = vld [vmem:[%s5 + $0x1a8] sm:$0xf]
        %v4156 = vld [vmem:[%s5 + $0x1ac] sm:$0xf]
        %v4157 = vld [vmem:[%s5 + $0x1b0] sm:$0xf]
        %v4158 = vld [vmem:[%s5 + $0x1b4] sm:$0xf]
        %v4159 = vld [vmem:[%s5 + $0x1b8] sm:$0xf]
        %v4160 = vld [vmem:[%s5 + $0x1bc] sm:$0xf]
        %v4161 = vld [vmem:[%s5 + $0x1c0] sm:$0xf]
        %v4162 = vld [vmem:[%s5 + $0x1c4] sm:$0xf]
        %v4163 = vld [vmem:[%s5 + $0x1c8] sm:$0xf]
        %v4164 = vld [vmem:[%s5 + $0x1cc] sm:$0xf]
        %v4165 = vld [vmem:[%s5 + $0x1d0] sm:$0xf]
        %v4166 = vld [vmem:[%s5 + $0x1d4] sm:$0xf]
        %v4167 = vld [vmem:[%s5 + $0x1d8] sm:$0xf]
        %v4168 = vld [vmem:[%s5 + $0x1dc] sm:$0xf]
        %v4169 = vld [vmem:[%s5 + $0x1e0] sm:$0xf]
        %v4170 = vld [vmem:[%s5 + $0x1e4] sm:$0xf]
        %v4171 = vld [vmem:[%s5 + $0x1e8] sm:$0xf]
        %v4172 = vld [vmem:[%s5 + $0x1ec] sm:$0xf]
        %v4173 = vld [vmem:[%s5 + $0x1f0] sm:$0xf]
        %v4174 = vld [vmem:[%s5 + $0x1f4] sm:$0xf]
        %v4175 = vld [vmem:[%s5 + $0x1f8] sm:$0xf]
        %v4176 = vld [vmem:[%s5 + $0x1fc] sm:$0xf]
        %v4177 = vld [vmem:[%s6] sm:$0x1]
        %v4179 = vlaneseq
        %v4180 = vshrl.u32 %v4179, 7
        %v4181 = vsub.s32 0, %v4180
        %v4182 = vrot.slane %v4177, %v4181
        %v4312 = vunpack.c.l.b16 %v4049
        %v4313 = vunpack.c.l.b16 %v4050
        %v4314 = vunpack.c.l.b16 %v4051
        %v4315 = vunpack.c.l.b16 %v4052
        %v4316 = vunpack.c.l.b16 %v4053
        %v4317 = vunpack.c.l.b16 %v4054
        %v4318 = vunpack.c.l.b16 %v4055
        %v4319 = vunpack.c.l.b16 %v4056
        %v4320 = vunpack.c.l.b16 %v4057
        %v4321 = vunpack.c.l.b16 %v4058
        %v4322 = vunpack.c.l.b16 %v4059
        %v4323 = vunpack.c.l.b16 %v4060
        %v4324 = vunpack.c.l.b16 %v4061
        %v4325 = vunpack.c.l.b16 %v4062
        %v4326 = vunpack.c.l.b16 %v4063
        %v4327 = vunpack.c.l.b16 %v4064
        %v4328 = vunpack.c.l.b16 %v4065
        %v4329 = vunpack.c.l.b16 %v4066
        %v4330 = vunpack.c.l.b16 %v4067
        %v4331 = vunpack.c.l.b16 %v4068
        %v4332 = vunpack.c.l.b16 %v4069
        %v4333 = vunpack.c.l.b16 %v4070
        %v4334 = vunpack.c.l.b16 %v4071
        %v4335 = vunpack.c.l.b16 %v4072
        %v4336 = vunpack.c.l.b16 %v4073
        %v4337 = vunpack.c.l.b16 %v4074
        %v4338 = vunpack.c.l.b16 %v4075
        %v4339 = vunpack.c.l.b16 %v4076
        %v4340 = vunpack.c.l.b16 %v4077
        %v4341 = vunpack.c.l.b16 %v4078
        %v4342 = vunpack.c.l.b16 %v4079
        %v4343 = vunpack.c.l.b16 %v4080
        %v4344 = vunpack.c.l.b16 %v4081
        %v4345 = vunpack.c.l.b16 %v4082
        %v4346 = vunpack.c.l.b16 %v4083
        %v4347 = vunpack.c.l.b16 %v4084
        %v4348 = vunpack.c.l.b16 %v4085
        %v4349 = vunpack.c.l.b16 %v4086
        %v4350 = vunpack.c.l.b16 %v4087
        %v4351 = vunpack.c.l.b16 %v4088
        %v4352 = vunpack.c.l.b16 %v4089
        %v4353 = vunpack.c.l.b16 %v4090
        %v4354 = vunpack.c.l.b16 %v4091
        %v4355 = vunpack.c.l.b16 %v4092
        %v4356 = vunpack.c.l.b16 %v4093
        %v4357 = vunpack.c.l.b16 %v4094
        %v4358 = vunpack.c.l.b16 %v4095
        %v4359 = vunpack.c.l.b16 %v4096
        %v4360 = vunpack.c.l.b16 %v4097
        %v4361 = vunpack.c.l.b16 %v4098
        %v4362 = vunpack.c.l.b16 %v4099
        %v4363 = vunpack.c.l.b16 %v4100
        %v4364 = vunpack.c.l.b16 %v4101
        %v4365 = vunpack.c.l.b16 %v4102
        %v4366 = vunpack.c.l.b16 %v4103
        %v4367 = vunpack.c.l.b16 %v4104
        %v4368 = vunpack.c.l.b16 %v4105
        %v4369 = vunpack.c.l.b16 %v4106
        %v4370 = vunpack.c.l.b16 %v4107
        %v4371 = vunpack.c.l.b16 %v4108
        %v4372 = vunpack.c.l.b16 %v4109
        %v4373 = vunpack.c.l.b16 %v4110
        %v4374 = vunpack.c.l.b16 %v4111
        %v4375 = vunpack.c.l.b16 %v4112
        %v4376 = vunpack.c.l.b16 %v4113
        %v4377 = vunpack.c.l.b16 %v4114
        %v4378 = vunpack.c.l.b16 %v4115
        %v4379 = vunpack.c.l.b16 %v4116
        %v4380 = vunpack.c.l.b16 %v4117
        %v4381 = vunpack.c.l.b16 %v4118
        %v4382 = vunpack.c.l.b16 %v4119
        %v4383 = vunpack.c.l.b16 %v4120
        %v4384 = vunpack.c.l.b16 %v4121
        %v4385 = vunpack.c.l.b16 %v4122
        %v4386 = vunpack.c.l.b16 %v4123
        %v4387 = vunpack.c.l.b16 %v4124
        %v4388 = vunpack.c.l.b16 %v4125
        %v4389 = vunpack.c.l.b16 %v4126
        %v4390 = vunpack.c.l.b16 %v4127
        %v4391 = vunpack.c.l.b16 %v4128
        %v4392 = vunpack.c.l.b16 %v4129
        %v4393 = vunpack.c.l.b16 %v4130
        %v4394 = vunpack.c.l.b16 %v4131
        %v4395 = vunpack.c.l.b16 %v4132
        %v4396 = vunpack.c.l.b16 %v4133
        %v4397 = vunpack.c.l.b16 %v4134
        %v4398 = vunpack.c.l.b16 %v4135
        %v4399 = vunpack.c.l.b16 %v4136
        %v4400 = vunpack.c.l.b16 %v4137
        %v4401 = vunpack.c.l.b16 %v4138
        %v4402 = vunpack.c.l.b16 %v4139
        %v4403 = vunpack.c.l.b16 %v4140
        %v4404 = vunpack.c.l.b16 %v4141
        %v4405 = vunpack.c.l.b16 %v4142
        %v4406 = vunpack.c.l.b16 %v4143
        %v4407 = vunpack.c.l.b16 %v4144
        %v4408 = vunpack.c.l.b16 %v4145
        %v4409 = vunpack.c.l.b16 %v4146
        %v4410 = vunpack.c.l.b16 %v4147
        %v4411 = vunpack.c.l.b16 %v4148
        %v4412 = vunpack.c.l.b16 %v4149
        %v4413 = vunpack.c.l.b16 %v4150
        %v4414 = vunpack.c.l.b16 %v4151
        %v4415 = vunpack.c.l.b16 %v4152
        %v4416 = vunpack.c.l.b16 %v4153
        %v4417 = vunpack.c.l.b16 %v4154
        %v4418 = vunpack.c.l.b16 %v4155
        %v4419 = vunpack.c.l.b16 %v4156
        %v4420 = vunpack.c.l.b16 %v4157
        %v4421 = vunpack.c.l.b16 %v4158
        %v4422 = vunpack.c.l.b16 %v4159
        %v4423 = vunpack.c.l.b16 %v4160
        %v4424 = vunpack.c.l.b16 %v4161
        %v4425 = vunpack.c.l.b16 %v4162
        %v4426 = vunpack.c.l.b16 %v4163
        %v4427 = vunpack.c.l.b16 %v4164
        %v4428 = vunpack.c.l.b16 %v4165
        %v4429 = vunpack.c.l.b16 %v4166
        %v4430 = vunpack.c.l.b16 %v4167
        %v4431 = vunpack.c.l.b16 %v4168
        %v4432 = vunpack.c.l.b16 %v4169
        %v4433 = vunpack.c.l.b16 %v4170
        %v4434 = vunpack.c.l.b16 %v4171
        %v4435 = vunpack.c.l.b16 %v4172
        %v4436 = vunpack.c.l.b16 %v4173
        %v4437 = vunpack.c.l.b16 %v4174
        %v4438 = vunpack.c.l.b16 %v4175
        %v4439 = vunpack.c.l.b16 %v4176
        %v4440 = vpack.c.b16 %v4313, %v4312
        %v4441 = vpack.c.b16 %v4315, %v4314
        %v4442 = vpack.c.b16 %v4317, %v4316
        %v4443 = vpack.c.b16 %v4319, %v4318
        %v4444 = vpack.c.b16 %v4321, %v4320
        %v4445 = vpack.c.b16 %v4323, %v4322
        %v4446 = vpack.c.b16 %v4325, %v4324
        %v4447 = vpack.c.b16 %v4327, %v4326
        %v4448 = vpack.c.b16 %v4329, %v4328
        %v4449 = vpack.c.b16 %v4331, %v4330
        %v4450 = vpack.c.b16 %v4333, %v4332
        %v4451 = vpack.c.b16 %v4335, %v4334
        %v4452 = vpack.c.b16 %v4337, %v4336
        %v4453 = vpack.c.b16 %v4339, %v4338
        %v4454 = vpack.c.b16 %v4341, %v4340
        %v4455 = vpack.c.b16 %v4343, %v4342
        %v4456 = vpack.c.b16 %v4345, %v4344
        %v4457 = vpack.c.b16 %v4347, %v4346
        %v4458 = vpack.c.b16 %v4349, %v4348
        %v4459 = vpack.c.b16 %v4351, %v4350
        %v4460 = vpack.c.b16 %v4353, %v4352
        %v4461 = vpack.c.b16 %v4355, %v4354
        %v4462 = vpack.c.b16 %v4357, %v4356
        %v4463 = vpack.c.b16 %v4359, %v4358
        %v4464 = vpack.c.b16 %v4361, %v4360
        %v4465 = vpack.c.b16 %v4363, %v4362
        %v4466 = vpack.c.b16 %v4365, %v4364
        %v4467 = vpack.c.b16 %v4367, %v4366
        %v4468 = vpack.c.b16 %v4369, %v4368
        %v4469 = vpack.c.b16 %v4371, %v4370
        %v4470 = vpack.c.b16 %v4373, %v4372
        %v4471 = vpack.c.b16 %v4375, %v4374
        %v4472 = vpack.c.b16 %v4377, %v4376
        %v4473 = vpack.c.b16 %v4379, %v4378
        %v4474 = vpack.c.b16 %v4381, %v4380
        %v4475 = vpack.c.b16 %v4383, %v4382
        %v4476 = vpack.c.b16 %v4385, %v4384
        %v4477 = vpack.c.b16 %v4387, %v4386
        %v4478 = vpack.c.b16 %v4389, %v4388
        %v4479 = vpack.c.b16 %v4391, %v4390
        %v4480 = vpack.c.b16 %v4393, %v4392
        %v4481 = vpack.c.b16 %v4395, %v4394
        %v4482 = vpack.c.b16 %v4397, %v4396
        %v4483 = vpack.c.b16 %v4399, %v4398
        %v4484 = vpack.c.b16 %v4401, %v4400
        %v4485 = vpack.c.b16 %v4403, %v4402
        %v4486 = vpack.c.b16 %v4405, %v4404
        %v4487 = vpack.c.b16 %v4407, %v4406
        %v4488 = vpack.c.b16 %v4409, %v4408
        %v4489 = vpack.c.b16 %v4411, %v4410
        %v4490 = vpack.c.b16 %v4413, %v4412
        %v4491 = vpack.c.b16 %v4415, %v4414
        %v4492 = vpack.c.b16 %v4417, %v4416
        %v4493 = vpack.c.b16 %v4419, %v4418
        %v4494 = vpack.c.b16 %v4421, %v4420
        %v4495 = vpack.c.b16 %v4423, %v4422
        %v4496 = vpack.c.b16 %v4425, %v4424
        %v4497 = vpack.c.b16 %v4427, %v4426
        %v4498 = vpack.c.b16 %v4429, %v4428
        %v4499 = vpack.c.b16 %v4431, %v4430
        %v4500 = vpack.c.b16 %v4433, %v4432
        %v4501 = vpack.c.b16 %v4435, %v4434
        %v4502 = vpack.c.b16 %v4437, %v4436
        %v4503 = vpack.c.b16 %v4439, %v4438
        %4568 = vmatprep.subr.bf16.mxu0 0
        %4569 = vmatpush1.bf16.msra.mxu0 %v4440
        %4570 = vmatprep.subr.bf16.mxu0 0
        %4571 = vmatpush1.bf16.msra.mxu0 %v4441
        %4572 = vmatprep.subr.bf16.mxu0 0
        %4573 = vmatpush1.bf16.msra.mxu0 %v4442
        %4574 = vmatprep.subr.bf16.mxu0 0
        %4575 = vmatpush1.bf16.msra.mxu0 %v4443
        %4576 = vmatprep.subr.bf16.mxu0 0
        %4577 = vmatpush1.bf16.msra.mxu0 %v4444
        %4578 = vmatprep.subr.bf16.mxu0 0
        %4579 = vmatpush1.bf16.msra.mxu0 %v4445
        %4580 = vmatprep.subr.bf16.mxu0 0
        %4581 = vmatpush1.bf16.msra.mxu0 %v4446
        %4582 = vmatprep.subr.bf16.mxu0 0
        %4583 = vmatpush1.bf16.msra.mxu0 %v4447
        %4584 = vmatprep.subr.bf16.mxu0 0
        %4585 = vmatpush1.bf16.msra.mxu0 %v4448
        %4586 = vmatprep.subr.bf16.mxu0 0
        %4587 = vmatpush1.bf16.msra.mxu0 %v4449
        %4588 = vmatprep.subr.bf16.mxu0 0
        %4589 = vmatpush1.bf16.msra.mxu0 %v4450
        %4590 = vmatprep.subr.bf16.mxu0 0
        %4591 = vmatpush1.bf16.msra.mxu0 %v4451
        %4592 = vmatprep.subr.bf16.mxu0 0
        %4593 = vmatpush1.bf16.msra.mxu0 %v4452
        %4594 = vmatprep.subr.bf16.mxu0 0
        %4595 = vmatpush1.bf16.msra.mxu0 %v4453
        %4596 = vmatprep.subr.bf16.mxu0 0
        %4597 = vmatpush1.bf16.msra.mxu0 %v4454
        %4598 = vmatprep.subr.bf16.mxu0 0
        %4599 = vmatpush1.bf16.msra.mxu0 %v4455
        %4600 = vmatprep.mubr.bf16.mxu0 %v3986
        %4601 = vmatmul.mubr.bf16.gmra.mrb[0].mxu0 %v3985
        %v4602 = vpop.f32.mrb[0].mxu0
        %v4603 = vadd.f32 %v4182, %v4602
        %v4604 = vpop.f32.mrb[0].mxu0
        %v4605 = vpop.f32.mrb[0].mxu0
        %v4606 = vadd.f32 %v4182, %v4605
        %v4607 = vpop.f32.mrb[0].mxu0
        %4608 = vmatprep.mubr.bf16.mxu0 %v3994
        %4609 = vmatmul.mubr.bf16.gmra.mrb[0].mxu0 %v3993
        %v4610 = vpop.f32.mrb[0].mxu0
        %v4611 = vadd.f32 %v4182, %v4610
        %v4612 = vpop.f32.mrb[0].mxu0
        %v4613 = vpop.f32.mrb[0].mxu0
        %v4614 = vadd.f32 %v4182, %v4613
        %v4615 = vpop.f32.mrb[0].mxu0
        %4616 = vmatprep.mubr.bf16.mxu0 %v4002
        %4617 = vmatmul.mubr.bf16.gmra.mrb[0].mxu0 %v4001
        %v4618 = vpop.f32.mrb[0].mxu0
        %v4619 = vadd.f32 %v4182, %v4618
        %v4620 = vpop.f32.mrb[0].mxu0
        %v4621 = vpop.f32.mrb[0].mxu0
        %v4622 = vadd.f32 %v4182, %v4621
        %v4623 = vpop.f32.mrb[0].mxu0
        %4624 = vmatprep.mubr.bf16.mxu0 %v4010
        %4625 = vmatmul.mubr.bf16.gmra.mrb[0].mxu0 %v4009
        %v4626 = vpop.f32.mrb[0].mxu0
        %v4627 = vadd.f32 %v4182, %v4626
        %v4628 = vpop.f32.mrb[0].mxu0
        %v4629 = vpop.f32.mrb[0].mxu0
        %v4630 = vadd.f32 %v4182, %v4629
        %v4631 = vpop.f32.mrb[0].mxu0
        %4632 = vmatprep.mubr.bf16.mxu0 %v4018
        %4633 = vmatmul.mubr.bf16.gmra.mrb[0].mxu0 %v4017
        %v4634 = vpop.f32.mrb[0].mxu0
        %v4635 = vadd.f32 %v4182, %v4634
        %v4636 = vpop.f32.mrb[0].mxu0
        %v4637 = vpop.f32.mrb[0].mxu0
        %v4638 = vadd.f32 %v4182, %v4637
        %v4639 = vpop.f32.mrb[0].mxu0
        %4640 = vmatprep.mubr.bf16.mxu0 %v4026
        %4641 = vmatmul.mubr.bf16.gmra.mrb[0].mxu0 %v4025
        %v4642 = vpop.f32.mrb[0].mxu0
        %v4643 = vadd.f32 %v4182, %v4642
        %v4644 = vpop.f32.mrb[0].mxu0
        %v4645 = vpop.f32.mrb[0].mxu0
        %v4646 = vadd.f32 %v4182, %v4645
        %v4647 = vpop.f32.mrb[0].mxu0
        %4648 = vmatprep.mubr.bf16.mxu0 %v4034
        %4649 = vmatmul.mubr.bf16.gmra.mrb[0].mxu0 %v4033
        %v4650 = vpop.f32.mrb[0].mxu0
        %v4651 = vadd.f32 %v4182, %v4650
        %v4652 = vpop.f32.mrb[0].mxu0
        %v4653 = vpop.f32.mrb[0].mxu0
        %v4654 = vadd.f32 %v4182, %v4653
        %v4655 = vpop.f32.mrb[0].mxu0
        %4656 = vmatprep.mubr.bf16.mxu0 %v4042
        %4657 = vmatmul.mubr.bf16.gmra.mrb[0].mxu0 %v4041
        %v4658 = vpop.f32.mrb[0].mxu0
        %v4659 = vadd.f32 %v4182, %v4658
        %v4660 = vpop.f32.mrb[0].mxu0
        %v4661 = vpop.f32.mrb[0].mxu0
        %v4662 = vadd.f32 %v4182, %v4661
        %v4663 = vpop.f32.mrb[0].mxu0
        %4664 = vdwg.mxu0
        %4665 = vmatprep.subr.bf16.mxu0 0
        %4666 = vmatpush1.bf16.msra.mxu0 %v4456
        %4667 = vmatprep.subr.bf16.mxu0 0
        %4668 = vmatpush1.bf16.msra.mxu0 %v4457
        %4669 = vmatprep.subr.bf16.mxu0 0
        %4670 = vmatpush1.bf16.msra.mxu0 %v4458
        %4671 = vmatprep.subr.bf16.mxu0 0
        %4672 = vmatpush1.bf16.msra.mxu0 %v4459
        %4673 = vmatprep.subr.bf16.mxu0 0
        %4674 = vmatpush1.bf16.msra.mxu0 %v4460
        %4675 = vmatprep.subr.bf16.mxu0 0
        %4676 = vmatpush1.bf16.msra.mxu0 %v4461
        %4677 = vmatprep.subr.bf16.mxu0 0
        %4678 = vmatpush1.bf16.msra.mxu0 %v4462
        %4679 = vmatprep.subr.bf16.mxu0 0
        %4680 = vmatpush1.bf16.msra.mxu0 %v4463
        %4681 = vmatprep.subr.bf16.mxu0 0
        %4682 = vmatpush1.bf16.msra.mxu0 %v4464
        %4683 = vmatprep.subr.bf16.mxu0 0
        %4684 = vmatpush1.bf16.msra.mxu0 %v4465
        %4685 = vmatprep.subr.bf16.mxu0 0
        %4686 = vmatpush1.bf16.msra.mxu0 %v4466
        %4687 = vmatprep.subr.bf16.mxu0 0
        %4688 = vmatpush1.bf16.msra.mxu0 %v4467
        %4689 = vmatprep.subr.bf16.mxu0 0
        %4690 = vmatpush1.bf16.msra.mxu0 %v4468
        %4691 = vmatprep.subr.bf16.mxu0 0
        %4692 = vmatpush1.bf16.msra.mxu0 %v4469
        %4693 = vmatprep.subr.bf16.mxu0 0
        %4694 = vmatpush1.bf16.msra.mxu0 %v4470
        %4695 = vmatprep.subr.bf16.mxu0 0
        %4696 = vmatpush1.bf16.msra.mxu0 %v4471
        %4697 = vmatprep.mubr.bf16.mxu0 %v3988
        %4698 = vmatmul.mubr.bf16.gmra.mrb[0].mxu0 %v3987
        %v4699 = vpop.f32.mrb[0].mxu0
        %v4700 = vadd.f32 %v4603, %v4699
        %v4701 = vpop.f32.mrb[0].mxu0
        %v4702 = vpop.f32.mrb[0].mxu0
        %v4703 = vadd.f32 %v4606, %v4702
        %v4704 = vpop.f32.mrb[0].mxu0
        %4705 = vmatprep.mubr.bf16.mxu0 %v3996
        %4706 = vmatmul.mubr.bf16.gmra.mrb[0].mxu0 %v3995
        %v4707 = vpop.f32.mrb[0].mxu0
        %v4708 = vadd.f32 %v4611, %v4707
        %v4709 = vpop.f32.mrb[0].mxu0
        %v4710 = vpop.f32.mrb[0].mxu0
        %v4711 = vadd.f32 %v4614, %v4710
        %v4712 = vpop.f32.mrb[0].mxu0
        %4713 = vmatprep.mubr.bf16.mxu0 %v4004
        %4714 = vmatmul.mubr.bf16.gmra.mrb[0].mxu0 %v4003
        %v4715 = vpop.f32.mrb[0].mxu0
        %v4716 = vadd.f32 %v4619, %v4715
        %v4717 = vpop.f32.mrb[0].mxu0
        %v4718 = vpop.f32.mrb[0].mxu0
        %v4719 = vadd.f32 %v4622, %v4718
        %v4720 = vpop.f32.mrb[0].mxu0
        %4721 = vmatprep.mubr.bf16.mxu0 %v4012
        %4722 = vmatmul.mubr.bf16.gmra.mrb[0].mxu0 %v4011
        %v4723 = vpop.f32.mrb[0].mxu0
        %v4724 = vadd.f32 %v4627, %v4723
        %v4725 = vpop.f32.mrb[0].mxu0
        %v4726 = vpop.f32.mrb[0].mxu0
        %v4727 = vadd.f32 %v4630, %v4726
        %v4728 = vpop.f32.mrb[0].mxu0
        %4729 = vmatprep.mubr.bf16.mxu0 %v4020
        %4730 = vmatmul.mubr.bf16.gmra.mrb[0].mxu0 %v4019
        %v4731 = vpop.f32.mrb[0].mxu0
        %v4732 = vadd.f32 %v4635, %v4731
        %v4733 = vpop.f32.mrb[0].mxu0
        %v4734 = vpop.f32.mrb[0].mxu0
        %v4735 = vadd.f32 %v4638, %v4734
        %v4736 = vpop.f32.mrb[0].mxu0
        %4737 = vmatprep.mubr.bf16.mxu0 %v4028
        %4738 = vmatmul.mubr.bf16.gmra.mrb[0].mxu0 %v4027
        %v4739 = vpop.f32.mrb[0].mxu0
        %v4740 = vadd.f32 %v4643, %v4739
        %v4741 = vpop.f32.mrb[0].mxu0
        %v4742 = vpop.f32.mrb[0].mxu0
        %v4743 = vadd.f32 %v4646, %v4742
        %v4744 = vpop.f32.mrb[0].mxu0
        %4745 = vmatprep.mubr.bf16.mxu0 %v4036
        %4746 = vmatmul.mubr.bf16.gmra.mrb[0].mxu0 %v4035
        %v4747 = vpop.f32.mrb[0].mxu0
        %v4748 = vadd.f32 %v4651, %v4747
        %v4749 = vpop.f32.mrb[0].mxu0
        %v4750 = vpop.f32.mrb[0].mxu0
        %v4751 = vadd.f32 %v4654, %v4750
        %v4752 = vpop.f32.mrb[0].mxu0
        %4753 = vmatprep.mubr.bf16.mxu0 %v4044
        %4754 = vmatmul.mubr.bf16.gmra.mrb[0].mxu0 %v4043
        %v4755 = vpop.f32.mrb[0].mxu0
        %v4756 = vadd.f32 %v4659, %v4755
        %v4757 = vpop.f32.mrb[0].mxu0
        %v4758 = vpop.f32.mrb[0].mxu0
        %v4759 = vadd.f32 %v4662, %v4758
        %v4760 = vpop.f32.mrb[0].mxu0
        %4761 = vdwg.mxu0
        %4762 = vmatprep.subr.bf16.mxu0 0
        %4763 = vmatpush1.bf16.msra.mxu0 %v4472
        %4764 = vmatprep.subr.bf16.mxu0 0
        %4765 = vmatpush1.bf16.msra.mxu0 %v4473
        %4766 = vmatprep.subr.bf16.mxu0 0
        %4767 = vmatpush1.bf16.msra.mxu0 %v4474
        %4768 = vmatprep.subr.bf16.mxu0 0
        %4769 = vmatpush1.bf16.msra.mxu0 %v4475
        %4770 = vmatprep.subr.bf16.mxu0 0
        %4771 = vmatpush1.bf16.msra.mxu0 %v4476
        %4772 = vmatprep.subr.bf16.mxu0 0
        %4773 = vmatpush1.bf16.msra.mxu0 %v4477
        %4774 = vmatprep.subr.bf16.mxu0 0
        %4775 = vmatpush1.bf16.msra.mxu0 %v4478
        %4776 = vmatprep.subr.bf16.mxu0 0
        %4777 = vmatpush1.bf16.msra.mxu0 %v4479
        %4778 = vmatprep.subr.bf16.mxu0 0
        %4779 = vmatpush1.bf16.msra.mxu0 %v4480
        %4780 = vmatprep.subr.bf16.mxu0 0
        %4781 = vmatpush1.bf16.msra.mxu0 %v4481
        %4782 = vmatprep.subr.bf16.mxu0 0
        %4783 = vmatpush1.bf16.msra.mxu0 %v4482
        %4784 = vmatprep.subr.bf16.mxu0 0
        %4785 = vmatpush1.bf16.msra.mxu0 %v4483
        %4786 = vmatprep.subr.bf16.mxu0 0
        %4787 = vmatpush1.bf16.msra.mxu0 %v4484
        %4788 = vmatprep.subr.bf16.mxu0 0
        %4789 = vmatpush1.bf16.msra.mxu0 %v4485
        %4790 = vmatprep.subr.bf16.mxu0 0
        %4791 = vmatpush1.bf16.msra.mxu0 %v4486
        %4792 = vmatprep.subr.bf16.mxu0 0
        %4793 = vmatpush1.bf16.msra.mxu0 %v4487
        %4794 = vmatprep.mubr.bf16.mxu0 %v3990
        %4795 = vmatmul.mubr.bf16.gmra.mrb[0].mxu0 %v3989
        %v4796 = vpop.f32.mrb[0].mxu0
        %v4797 = vadd.f32 %v4700, %v4796
        %v4798 = vpop.f32.mrb[0].mxu0
        %v4799 = vpop.f32.mrb[0].mxu0
        %v4800 = vadd.f32 %v4703, %v4799
        %v4801 = vpop.f32.mrb[0].mxu0
        %4802 = vmatprep.mubr.bf16.mxu0 %v3998
        %4803 = vmatmul.mubr.bf16.gmra.mrb[0].mxu0 %v3997
        %v4804 = vpop.f32.mrb[0].mxu0
        %v4805 = vadd.f32 %v4708, %v4804
        %v4806 = vpop.f32.mrb[0].mxu0
        %v4807 = vpop.f32.mrb[0].mxu0
        %v4808 = vadd.f32 %v4711, %v4807
        %v4809 = vpop.f32.mrb[0].mxu0
        %4810 = vmatprep.mubr.bf16.mxu0 %v4006
        %4811 = vmatmul.mubr.bf16.gmra.mrb[0].mxu0 %v4005
        %v4812 = vpop.f32.mrb[0].mxu0
        %v4813 = vadd.f32 %v4716, %v4812
        %v4814 = vpop.f32.mrb[0].mxu0
        %v4815 = vpop.f32.mrb[0].mxu0
        %v4816 = vadd.f32 %v4719, %v4815
        %v4817 = vpop.f32.mrb[0].mxu0
        %4818 = vmatprep.mubr.bf16.mxu0 %v4014
        %4819 = vmatmul.mubr.bf16.gmra.mrb[0].mxu0 %v4013
        %v4820 = vpop.f32.mrb[0].mxu0
        %v4821 = vadd.f32 %v4724, %v4820
        %v4822 = vpop.f32.mrb[0].mxu0
        %v4823 = vpop.f32.mrb[0].mxu0
        %v4824 = vadd.f32 %v4727, %v4823
        %v4825 = vpop.f32.mrb[0].mxu0
        %4826 = vmatprep.mubr.bf16.mxu0 %v4022
        %4827 = vmatmul.mubr.bf16.gmra.mrb[0].mxu0 %v4021
        %v4828 = vpop.f32.mrb[0].mxu0
        %v4829 = vadd.f32 %v4732, %v4828
        %v4830 = vpop.f32.mrb[0].mxu0
        %v4831 = vpop.f32.mrb[0].mxu0
        %v4832 = vadd.f32 %v4735, %v4831
        %v4833 = vpop.f32.mrb[0].mxu0
        %4834 = vmatprep.mubr.bf16.mxu0 %v4030
        %4835 = vmatmul.mubr.bf16.gmra.mrb[0].mxu0 %v4029
        %v4836 = vpop.f32.mrb[0].mxu0
        %v4837 = vadd.f32 %v4740, %v4836
        %v4838 = vpop.f32.mrb[0].mxu0
        %v4839 = vpop.f32.mrb[0].mxu0
        %v4840 = vadd.f32 %v4743, %v4839
        %v4841 = vpop.f32.mrb[0].mxu0
        %4842 = vmatprep.mubr.bf16.mxu0 %v4038
        %4843 = vmatmul.mubr.bf16.gmra.mrb[0].mxu0 %v4037
        %v4844 = vpop.f32.mrb[0].mxu0
        %v4845 = vadd.f32 %v4748, %v4844
        %v4846 = vpop.f32.mrb[0].mxu0
        %v4847 = vpop.f32.mrb[0].mxu0
        %v4848 = vadd.f32 %v4751, %v4847
        %v4849 = vpop.f32.mrb[0].mxu0
        %4850 = vmatprep.mubr.bf16.mxu0 %v4046
        %4851 = vmatmul.mubr.bf16.gmra.mrb[0].mxu0 %v4045
        %v4852 = vpop.f32.mrb[0].mxu0
        %v4853 = vadd.f32 %v4756, %v4852
        %v4854 = vpop.f32.mrb[0].mxu0
        %v4855 = vpop.f32.mrb[0].mxu0
        %v4856 = vadd.f32 %v4759, %v4855
        %v4857 = vpop.f32.mrb[0].mxu0
        %4858 = vdwg.mxu0
        %4859 = vmatprep.subr.bf16.mxu0 0
        %4860 = vmatpush1.bf16.msra.mxu0 %v4488
        %4861 = vmatprep.subr.bf16.mxu0 0
        %4862 = vmatpush1.bf16.msra.mxu0 %v4489
        %4863 = vmatprep.subr.bf16.mxu0 0
        %4864 = vmatpush1.bf16.msra.mxu0 %v4490
        %4865 = vmatprep.subr.bf16.mxu0 0
        %4866 = vmatpush1.bf16.msra.mxu0 %v4491
        %4867 = vmatprep.subr.bf16.mxu0 0
        %4868 = vmatpush1.bf16.msra.mxu0 %v4492
        %4869 = vmatprep.subr.bf16.mxu0 0
        %4870 = vmatpush1.bf16.msra.mxu0 %v4493
        %4871 = vmatprep.subr.bf16.mxu0 0
        %4872 = vmatpush1.bf16.msra.mxu0 %v4494
        %4873 = vmatprep.subr.bf16.mxu0 0
        %4874 = vmatpush1.bf16.msra.mxu0 %v4495
        %4875 = vmatprep.subr.bf16.mxu0 0
        %4876 = vmatpush1.bf16.msra.mxu0 %v4496
        %4877 = vmatprep.subr.bf16.mxu0 0
        %4878 = vmatpush1.bf16.msra.mxu0 %v4497
        %4879 = vmatprep.subr.bf16.mxu0 0
        %4880 = vmatpush1.bf16.msra.mxu0 %v4498
        %4881 = vmatprep.subr.bf16.mxu0 0
        %4882 = vmatpush1.bf16.msra.mxu0 %v4499
        %4883 = vmatprep.subr.bf16.mxu0 0
        %4884 = vmatpush1.bf16.msra.mxu0 %v4500
        %4885 = vmatprep.subr.bf16.mxu0 0
        %4886 = vmatpush1.bf16.msra.mxu0 %v4501
        %4887 = vmatprep.subr.bf16.mxu0 0
        %4888 = vmatpush1.bf16.msra.mxu0 %v4502
        %4889 = vmatprep.subr.bf16.mxu0 0
        %4890 = vmatpush1.bf16.msra.mxu0 %v4503
        %4891 = vmatprep.mubr.bf16.mxu0 %v3992
        %4892 = vmatmul.mubr.bf16.gmra.mrb[0].mxu0 %v3991
        %v4893 = vpop.f32.mrb[0].mxu0
        %v4894 = vadd.f32 %v4797, %v4893
        %v4895 = vpop.f32.mrb[0].mxu0
        %v4896 = vpop.f32.mrb[0].mxu0
        %v4897 = vadd.f32 %v4800, %v4896
        %v4898 = vpop.f32.mrb[0].mxu0
        %4899 = vmatprep.mubr.bf16.mxu0 %v4000
        %4900 = vmatmul.mubr.bf16.gmra.mrb[0].mxu0 %v3999
        %v4901 = vpop.f32.mrb[0].mxu0
        %v4902 = vadd.f32 %v4805, %v4901
        %v4903 = vpop.f32.mrb[0].mxu0
        %v4904 = vpop.f32.mrb[0].mxu0
        %v4905 = vadd.f32 %v4808, %v4904
        %v4906 = vpop.f32.mrb[0].mxu0
        %4907 = vmatprep.mubr.bf16.mxu0 %v4008
        %4908 = vmatmul.mubr.bf16.gmra.mrb[0].mxu0 %v4007
        %v4909 = vpop.f32.mrb[0].mxu0
        %v4910 = vadd.f32 %v4813, %v4909
        %v4911 = vpop.f32.mrb[0].mxu0
        %v4912 = vpop.f32.mrb[0].mxu0
        %v4913 = vadd.f32 %v4816, %v4912
        %v4914 = vpop.f32.mrb[0].mxu0
        %4915 = vmatprep.mubr.bf16.mxu0 %v4016
        %4916 = vmatmul.mubr.bf16.gmra.mrb[0].mxu0 %v4015
        %v4917 = vpop.f32.mrb[0].mxu0
        %v4918 = vadd.f32 %v4821, %v4917
        %v4919 = vpop.f32.mrb[0].mxu0
        %v4920 = vpop.f32.mrb[0].mxu0
        %v4921 = vadd.f32 %v4824, %v4920
        %v4922 = vpop.f32.mrb[0].mxu0
        %4923 = vmatprep.mubr.bf16.mxu0 %v4024
        %4924 = vmatmul.mubr.bf16.gmra.mrb[0].mxu0 %v4023
        %v4925 = vpop.f32.mrb[0].mxu0
        %v4926 = vadd.f32 %v4829, %v4925
        %v4927 = vpop.f32.mrb[0].mxu0
        %v4928 = vpop.f32.mrb[0].mxu0
        %v4929 = vadd.f32 %v4832, %v4928
        %v4930 = vpop.f32.mrb[0].mxu0
        %4931 = vmatprep.mubr.bf16.mxu0 %v4032
        %4932 = vmatmul.mubr.bf16.gmra.mrb[0].mxu0 %v4031
        %v4933 = vpop.f32.mrb[0].mxu0
        %v4934 = vadd.f32 %v4837, %v4933
        %v4935 = vpop.f32.mrb[0].mxu0
        %v4936 = vpop.f32.mrb[0].mxu0
        %v4937 = vadd.f32 %v4840, %v4936
        %v4938 = vpop.f32.mrb[0].mxu0
        %4939 = vmatprep.mubr.bf16.mxu0 %v4040
        %4940 = vmatmul.mubr.bf16.gmra.mrb[0].mxu0 %v4039
        %v4941 = vpop.f32.mrb[0].mxu0
        %v4942 = vadd.f32 %v4845, %v4941
        %v4943 = vpop.f32.mrb[0].mxu0
        %v4944 = vpop.f32.mrb[0].mxu0
        %v4945 = vadd.f32 %v4848, %v4944
        %v4946 = vpop.f32.mrb[0].mxu0
        %4947 = vmatprep.mubr.bf16.mxu0 %v4048
        %4948 = vmatmul.mubr.bf16.gmra.mrb[0].mxu0 %v4047
        %v4949 = vpop.f32.mrb[0].mxu0
        %v4950 = vadd.f32 %v4853, %v4949
        %v4951 = vpop.f32.mrb[0].mxu0
        %v4952 = vpop.f32.mrb[0].mxu0
        %v4953 = vadd.f32 %v4856, %v4952
        %v4954 = vpop.f32.mrb[0].mxu0
        %4955 = vdwg.mxu0
        %v4956 = vmax.f32 %v4894, 0.0
        %v4957 = vmax.f32 %v4897, 0.0
        %v4958 = vmax.f32 %v4902, 0.0
        %v4959 = vmax.f32 %v4905, 0.0
        %v4960 = vmax.f32 %v4910, 0.0
        %v4961 = vmax.f32 %v4913, 0.0
        %v4962 = vmax.f32 %v4918, 0.0
        %v4963 = vmax.f32 %v4921, 0.0
        %v4964 = vmax.f32 %v4926, 0.0
        %v4965 = vmax.f32 %v4929, 0.0
        %v4966 = vmax.f32 %v4934, 0.0
        %v4967 = vmax.f32 %v4937, 0.0
        %v4968 = vmax.f32 %v4942, 0.0
        %v4969 = vmax.f32 %v4945, 0.0
        %v4970 = vmax.f32 %v4950, 0.0
        %v4971 = vmax.f32 %v4953, 0.0
        %v4972 = vpack.c.bf16 %v4957, %v4956
        %v4973 = vpack.c.bf16 %v4959, %v4958
        %v4974 = vpack.c.bf16 %v4961, %v4960
        %v4975 = vpack.c.bf16 %v4963, %v4962
        %v4976 = vpack.c.bf16 %v4965, %v4964
        %v4977 = vpack.c.bf16 %v4967, %v4966
        %v4978 = vpack.c.bf16 %v4969, %v4968
        %v4979 = vpack.c.bf16 %v4971, %v4970
        %v4980 = vld [vmem:[%s7] sm:$0xff]
        %v4981 = vld [vmem:[%s7 + $0x8] sm:$0xff]
        %v4982 = vld [vmem:[%s7 + $0x10] sm:$0xff]
        %v4983 = vld [vmem:[%s7 + $0x18] sm:$0xff]
        %v4984 = vld [vmem:[%s7 + $0x20] sm:$0xff]
        %v4985 = vld [vmem:[%s7 + $0x28] sm:$0xff]
        %v4986 = vld [vmem:[%s7 + $0x30] sm:$0xff]
        %v4987 = vld [vmem:[%s7 + $0x38] sm:$0xff]
        %v4988 = vld [vmem:[%s8] sm:$0xf]
        %v4990 = vlaneseq
        %v4991 = vshrl.u32 %v4990, 7
        %v4992 = vsub.s32 0, %v4991
        %v4993 = vrot.slane %v4988, %v4992
        %v4994 = vlaneseq
        %v4995 = vshrl.u32 %v4994, 7
        %v4996 = vsub.s32 1, %v4995
        %v4997 = vrot.slane %v4988, %v4996
        %v4998 = vlaneseq
        %v4999 = vshrl.u32 %v4998, 7
        %v5000 = vsub.s32 2, %v4999
        %v5001 = vrot.slane %v4988, %v5000
        %v5002 = vlaneseq
        %v5003 = vshrl.u32 %v5002, 7
        %v5004 = vsub.s32 3, %v5003
        %v5005 = vrot.slane %v4988, %v5004
        %v5018 = vunpack.c.l.b16 %v4980
        %v5019 = vunpack.c.h.b16 %v4980
        %v5020 = vunpack.c.l.b16 %v4981
        %v5021 = vunpack.c.h.b16 %v4981
        %v5022 = vunpack.c.l.b16 %v4982
        %v5023 = vunpack.c.h.b16 %v4982
        %v5024 = vunpack.c.l.b16 %v4983
        %v5025 = vunpack.c.h.b16 %v4983
        %v5026 = vunpack.c.l.b16 %v4984
        %v5027 = vunpack.c.h.b16 %v4984
        %v5028 = vunpack.c.l.b16 %v4985
        %v5029 = vunpack.c.h.b16 %v4985
        %v5030 = vunpack.c.l.b16 %v4986
        %v5031 = vunpack.c.h.b16 %v4986
        %v5032 = vunpack.c.l.b16 %v4987
        %v5033 = vunpack.c.h.b16 %v4987
        %v5034 = vpack.c.b16 %v5022, %v5018
        %v5035 = vpack.c.b16 %v5023, %v5019
        %v5036 = vpack.c.b16 %v5024, %v5020
        %v5037 = vpack.c.b16 %v5025, %v5021
        %v5038 = vpack.c.b16 %v5030, %v5026
        %v5039 = vpack.c.b16 %v5031, %v5027
        %v5040 = vpack.c.b16 %v5032, %v5028
        %v5041 = vpack.c.b16 %v5033, %v5029
        %v5051 = vsel %vm690, %v4972, 0
        %v5054 = vsel %vm690, %v4973, 0
        %v5057 = vsel %vm690, %v4974, 0
        %v5060 = vsel %vm690, %v4975, 0
        %v5063 = vsel %vm690, %v4976, 0
        %v5066 = vsel %vm690, %v4977, 0
        %v5069 = vsel %vm690, %v4978, 0
        %v5072 = vsel %vm690, %v4979, 0
        %5074 = vmatprep.subr.bf16.mxu0 %v5035
        %5075 = vmatpush1.bf16.msra.mxu0 %v5034
        %5076 = vmatprep.subr.bf16.mxu0 %v5039
        %5077 = vmatpush1.bf16.msra.mxu0 %v5038
        %5078 = vmatprep.subr.bf16.mxu0 0
        %5079 = vmatpush1.bf16.msra.mxu0 0
        %5080 = vmatprep.subr.bf16.mxu0 0
        %5081 = vmatpush1.bf16.msra.mxu0 0
        %5082 = vmatprep.subr.bf16.mxu0 0
        %5083 = vmatpush1.bf16.msra.mxu0 0
        %5084 = vmatprep.subr.bf16.mxu0 0
        %5085 = vmatpush1.bf16.msra.mxu0 0
        %5086 = vmatprep.subr.bf16.mxu0 0
        %5087 = vmatpush1.bf16.msra.mxu0 0
        %5088 = vmatprep.subr.bf16.mxu0 0
        %5089 = vmatpush1.bf16.msra.mxu0 0
        %5090 = vmatprep.subr.bf16.mxu0 0
        %5091 = vmatpush1.bf16.msra.mxu0 0
        %5092 = vmatprep.subr.bf16.mxu0 0
        %5093 = vmatpush1.bf16.msra.mxu0 0
        %5094 = vmatprep.subr.bf16.mxu0 0
        %5095 = vmatpush1.bf16.msra.mxu0 0
        %5096 = vmatprep.subr.bf16.mxu0 0
        %5097 = vmatpush1.bf16.msra.mxu0 0
        %5098 = vmatprep.subr.bf16.mxu0 0
        %5099 = vmatpush1.bf16.msra.mxu0 0
        %5100 = vmatprep.subr.bf16.mxu0 0
        %5101 = vmatpush1.bf16.msra.mxu0 0
        %5102 = vmatprep.subr.bf16.mxu0 0
        %5103 = vmatpush1.bf16.msra.mxu0 0
        %5104 = vmatprep.subr.bf16.mxu0 0
        %5105 = vmatpush1.bf16.msra.mxu0 0
        %5106 = vmatprep.mubr.bf16.mxu0 0
        %5107 = vmatmul.mubr.bf16.gmra.mrb[0].mxu0 %v5051
        %v5108 = vpop.f32.mrb[0].mxu0
        %v5109 = vadd.f32 %v4993, %v5108
        %v5110 = vpop.f32.mrb[0].mxu0
        %v5111 = vadd.f32 %v4997, %v5110
        %v5112 = vpop.f32.mrb[0].mxu0
        %v5113 = vadd.f32 %v4993, %v5112
        %v5114 = vpop.f32.mrb[0].mxu0
        %v5115 = vadd.f32 %v4997, %v5114
        %5116 = vmatprep.mubr.bf16.mxu0 0
        %5117 = vmatmul.mubr.bf16.gmra.mrb[0].mxu0 %v5054
        %v5118 = vpop.f32.mrb[0].mxu0
        %v5119 = vadd.f32 %v4993, %v5118
        %v5120 = vpop.f32.mrb[0].mxu0
        %v5121 = vadd.f32 %v4997, %v5120
        %v5122 = vpop.f32.mrb[0].mxu0
        %v5123 = vadd.f32 %v4993, %v5122
        %v5124 = vpop.f32.mrb[0].mxu0
        %v5125 = vadd.f32 %v4997, %v5124
        %5126 = vmatprep.mubr.bf16.mxu0 0
        %5127 = vmatmul.mubr.bf16.gmra.mrb[0].mxu0 %v5057
        %v5128 = vpop.f32.mrb[0].mxu0
        %v5129 = vadd.f32 %v4993, %v5128
        %v5130 = vpop.f32.mrb[0].mxu0
        %v5131 = vadd.f32 %v4997, %v5130
        %v5132 = vpop.f32.mrb[0].mxu0
        %v5133 = vadd.f32 %v4993, %v5132
        %v5134 = vpop.f32.mrb[0].mxu0
        %v5135 = vadd.f32 %v4997, %v5134
        %5136 = vmatprep.mubr.bf16.mxu0 0
        %5137 = vmatmul.mubr.bf16.gmra.mrb[0].mxu0 %v5060
        %v5138 = vpop.f32.mrb[0].mxu0
        %v5139 = vadd.f32 %v4993, %v5138
        %v5140 = vpop.f32.mrb[0].mxu0
        %v5141 = vadd.f32 %v4997, %v5140
        %v5142 = vpop.f32.mrb[0].mxu0
        %v5143 = vadd.f32 %v4993, %v5142
        %v5144 = vpop.f32.mrb[0].mxu0
        %v5145 = vadd.f32 %v4997, %v5144
        %5146 = vmatprep.mubr.bf16.mxu0 0
        %5147 = vmatmul.mubr.bf16.gmra.mrb[0].mxu0 %v5063
        %v5148 = vpop.f32.mrb[0].mxu0
        %v5149 = vadd.f32 %v4993, %v5148
        %v5150 = vpop.f32.mrb[0].mxu0
        %v5151 = vadd.f32 %v4997, %v5150
        %v5152 = vpop.f32.mrb[0].mxu0
        %v5153 = vadd.f32 %v4993, %v5152
        %v5154 = vpop.f32.mrb[0].mxu0
        %v5155 = vadd.f32 %v4997, %v5154
        %5156 = vmatprep.mubr.bf16.mxu0 0
        %5157 = vmatmul.mubr.bf16.gmra.mrb[0].mxu0 %v5066
        %v5158 = vpop.f32.mrb[0].mxu0
        %v5159 = vadd.f32 %v4993, %v5158
        %v5160 = vpop.f32.mrb[0].mxu0
        %v5161 = vadd.f32 %v4997, %v5160
        %v5162 = vpop.f32.mrb[0].mxu0
        %v5163 = vadd.f32 %v4993, %v5162
        %v5164 = vpop.f32.mrb[0].mxu0
        %v5165 = vadd.f32 %v4997, %v5164
        %5166 = vmatprep.mubr.bf16.mxu0 0
        %5167 = vmatmul.mubr.bf16.gmra.mrb[0].mxu0 %v5069
        %v5168 = vpop.f32.mrb[0].mxu0
        %v5169 = vadd.f32 %v4993, %v5168
        %v5170 = vpop.f32.mrb[0].mxu0
        %v5171 = vadd.f32 %v4997, %v5170
        %v5172 = vpop.f32.mrb[0].mxu0
        %v5173 = vadd.f32 %v4993, %v5172
        %v5174 = vpop.f32.mrb[0].mxu0
        %v5175 = vadd.f32 %v4997, %v5174
        %5176 = vmatprep.mubr.bf16.mxu0 0
        %5177 = vmatmul.mubr.bf16.gmra.mrb[0].mxu0 %v5072
        %v5178 = vpop.f32.mrb[0].mxu0
        %v5179 = vadd.f32 %v4993, %v5178
        %v5180 = vpop.f32.mrb[0].mxu0
        %v5181 = vadd.f32 %v4997, %v5180
        %v5182 = vpop.f32.mrb[0].mxu0
        %v5183 = vadd.f32 %v4993, %v5182
        %v5184 = vpop.f32.mrb[0].mxu0
        %v5185 = vadd.f32 %v4997, %v5184
        %5186 = vdwg.mxu0
        %5187 = vmatprep.subr.bf16.mxu0 %v5037
        %5188 = vmatpush1.bf16.msra.mxu0 %v5036
        %5189 = vmatprep.subr.bf16.mxu0 %v5041
        %5190 = vmatpush1.bf16.msra.mxu0 %v5040
        %5191 = vmatprep.subr.bf16.mxu0 0
        %5192 = vmatpush1.bf16.msra.mxu0 0
        %5193 = vmatprep.subr.bf16.mxu0 0
        %5194 = vmatpush1.bf16.msra.mxu0 0
        %5195 = vmatprep.subr.bf16.mxu0 0
        %5196 = vmatpush1.bf16.msra.mxu0 0
        %5197 = vmatprep.subr.bf16.mxu0 0
        %5198 = vmatpush1.bf16.msra.mxu0 0
        %5199 = vmatprep.subr.bf16.mxu0 0
        %5200 = vmatpush1.bf16.msra.mxu0 0
        %5201 = vmatprep.subr.bf16.mxu0 0
        %5202 = vmatpush1.bf16.msra.mxu0 0
        %5203 = vmatprep.subr.bf16.mxu0 0
        %5204 = vmatpush1.bf16.msra.mxu0 0
        %5205 = vmatprep.subr.bf16.mxu0 0
        %5206 = vmatpush1.bf16.msra.mxu0 0
        %5207 = vmatprep.subr.bf16.mxu0 0
        %5208 = vmatpush1.bf16.msra.mxu0 0
        %5209 = vmatprep.subr.bf16.mxu0 0
        %5210 = vmatpush1.bf16.msra.mxu0 0
        %5211 = vmatprep.subr.bf16.mxu0 0
        %5212 = vmatpush1.bf16.msra.mxu0 0
        %5213 = vmatprep.subr.bf16.mxu0 0
        %5214 = vmatpush1.bf16.msra.mxu0 0
        %5215 = vmatprep.subr.bf16.mxu0 0
        %5216 = vmatpush1.bf16.msra.mxu0 0
        %5217 = vmatprep.subr.bf16.mxu0 0
        %5218 = vmatpush1.bf16.msra.mxu0 0
        %5219 = vmatprep.mubr.bf16.mxu0 0
        %5220 = vmatmul.mubr.bf16.gmra.mrb[0].mxu0 %v5051
        %v5221 = vpop.f32.mrb[0].mxu0
        %v5222 = vadd.f32 %v5001, %v5221
        %v5223 = vpop.f32.mrb[0].mxu0
        %v5224 = vadd.f32 %v5005, %v5223
        %v5225 = vpop.f32.mrb[0].mxu0
        %v5226 = vadd.f32 %v5001, %v5225
        %v5227 = vpop.f32.mrb[0].mxu0
        %v5228 = vadd.f32 %v5005, %v5227
        %5229 = vmatprep.mubr.bf16.mxu0 0
        %5230 = vmatmul.mubr.bf16.gmra.mrb[0].mxu0 %v5054
        %v5231 = vpop.f32.mrb[0].mxu0
        %v5232 = vadd.f32 %v5001, %v5231
        %v5233 = vpop.f32.mrb[0].mxu0
        %v5234 = vadd.f32 %v5005, %v5233
        %v5235 = vpop.f32.mrb[0].mxu0
        %v5236 = vadd.f32 %v5001, %v5235
        %v5237 = vpop.f32.mrb[0].mxu0
        %v5238 = vadd.f32 %v5005, %v5237
        %5239 = vmatprep.mubr.bf16.mxu0 0
        %5240 = vmatmul.mubr.bf16.gmra.mrb[0].mxu0 %v5057
        %v5241 = vpop.f32.mrb[0].mxu0
        %v5242 = vadd.f32 %v5001, %v5241
        %v5243 = vpop.f32.mrb[0].mxu0
        %v5244 = vadd.f32 %v5005, %v5243
        %v5245 = vpop.f32.mrb[0].mxu0
        %v5246 = vadd.f32 %v5001, %v5245
        %v5247 = vpop.f32.mrb[0].mxu0
        %v5248 = vadd.f32 %v5005, %v5247
        %5249 = vmatprep.mubr.bf16.mxu0 0
        %5250 = vmatmul.mubr.bf16.gmra.mrb[0].mxu0 %v5060
        %v5251 = vpop.f32.mrb[0].mxu0
        %v5252 = vadd.f32 %v5001, %v5251
        %v5253 = vpop.f32.mrb[0].mxu0
        %v5254 = vadd.f32 %v5005, %v5253
        %v5255 = vpop.f32.mrb[0].mxu0
        %v5256 = vadd.f32 %v5001, %v5255
        %v5257 = vpop.f32.mrb[0].mxu0
        %v5258 = vadd.f32 %v5005, %v5257
        %5259 = vmatprep.mubr.bf16.mxu0 0
        %5260 = vmatmul.mubr.bf16.gmra.mrb[0].mxu0 %v5063
        %v5261 = vpop.f32.mrb[0].mxu0
        %v5262 = vadd.f32 %v5001, %v5261
        %v5263 = vpop.f32.mrb[0].mxu0
        %v5264 = vadd.f32 %v5005, %v5263
        %v5265 = vpop.f32.mrb[0].mxu0
        %v5266 = vadd.f32 %v5001, %v5265
        %v5267 = vpop.f32.mrb[0].mxu0
        %v5268 = vadd.f32 %v5005, %v5267
        %5269 = vmatprep.mubr.bf16.mxu0 0
        %5270 = vmatmul.mubr.bf16.gmra.mrb[0].mxu0 %v5066
        %v5271 = vpop.f32.mrb[0].mxu0
        %v5272 = vadd.f32 %v5001, %v5271
        %v5273 = vpop.f32.mrb[0].mxu0
        %v5274 = vadd.f32 %v5005, %v5273
        %v5275 = vpop.f32.mrb[0].mxu0
        %v5276 = vadd.f32 %v5001, %v5275
        %v5277 = vpop.f32.mrb[0].mxu0
        %v5278 = vadd.f32 %v5005, %v5277
        %5279 = vmatprep.mubr.bf16.mxu0 0
        %5280 = vmatmul.mubr.bf16.gmra.mrb[0].mxu0 %v5069
        %v5281 = vpop.f32.mrb[0].mxu0
        %v5282 = vadd.f32 %v5001, %v5281
        %v5283 = vpop.f32.mrb[0].mxu0
        %v5284 = vadd.f32 %v5005, %v5283
        %v5285 = vpop.f32.mrb[0].mxu0
        %v5286 = vadd.f32 %v5001, %v5285
        %v5287 = vpop.f32.mrb[0].mxu0
        %v5288 = vadd.f32 %v5005, %v5287
        %5289 = vmatprep.mubr.bf16.mxu0 0
        %5290 = vmatmul.mubr.bf16.gmra.mrb[0].mxu0 %v5072
        %v5291 = vpop.f32.mrb[0].mxu0
        %v5292 = vadd.f32 %v5001, %v5291
        %v5293 = vpop.f32.mrb[0].mxu0
        %v5294 = vadd.f32 %v5005, %v5293
        %v5295 = vpop.f32.mrb[0].mxu0
        %v5296 = vadd.f32 %v5001, %v5295
        %v5297 = vpop.f32.mrb[0].mxu0
        %v5298 = vadd.f32 %v5005, %v5297
        %5299 = vdwg.mxu0
        %5300 = vmax.xlane.f32.xlu0 %v5109
        %v5301 = vpop.xlane.xlu0 %5300
        %5302 = vmax.xlane.f32.xlu0 %v5113
        %v5303 = vpop.xlane.xlu0 %5302
        %5304 = vmax.xlane.f32.xlu0 %v5119
        %v5305 = vpop.xlane.xlu0 %5304
        %5306 = vmax.xlane.f32.xlu0 %v5123
        %v5307 = vpop.xlane.xlu0 %5306
        %5308 = vmax.xlane.f32.xlu0 %v5129
        %v5309 = vpop.xlane.xlu0 %5308
        %5310 = vmax.xlane.f32.xlu0 %v5133
        %v5311 = vpop.xlane.xlu0 %5310
        %5312 = vmax.xlane.f32.xlu0 %v5139
        %v5313 = vpop.xlane.xlu0 %5312
        %5314 = vmax.xlane.f32.xlu0 %v5143
        %v5315 = vpop.xlane.xlu0 %5314
        %5316 = vmax.xlane.f32.xlu0 %v5149
        %v5317 = vpop.xlane.xlu0 %5316
        %5318 = vmax.xlane.f32.xlu0 %v5153
        %v5319 = vpop.xlane.xlu0 %5318
        %5320 = vmax.xlane.f32.xlu0 %v5159
        %v5321 = vpop.xlane.xlu0 %5320
        %5322 = vmax.xlane.f32.xlu0 %v5163
        %v5323 = vpop.xlane.xlu0 %5322
        %5324 = vmax.xlane.f32.xlu0 %v5169
        %v5325 = vpop.xlane.xlu0 %5324
        %5326 = vmax.xlane.f32.xlu0 %v5173
        %v5327 = vpop.xlane.xlu0 %5326
        %5328 = vmax.xlane.f32.xlu0 %v5179
        %v5329 = vpop.xlane.xlu0 %5328
        %5330 = vmax.xlane.f32.xlu0 %v5183
        %v5331 = vpop.xlane.xlu0 %5330
        %v5332 = vsub.f32 %v5109, %v5301
        %v5333 = vsub.f32 %v5113, %v5303
        %v5334 = vsub.f32 %v5119, %v5305
        %v5335 = vsub.f32 %v5123, %v5307
        %v5336 = vsub.f32 %v5129, %v5309
        %v5337 = vsub.f32 %v5133, %v5311
        %v5338 = vsub.f32 %v5139, %v5313
        %v5339 = vsub.f32 %v5143, %v5315
        %v5340 = vsub.f32 %v5149, %v5317
        %v5341 = vsub.f32 %v5153, %v5319
        %v5342 = vsub.f32 %v5159, %v5321
        %v5343 = vsub.f32 %v5163, %v5323
        %v5344 = vsub.f32 %v5169, %v5325
        %v5345 = vsub.f32 %v5173, %v5327
        %v5346 = vsub.f32 %v5179, %v5329
        %v5347 = vsub.f32 %v5183, %v5331
        %v5348 = vmul.f32 %v5332, 1.442695
        %v5349 = vpow.pop %v5348
        %v5350 = vmul.f32 %v5333, 1.442695
        %v5351 = vpow.pop %v5350
        %v5352 = vmul.f32 %v5334, 1.442695
        %v5353 = vpow.pop %v5352
        %v5354 = vmul.f32 %v5335, 1.442695
        %v5355 = vpow.pop %v5354
        %v5356 = vmul.f32 %v5336, 1.442695
        %v5357 = vpow.pop %v5356
        %v5358 = vmul.f32 %v5337, 1.442695
        %v5359 = vpow.pop %v5358
        %v5360 = vmul.f32 %v5338, 1.442695
        %v5361 = vpow.pop %v5360
        %v5362 = vmul.f32 %v5339, 1.442695
        %v5363 = vpow.pop %v5362
        %v5364 = vmul.f32 %v5340, 1.442695
        %v5365 = vpow.pop %v5364
        %v5366 = vmul.f32 %v5341, 1.442695
        %v5367 = vpow.pop %v5366
        %v5368 = vmul.f32 %v5342, 1.442695
        %v5369 = vpow.pop %v5368
        %v5370 = vmul.f32 %v5343, 1.442695
        %v5371 = vpow.pop %v5370
        %v5372 = vmul.f32 %v5344, 1.442695
        %v5373 = vpow.pop %v5372
        %v5374 = vmul.f32 %v5345, 1.442695
        %v5375 = vpow.pop %v5374
        %v5376 = vmul.f32 %v5346, 1.442695
        %v5377 = vpow.pop %v5376
        %v5378 = vmul.f32 %v5347, 1.442695
        %v5379 = vpow.pop %v5378
        %5380 = vadd.xlane.f32.xlu0 %v5349
        %v5381 = vpop.xlane.xlu0 %5380
        %5382 = vadd.xlane.f32.xlu0 %v5351
        %v5383 = vpop.xlane.xlu0 %5382
        %5384 = vadd.xlane.f32.xlu0 %v5353
        %v5385 = vpop.xlane.xlu0 %5384
        %5386 = vadd.xlane.f32.xlu0 %v5355
        %v5387 = vpop.xlane.xlu0 %5386
        %5388 = vadd.xlane.f32.xlu0 %v5357
        %v5389 = vpop.xlane.xlu0 %5388
        %5390 = vadd.xlane.f32.xlu0 %v5359
        %v5391 = vpop.xlane.xlu0 %5390
        %5392 = vadd.xlane.f32.xlu0 %v5361
        %v5393 = vpop.xlane.xlu0 %5392
        %5394 = vadd.xlane.f32.xlu0 %v5363
        %v5395 = vpop.xlane.xlu0 %5394
        %5396 = vadd.xlane.f32.xlu0 %v5365
        %v5397 = vpop.xlane.xlu0 %5396
        %5398 = vadd.xlane.f32.xlu0 %v5367
        %v5399 = vpop.xlane.xlu0 %5398
        %5400 = vadd.xlane.f32.xlu0 %v5369
        %v5401 = vpop.xlane.xlu0 %5400
        %5402 = vadd.xlane.f32.xlu0 %v5371
        %v5403 = vpop.xlane.xlu0 %5402
        %5404 = vadd.xlane.f32.xlu0 %v5373
        %v5405 = vpop.xlane.xlu0 %5404
        %5406 = vadd.xlane.f32.xlu0 %v5375
        %v5407 = vpop.xlane.xlu0 %5406
        %5408 = vadd.xlane.f32.xlu0 %v5377
        %v5409 = vpop.xlane.xlu0 %5408
        %5410 = vadd.xlane.f32.xlu0 %v5379
        %v5411 = vpop.xlane.xlu0 %5410
        %v5412 = vrcp.pop %v5381
        %v5413 = vrcp.pop %v5383
        %v5414 = vrcp.pop %v5385
        %v5415 = vrcp.pop %v5387
        %v5416 = vrcp.pop %v5389
        %v5417 = vrcp.pop %v5391
        %v5418 = vrcp.pop %v5393
        %v5419 = vrcp.pop %v5395
        %v5420 = vrcp.pop %v5397
        %v5421 = vrcp.pop %v5399
        %v5422 = vrcp.pop %v5401
        %v5423 = vrcp.pop %v5403
        %v5424 = vrcp.pop %v5405
        %v5425 = vrcp.pop %v5407
        %v5426 = vrcp.pop %v5409
        %v5427 = vrcp.pop %v5411
        %v5428 = vmul.f32 %v5349, %v5412
        %v5429 = vmul.f32 %v5351, %v5413
        %v5430 = vmul.f32 %v5353, %v5414
        %v5431 = vmul.f32 %v5355, %v5415
        %v5432 = vmul.f32 %v5357, %v5416
        %v5433 = vmul.f32 %v5359, %v5417
        %v5434 = vmul.f32 %v5361, %v5418
        %v5435 = vmul.f32 %v5363, %v5419
        %v5436 = vmul.f32 %v5365, %v5420
        %v5437 = vmul.f32 %v5367, %v5421
        %v5438 = vmul.f32 %v5369, %v5422
        %v5439 = vmul.f32 %v5371, %v5423
        %v5440 = vmul.f32 %v5373, %v5424
        %v5441 = vmul.f32 %v5375, %v5425
        %v5442 = vmul.f32 %v5377, %v5426
        %v5443 = vmul.f32 %v5379, %v5427
        %5444 = vst [vmem:[%s326] sm:$0xff] %v5428
        %5445 = vst [vmem:[%s326 + $0x20] sm:$0xff] %v5429
        %5446 = vst [vmem:[%s326 + $0x40] sm:$0xff] %v5430
        %5447 = vst [vmem:[%s326 + $0x60] sm:$0xff] %v5431
        %5448 = vst [vmem:[%s326 + $0x80] sm:$0xff] %v5432
        %5449 = vst [vmem:[%s326 + $0xa0] sm:$0xff] %v5433
        %5450 = vst [vmem:[%s326 + $0xc0] sm:$0xff] %v5434
        %5451 = vst [vmem:[%s326 + $0xe0] sm:$0xff] %v5435
        %5452 = vst [vmem:[%s326 + $0x100] sm:$0xff] %v5436
        %5453 = vst [vmem:[%s326 + $0x120] sm:$0xff] %v5437
        %5454 = vst [vmem:[%s326 + $0x140] sm:$0xff] %v5438
        %5455 = vst [vmem:[%s326 + $0x160] sm:$0xff] %v5439
        %5456 = vst [vmem:[%s326 + $0x180] sm:$0xff] %v5440
        %5457 = vst [vmem:[%s326 + $0x1a0] sm:$0xff] %v5441
        %5458 = vst [vmem:[%s326 + $0x1c0] sm:$0xff] %v5442
        %5459 = vst [vmem:[%s326 + $0x1e0] sm:$0xff] %v5443
        %5460 = vmax.xlane.f32.xlu0 %v5111
        %v5461 = vpop.xlane.xlu0 %5460
        %5462 = vmax.xlane.f32.xlu0 %v5115
        %v5463 = vpop.xlane.xlu0 %5462
        %5464 = vmax.xlane.f32.xlu0 %v5121
        %v5465 = vpop.xlane.xlu0 %5464
        %5466 = vmax.xlane.f32.xlu0 %v5125
        %v5467 = vpop.xlane.xlu0 %5466
        %5468 = vmax.xlane.f32.xlu0 %v5131
        %v5469 = vpop.xlane.xlu0 %5468
        %5470 = vmax.xlane.f32.xlu0 %v5135
        %v5471 = vpop.xlane.xlu0 %5470
        %5472 = vmax.xlane.f32.xlu0 %v5141
        %v5473 = vpop.xlane.xlu0 %5472
        %5474 = vmax.xlane.f32.xlu0 %v5145
        %v5475 = vpop.xlane.xlu0 %5474
        %5476 = vmax.xlane.f32.xlu0 %v5151
        %v5477 = vpop.xlane.xlu0 %5476
        %5478 = vmax.xlane.f32.xlu0 %v5155
        %v5479 = vpop.xlane.xlu0 %5478
        %5480 = vmax.xlane.f32.xlu0 %v5161
        %v5481 = vpop.xlane.xlu0 %5480
        %5482 = vmax.xlane.f32.xlu0 %v5165
        %v5483 = vpop.xlane.xlu0 %5482
        %5484 = vmax.xlane.f32.xlu0 %v5171
        %v5485 = vpop.xlane.xlu0 %5484
        %5486 = vmax.xlane.f32.xlu0 %v5175
        %v5487 = vpop.xlane.xlu0 %5486
        %5488 = vmax.xlane.f32.xlu0 %v5181
        %v5489 = vpop.xlane.xlu0 %5488
        %5490 = vmax.xlane.f32.xlu0 %v5185
        %v5491 = vpop.xlane.xlu0 %5490
        %v5492 = vsub.f32 %v5111, %v5461
        %v5493 = vsub.f32 %v5115, %v5463
        %v5494 = vsub.f32 %v5121, %v5465
        %v5495 = vsub.f32 %v5125, %v5467
        %v5496 = vsub.f32 %v5131, %v5469
        %v5497 = vsub.f32 %v5135, %v5471
        %v5498 = vsub.f32 %v5141, %v5473
        %v5499 = vsub.f32 %v5145, %v5475
        %v5500 = vsub.f32 %v5151, %v5477
        %v5501 = vsub.f32 %v5155, %v5479
        %v5502 = vsub.f32 %v5161, %v5481
        %v5503 = vsub.f32 %v5165, %v5483
        %v5504 = vsub.f32 %v5171, %v5485
        %v5505 = vsub.f32 %v5175, %v5487
        %v5506 = vsub.f32 %v5181, %v5489
        %v5507 = vsub.f32 %v5185, %v5491
        %v5508 = vmul.f32 %v5492, 1.442695
        %v5509 = vpow.pop %v5508
        %v5510 = vmul.f32 %v5493, 1.442695
        %v5511 = vpow.pop %v5510
        %v5512 = vmul.f32 %v5494, 1.442695
        %v5513 = vpow.pop %v5512
        %v5514 = vmul.f32 %v5495, 1.442695
        %v5515 = vpow.pop %v5514
        %v5516 = vmul.f32 %v5496, 1.442695
        %v5517 = vpow.pop %v5516
        %v5518 = vmul.f32 %v5497, 1.442695
        %v5519 = vpow.pop %v5518
        %v5520 = vmul.f32 %v5498, 1.442695
        %v5521 = vpow.pop %v5520
        %v5522 = vmul.f32 %v5499, 1.442695
        %v5523 = vpow.pop %v5522
        %v5524 = vmul.f32 %v5500, 1.442695
        %v5525 = vpow.pop %v5524
        %v5526 = vmul.f32 %v5501, 1.442695
        %v5527 = vpow.pop %v5526
        %v5528 = vmul.f32 %v5502, 1.442695
        %v5529 = vpow.pop %v5528
        %v5530 = vmul.f32 %v5503, 1.442695
        %v5531 = vpow.pop %v5530
        %v5532 = vmul.f32 %v5504, 1.442695
        %v5533 = vpow.pop %v5532
        %v5534 = vmul.f32 %v5505, 1.442695
        %v5535 = vpow.pop %v5534
        %v5536 = vmul.f32 %v5506, 1.442695
        %v5537 = vpow.pop %v5536
        %v5538 = vmul.f32 %v5507, 1.442695
        %v5539 = vpow.pop %v5538
        %5540 = vadd.xlane.f32.xlu0 %v5509
        %v5541 = vpop.xlane.xlu0 %5540
        %5542 = vadd.xlane.f32.xlu0 %v5511
        %v5543 = vpop.xlane.xlu0 %5542
        %5544 = vadd.xlane.f32.xlu0 %v5513
        %v5545 = vpop.xlane.xlu0 %5544
        %5546 = vadd.xlane.f32.xlu0 %v5515
        %v5547 = vpop.xlane.xlu0 %5546
        %5548 = vadd.xlane.f32.xlu0 %v5517
        %v5549 = vpop.xlane.xlu0 %5548
        %5550 = vadd.xlane.f32.xlu0 %v5519
        %v5551 = vpop.xlane.xlu0 %5550
        %5552 = vadd.xlane.f32.xlu0 %v5521
        %v5553 = vpop.xlane.xlu0 %5552
        %5554 = vadd.xlane.f32.xlu0 %v5523
        %v5555 = vpop.xlane.xlu0 %5554
        %5556 = vadd.xlane.f32.xlu0 %v5525
        %v5557 = vpop.xlane.xlu0 %5556
        %5558 = vadd.xlane.f32.xlu0 %v5527
        %v5559 = vpop.xlane.xlu0 %5558
        %5560 = vadd.xlane.f32.xlu0 %v5529
        %v5561 = vpop.xlane.xlu0 %5560
        %5562 = vadd.xlane.f32.xlu0 %v5531
        %v5563 = vpop.xlane.xlu0 %5562
        %5564 = vadd.xlane.f32.xlu0 %v5533
        %v5565 = vpop.xlane.xlu0 %5564
        %5566 = vadd.xlane.f32.xlu0 %v5535
        %v5567 = vpop.xlane.xlu0 %5566
        %5568 = vadd.xlane.f32.xlu0 %v5537
        %v5569 = vpop.xlane.xlu0 %5568
        %5570 = vadd.xlane.f32.xlu0 %v5539
        %v5571 = vpop.xlane.xlu0 %5570
        %v5572 = vrcp.pop %v5541
        %v5573 = vrcp.pop %v5543
        %v5574 = vrcp.pop %v5545
        %v5575 = vrcp.pop %v5547
        %v5576 = vrcp.pop %v5549
        %v5577 = vrcp.pop %v5551
        %v5578 = vrcp.pop %v5553
        %v5579 = vrcp.pop %v5555
        %v5580 = vrcp.pop %v5557
        %v5581 = vrcp.pop %v5559
        %v5582 = vrcp.pop %v5561
        %v5583 = vrcp.pop %v5563
        %v5584 = vrcp.pop %v5565
        %v5585 = vrcp.pop %v5567
        %v5586 = vrcp.pop %v5569
        %v5587 = vrcp.pop %v5571
        %v5588 = vmul.f32 %v5509, %v5572
        %v5589 = vmul.f32 %v5511, %v5573
        %v5590 = vmul.f32 %v5513, %v5574
        %v5591 = vmul.f32 %v5515, %v5575
        %v5592 = vmul.f32 %v5517, %v5576
        %v5593 = vmul.f32 %v5519, %v5577
        %v5594 = vmul.f32 %v5521, %v5578
        %v5595 = vmul.f32 %v5523, %v5579
        %v5596 = vmul.f32 %v5525, %v5580
        %v5597 = vmul.f32 %v5527, %v5581
        %v5598 = vmul.f32 %v5529, %v5582
        %v5599 = vmul.f32 %v5531, %v5583
        %v5600 = vmul.f32 %v5533, %v5584
        %v5601 = vmul.f32 %v5535, %v5585
        %v5602 = vmul.f32 %v5537, %v5586
        %v5603 = vmul.f32 %v5539, %v5587
        %5604 = vst [vmem:[%s326 + $0x8] sm:$0xff] %v5588
        %5605 = vst [vmem:[%s326 + $0x28] sm:$0xff] %v5589
        %5606 = vst [vmem:[%s326 + $0x48] sm:$0xff] %v5590
        %5607 = vst [vmem:[%s326 + $0x68] sm:$0xff] %v5591
        %5608 = vst [vmem:[%s326 + $0x88] sm:$0xff] %v5592
        %5609 = vst [vmem:[%s326 + $0xa8] sm:$0xff] %v5593
        %5610 = vst [vmem:[%s326 + $0xc8] sm:$0xff] %v5594
        %5611 = vst [vmem:[%s326 + $0xe8] sm:$0xff] %v5595
        %5612 = vst [vmem:[%s326 + $0x108] sm:$0xff] %v5596
        %5613 = vst [vmem:[%s326 + $0x128] sm:$0xff] %v5597
        %5614 = vst [vmem:[%s326 + $0x148] sm:$0xff] %v5598
        %5615 = vst [vmem:[%s326 + $0x168] sm:$0xff] %v5599
        %5616 = vst [vmem:[%s326 + $0x188] sm:$0xff] %v5600
        %5617 = vst [vmem:[%s326 + $0x1a8] sm:$0xff] %v5601
        %5618 = vst [vmem:[%s326 + $0x1c8] sm:$0xff] %v5602
        %5619 = vst [vmem:[%s326 + $0x1e8] sm:$0xff] %v5603
        %5620 = vmax.xlane.f32.xlu0 %v5222
        %v5621 = vpop.xlane.xlu0 %5620
        %5622 = vmax.xlane.f32.xlu0 %v5226
        %v5623 = vpop.xlane.xlu0 %5622
        %5624 = vmax.xlane.f32.xlu0 %v5232
        %v5625 = vpop.xlane.xlu0 %5624
        %5626 = vmax.xlane.f32.xlu0 %v5236
        %v5627 = vpop.xlane.xlu0 %5626
        %5628 = vmax.xlane.f32.xlu0 %v5242
        %v5629 = vpop.xlane.xlu0 %5628
        %5630 = vmax.xlane.f32.xlu0 %v5246
        %v5631 = vpop.xlane.xlu0 %5630
        %5632 = vmax.xlane.f32.xlu0 %v5252
        %v5633 = vpop.xlane.xlu0 %5632
        %5634 = vmax.xlane.f32.xlu0 %v5256
        %v5635 = vpop.xlane.xlu0 %5634
        %5636 = vmax.xlane.f32.xlu0 %v5262
        %v5637 = vpop.xlane.xlu0 %5636
        %5638 = vmax.xlane.f32.xlu0 %v5266
        %v5639 = vpop.xlane.xlu0 %5638
        %5640 = vmax.xlane.f32.xlu0 %v5272
        %v5641 = vpop.xlane.xlu0 %5640
        %5642 = vmax.xlane.f32.xlu0 %v5276
        %v5643 = vpop.xlane.xlu0 %5642
        %5644 = vmax.xlane.f32.xlu0 %v5282
        %v5645 = vpop.xlane.xlu0 %5644
        %5646 = vmax.xlane.f32.xlu0 %v5286
        %v5647 = vpop.xlane.xlu0 %5646
        %5648 = vmax.xlane.f32.xlu0 %v5292
        %v5649 = vpop.xlane.xlu0 %5648
        %5650 = vmax.xlane.f32.xlu0 %v5296
        %v5651 = vpop.xlane.xlu0 %5650
        %v5652 = vsub.f32 %v5222, %v5621
        %v5653 = vsub.f32 %v5226, %v5623
        %v5654 = vsub.f32 %v5232, %v5625
        %v5655 = vsub.f32 %v5236, %v5627
        %v5656 = vsub.f32 %v5242, %v5629
        %v5657 = vsub.f32 %v5246, %v5631
        %v5658 = vsub.f32 %v5252, %v5633
        %v5659 = vsub.f32 %v5256, %v5635
        %v5660 = vsub.f32 %v5262, %v5637
        %v5661 = vsub.f32 %v5266, %v5639
        %v5662 = vsub.f32 %v5272, %v5641
        %v5663 = vsub.f32 %v5276, %v5643
        %v5664 = vsub.f32 %v5282, %v5645
        %v5665 = vsub.f32 %v5286, %v5647
        %v5666 = vsub.f32 %v5292, %v5649
        %v5667 = vsub.f32 %v5296, %v5651
        %v5668 = vmul.f32 %v5652, 1.442695
        %v5669 = vpow.pop %v5668
        %v5670 = vmul.f32 %v5653, 1.442695
        %v5671 = vpow.pop %v5670
        %v5672 = vmul.f32 %v5654, 1.442695
        %v5673 = vpow.pop %v5672
        %v5674 = vmul.f32 %v5655, 1.442695
        %v5675 = vpow.pop %v5674
        %v5676 = vmul.f32 %v5656, 1.442695
        %v5677 = vpow.pop %v5676
        %v5678 = vmul.f32 %v5657, 1.442695
        %v5679 = vpow.pop %v5678
        %v5680 = vmul.f32 %v5658, 1.442695
        %v5681 = vpow.pop %v5680
        %v5682 = vmul.f32 %v5659, 1.442695
        %v5683 = vpow.pop %v5682
        %v5684 = vmul.f32 %v5660, 1.442695
        %v5685 = vpow.pop %v5684
        %v5686 = vmul.f32 %v5661, 1.442695
        %v5687 = vpow.pop %v5686
        %v5688 = vmul.f32 %v5662, 1.442695
        %v5689 = vpow.pop %v5688
        %v5690 = vmul.f32 %v5663, 1.442695
        %v5691 = vpow.pop %v5690
        %v5692 = vmul.f32 %v5664, 1.442695
        %v5693 = vpow.pop %v5692
        %v5694 = vmul.f32 %v5665, 1.442695
        %v5695 = vpow.pop %v5694
        %v5696 = vmul.f32 %v5666, 1.442695
        %v5697 = vpow.pop %v5696
        %v5698 = vmul.f32 %v5667, 1.442695
        %v5699 = vpow.pop %v5698
        %5700 = vadd.xlane.f32.xlu0 %v5669
        %v5701 = vpop.xlane.xlu0 %5700
        %5702 = vadd.xlane.f32.xlu0 %v5671
        %v5703 = vpop.xlane.xlu0 %5702
        %5704 = vadd.xlane.f32.xlu0 %v5673
        %v5705 = vpop.xlane.xlu0 %5704
        %5706 = vadd.xlane.f32.xlu0 %v5675
        %v5707 = vpop.xlane.xlu0 %5706
        %5708 = vadd.xlane.f32.xlu0 %v5677
        %v5709 = vpop.xlane.xlu0 %5708
        %5710 = vadd.xlane.f32.xlu0 %v5679
        %v5711 = vpop.xlane.xlu0 %5710
        %5712 = vadd.xlane.f32.xlu0 %v5681
        %v5713 = vpop.xlane.xlu0 %5712
        %5714 = vadd.xlane.f32.xlu0 %v5683
        %v5715 = vpop.xlane.xlu0 %5714
        %5716 = vadd.xlane.f32.xlu0 %v5685
        %v5717 = vpop.xlane.xlu0 %5716
        %5718 = vadd.xlane.f32.xlu0 %v5687
        %v5719 = vpop.xlane.xlu0 %5718
        %5720 = vadd.xlane.f32.xlu0 %v5689
        %v5721 = vpop.xlane.xlu0 %5720
        %5722 = vadd.xlane.f32.xlu0 %v5691
        %v5723 = vpop.xlane.xlu0 %5722
        %5724 = vadd.xlane.f32.xlu0 %v5693
        %v5725 = vpop.xlane.xlu0 %5724
        %5726 = vadd.xlane.f32.xlu0 %v5695
        %v5727 = vpop.xlane.xlu0 %5726
        %5728 = vadd.xlane.f32.xlu0 %v5697
        %v5729 = vpop.xlane.xlu0 %5728
        %5730 = vadd.xlane.f32.xlu0 %v5699
        %v5731 = vpop.xlane.xlu0 %5730
        %v5732 = vrcp.pop %v5701
        %v5733 = vrcp.pop %v5703
        %v5734 = vrcp.pop %v5705
        %v5735 = vrcp.pop %v5707
        %v5736 = vrcp.pop %v5709
        %v5737 = vrcp.pop %v5711
        %v5738 = vrcp.pop %v5713
        %v5739 = vrcp.pop %v5715
        %v5740 = vrcp.pop %v5717
        %v5741 = vrcp.pop %v5719
        %v5742 = vrcp.pop %v5721
        %v5743 = vrcp.pop %v5723
        %v5744 = vrcp.pop %v5725
        %v5745 = vrcp.pop %v5727
        %v5746 = vrcp.pop %v5729
        %v5747 = vrcp.pop %v5731
        %v5748 = vmul.f32 %v5669, %v5732
        %v5749 = vmul.f32 %v5671, %v5733
        %v5750 = vmul.f32 %v5673, %v5734
        %v5751 = vmul.f32 %v5675, %v5735
        %v5752 = vmul.f32 %v5677, %v5736
        %v5753 = vmul.f32 %v5679, %v5737
        %v5754 = vmul.f32 %v5681, %v5738
        %v5755 = vmul.f32 %v5683, %v5739
        %v5756 = vmul.f32 %v5685, %v5740
        %v5757 = vmul.f32 %v5687, %v5741
        %v5758 = vmul.f32 %v5689, %v5742
        %v5759 = vmul.f32 %v5691, %v5743
        %v5760 = vmul.f32 %v5693, %v5744
        %v5761 = vmul.f32 %v5695, %v5745
        %v5762 = vmul.f32 %v5697, %v5746
        %v5763 = vmul.f32 %v5699, %v5747
        %5764 = vst [vmem:[%s326 + $0x10] sm:$0xff] %v5748
        %5765 = vst [vmem:[%s326 + $0x30] sm:$0xff] %v5749
        %5766 = vst [vmem:[%s326 + $0x50] sm:$0xff] %v5750
        %5767 = vst [vmem:[%s326 + $0x70] sm:$0xff] %v5751
        %5768 = vst [vmem:[%s326 + $0x90] sm:$0xff] %v5752
        %5769 = vst [vmem:[%s326 + $0xb0] sm:$0xff] %v5753
        %5770 = vst [vmem:[%s326 + $0xd0] sm:$0xff] %v5754
        %5771 = vst [vmem:[%s326 + $0xf0] sm:$0xff] %v5755
        %5772 = vst [vmem:[%s326 + $0x110] sm:$0xff] %v5756
        %5773 = vst [vmem:[%s326 + $0x130] sm:$0xff] %v5757
        %5774 = vst [vmem:[%s326 + $0x150] sm:$0xff] %v5758
        %5775 = vst [vmem:[%s326 + $0x170] sm:$0xff] %v5759
        %5776 = vst [vmem:[%s326 + $0x190] sm:$0xff] %v5760
        %5777 = vst [vmem:[%s326 + $0x1b0] sm:$0xff] %v5761
        %5778 = vst [vmem:[%s326 + $0x1d0] sm:$0xff] %v5762
        %5779 = vst [vmem:[%s326 + $0x1f0] sm:$0xff] %v5763
        %5780 = vmax.xlane.f32.xlu0 %v5224
        %v5781 = vpop.xlane.xlu0 %5780
        %5782 = vmax.xlane.f32.xlu0 %v5228
        %v5783 = vpop.xlane.xlu0 %5782
        %5784 = vmax.xlane.f32.xlu0 %v5234
        %v5785 = vpop.xlane.xlu0 %5784
        %5786 = vmax.xlane.f32.xlu0 %v5238
        %v5787 = vpop.xlane.xlu0 %5786
        %5788 = vmax.xlane.f32.xlu0 %v5244
        %v5789 = vpop.xlane.xlu0 %5788
        %5790 = vmax.xlane.f32.xlu0 %v5248
        %v5791 = vpop.xlane.xlu0 %5790
        %5792 = vmax.xlane.f32.xlu0 %v5254
        %v5793 = vpop.xlane.xlu0 %5792
        %5794 = vmax.xlane.f32.xlu0 %v5258
        %v5795 = vpop.xlane.xlu0 %5794
        %5796 = vmax.xlane.f32.xlu0 %v5264
        %v5797 = vpop.xlane.xlu0 %5796
        %5798 = vmax.xlane.f32.xlu0 %v5268
        %v5799 = vpop.xlane.xlu0 %5798
        %5800 = vmax.xlane.f32.xlu0 %v5274
        %v5801 = vpop.xlane.xlu0 %5800
        %5802 = vmax.xlane.f32.xlu0 %v5278
        %v5803 = vpop.xlane.xlu0 %5802
        %5804 = vmax.xlane.f32.xlu0 %v5284
        %v5805 = vpop.xlane.xlu0 %5804
        %5806 = vmax.xlane.f32.xlu0 %v5288
        %v5807 = vpop.xlane.xlu0 %5806
        %5808 = vmax.xlane.f32.xlu0 %v5294
        %v5809 = vpop.xlane.xlu0 %5808
        %5810 = vmax.xlane.f32.xlu0 %v5298
        %v5811 = vpop.xlane.xlu0 %5810
        %v5812 = vsub.f32 %v5224, %v5781
        %v5813 = vsub.f32 %v5228, %v5783
        %v5814 = vsub.f32 %v5234, %v5785
        %v5815 = vsub.f32 %v5238, %v5787
        %v5816 = vsub.f32 %v5244, %v5789
        %v5817 = vsub.f32 %v5248, %v5791
        %v5818 = vsub.f32 %v5254, %v5793
        %v5819 = vsub.f32 %v5258, %v5795
        %v5820 = vsub.f32 %v5264, %v5797
        %v5821 = vsub.f32 %v5268, %v5799
        %v5822 = vsub.f32 %v5274, %v5801
        %v5823 = vsub.f32 %v5278, %v5803
        %v5824 = vsub.f32 %v5284, %v5805
        %v5825 = vsub.f32 %v5288, %v5807
        %v5826 = vsub.f32 %v5294, %v5809
        %v5827 = vsub.f32 %v5298, %v5811
        %v5828 = vmul.f32 %v5812, 1.442695
        %v5829 = vpow.pop %v5828
        %v5830 = vmul.f32 %v5813, 1.442695
        %v5831 = vpow.pop %v5830
        %v5832 = vmul.f32 %v5814, 1.442695
        %v5833 = vpow.pop %v5832
        %v5834 = vmul.f32 %v5815, 1.442695
        %v5835 = vpow.pop %v5834
        %v5836 = vmul.f32 %v5816, 1.442695
        %v5837 = vpow.pop %v5836
        %v5838 = vmul.f32 %v5817, 1.442695
        %v5839 = vpow.pop %v5838
        %v5840 = vmul.f32 %v5818, 1.442695
        %v5841 = vpow.pop %v5840
        %v5842 = vmul.f32 %v5819, 1.442695
        %v5843 = vpow.pop %v5842
        %v5844 = vmul.f32 %v5820, 1.442695
        %v5845 = vpow.pop %v5844
        %v5846 = vmul.f32 %v5821, 1.442695
        %v5847 = vpow.pop %v5846
        %v5848 = vmul.f32 %v5822, 1.442695
        %v5849 = vpow.pop %v5848
        %v5850 = vmul.f32 %v5823, 1.442695
        %v5851 = vpow.pop %v5850
        %v5852 = vmul.f32 %v5824, 1.442695
        %v5853 = vpow.pop %v5852
        %v5854 = vmul.f32 %v5825, 1.442695
        %v5855 = vpow.pop %v5854
        %v5856 = vmul.f32 %v5826, 1.442695
        %v5857 = vpow.pop %v5856
        %v5858 = vmul.f32 %v5827, 1.442695
        %v5859 = vpow.pop %v5858
        %5860 = vadd.xlane.f32.xlu0 %v5829
        %v5861 = vpop.xlane.xlu0 %5860
        %5862 = vadd.xlane.f32.xlu0 %v5831
        %v5863 = vpop.xlane.xlu0 %5862
        %5864 = vadd.xlane.f32.xlu0 %v5833
        %v5865 = vpop.xlane.xlu0 %5864
        %5866 = vadd.xlane.f32.xlu0 %v5835
        %v5867 = vpop.xlane.xlu0 %5866
        %5868 = vadd.xlane.f32.xlu0 %v5837
        %v5869 = vpop.xlane.xlu0 %5868
        %5870 = vadd.xlane.f32.xlu0 %v5839
        %v5871 = vpop.xlane.xlu0 %5870
        %5872 = vadd.xlane.f32.xlu0 %v5841
        %v5873 = vpop.xlane.xlu0 %5872
        %5874 = vadd.xlane.f32.xlu0 %v5843
        %v5875 = vpop.xlane.xlu0 %5874
        %5876 = vadd.xlane.f32.xlu0 %v5845
        %v5877 = vpop.xlane.xlu0 %5876
        %5878 = vadd.xlane.f32.xlu0 %v5847
        %v5879 = vpop.xlane.xlu0 %5878
        %5880 = vadd.xlane.f32.xlu0 %v5849
        %v5881 = vpop.xlane.xlu0 %5880
        %5882 = vadd.xlane.f32.xlu0 %v5851
        %v5883 = vpop.xlane.xlu0 %5882
        %5884 = vadd.xlane.f32.xlu0 %v5853
        %v5885 = vpop.xlane.xlu0 %5884
        %5886 = vadd.xlane.f32.xlu0 %v5855
        %v5887 = vpop.xlane.xlu0 %5886
        %5888 = vadd.xlane.f32.xlu0 %v5857
        %v5889 = vpop.xlane.xlu0 %5888
        %5890 = vadd.xlane.f32.xlu0 %v5859
        %v5891 = vpop.xlane.xlu0 %5890
        %v5892 = vrcp.pop %v5861
        %v5893 = vrcp.pop %v5863
        %v5894 = vrcp.pop %v5865
        %v5895 = vrcp.pop %v5867
        %v5896 = vrcp.pop %v5869
        %v5897 = vrcp.pop %v5871
        %v5898 = vrcp.pop %v5873
        %v5899 = vrcp.pop %v5875
        %v5900 = vrcp.pop %v5877
        %v5901 = vrcp.pop %v5879
        %v5902 = vrcp.pop %v5881
        %v5903 = vrcp.pop %v5883
        %v5904 = vrcp.pop %v5885
        %v5905 = vrcp.pop %v5887
        %v5906 = vrcp.pop %v5889
        %v5907 = vrcp.pop %v5891
        %v5908 = vmul.f32 %v5829, %v5892
        %v5909 = vmul.f32 %v5831, %v5893
        %v5910 = vmul.f32 %v5833, %v5894
        %v5911 = vmul.f32 %v5835, %v5895
        %v5912 = vmul.f32 %v5837, %v5896
        %v5913 = vmul.f32 %v5839, %v5897
        %v5914 = vmul.f32 %v5841, %v5898
        %v5915 = vmul.f32 %v5843, %v5899
        %v5916 = vmul.f32 %v5845, %v5900
        %v5917 = vmul.f32 %v5847, %v5901
        %v5918 = vmul.f32 %v5849, %v5902
        %v5919 = vmul.f32 %v5851, %v5903
        %v5920 = vmul.f32 %v5853, %v5904
        %v5921 = vmul.f32 %v5855, %v5905
        %v5922 = vmul.f32 %v5857, %v5906
        %v5923 = vmul.f32 %v5859, %v5907
        %5924 = vst [vmem:[%s326 + $0x18] sm:$0xff] %v5908
        %5925 = vst [vmem:[%s326 + $0x38] sm:$0xff] %v5909
        %5926 = vst [vmem:[%s326 + $0x58] sm:$0xff] %v5910
        %5927 = vst [vmem:[%s326 + $0x78] sm:$0xff] %v5911
        %5928 = vst [vmem:[%s326 + $0x98] sm:$0xff] %v5912
        %5929 = vst [vmem:[%s326 + $0xb8] sm:$0xff] %v5913
        %5930 = vst [vmem:[%s326 + $0xd8] sm:$0xff] %v5914
        %5931 = vst [vmem:[%s326 + $0xf8] sm:$0xff] %v5915
        %5932 = vst [vmem:[%s326 + $0x118] sm:$0xff] %v5916
        %5933 = vst [vmem:[%s326 + $0x138] sm:$0xff] %v5917
        %5934 = vst [vmem:[%s326 + $0x158] sm:$0xff] %v5918
        %5935 = vst [vmem:[%s326 + $0x178] sm:$0xff] %v5919
        %5936 = vst [vmem:[%s326 + $0x198] sm:$0xff] %v5920
        %5937 = vst [vmem:[%s326 + $0x1b8] sm:$0xff] %v5921
        %5938 = vst [vmem:[%s326 + $0x1d8] sm:$0xff] %v5922
        %5939 = vst [vmem:[%s326 + $0x1f8] sm:$0xff] %v5923
        %s5940 = sand.u32 %s225, 1
        %s5941 = scalar_lea.sflag [#allocation4], %s5940
        %s5942 = sand.u32 %s225, 1
        %s5943 = smul.addr %s5942, 512
        %s5944 = scalar_lea.vmem [#allocation3], %s5943
        // Predicated region
        $region57: #{tpu_custom_call.1} parent=55 // pred_check
          %p5945 = pneg %p235
        $region58: #{tpu_custom_call.1} parent=55 // pred_check_branch
          %5947 = sbr.rel (%p5945) target = $region60
        $region59: #{tpu_custom_call.1} parent=55 // pred_region
          %s5948 = smul.u32 16, %s23
          %s5950 = ssub.s32 8192, 8192
          %5951 = vsyncadd %s5941, %s5950
          %s5952 = smul.addr %s5948, 4
          %s5953 = smul.addr %s5952, 128
          %s5954 = scalar_lea.hbm %s9, %s5953
          %s5955 = sshll.u32 %s5944, 4
          %s5956 = int_to_ptr.vmem [resolvable:$true] %s5955
          %5961 = dma.vmem_to_hbm [thread:$0]  %s5956, 8192, %s5954, %s5941, 512, 512, 32
        $region60: #{tpu_custom_call.1} parent=55 // pred_fallthru
          _
      $region56: #{tpu_custom_call.1} parent=5 // pred_fallthru
        _
      %p5962 = scmp.le.s32.totalorder 2, %s18
      // Predicated region
      $region61: #{tpu_custom_call.1} parent=5 // pred_check
        %p5963 = pneg %p5962
      $region62: #{tpu_custom_call.1} parent=5 // pred_check_branch
        %5965 = sbr.rel (%p5963) target = $region64
      $region63: #{tpu_custom_call.1} parent=5 // pred_region
        %s5966 = ssub.s32 %s18, 2
        // Predicated region
        $region65: #{tpu_custom_call.1} parent=63 // pred_check
          %p5967 = pneg %p241
        $region66: #{tpu_custom_call.1} parent=63 // pred_check_branch
          %5969 = sbr.rel (%p5967) target = $region68
        $region67: #{tpu_custom_call.1} parent=63 // pred_region
          %s5970 = sand.u32 %s226, 1
          %s5971 = scalar_lea.sflag [#allocation4], %s5970
          %s5972 = sand.u32 %s226, 1
          %s5973 = smul.addr %s5972, 512
          %s5974 = scalar_lea.vmem [#allocation3], %s5973
          %5975 = dma.done %s5971, 8192
        $region68: #{tpu_custom_call.1} parent=63 // pred_fallthru
          _
      $region64: #{tpu_custom_call.1} parent=5 // pred_fallthru
        _
    $region6: #{tpu_custom_call.1} parent=1 // loop_footer
      %s22 = sadd.s32 1, %s18
    $region7: #{tpu_custom_call.1} parent=1 // loop_footer_branch
      %17 = sbr.rel target = $region3
    $region8: #{tpu_custom_call.1} parent=1 // loop_exit
      _
    %5976 = vsyncpa [#allocation4], 1
    %s5977 = scalar_lea.sflag [#allocation4], 1
    %5978 = vsyncpa %s5977, 1

</llo_original>
